<compile_context>
chip_gen: v5e
topology: v5e:2x2
jax: 0.10.0
libtpu: 0.0.40
codegen_flags: <defaults>
</compile_context>

<pallas_src>
import functools

import numpy as np
import jax
import jax.numpy as jnp
from jax.experimental import pallas as pl
from jax.experimental.pallas import tpu as pltpu

BN_EPS = 1e-5                      # PyTorch BatchNorm2d default
LANE = 128                         # TPU lane width
_VMEM_LIMIT = 48 * 1024 * 1024     # explicit scoped-VMEM ceiling (fits v7x 64MiB)


def _round_up(x, m):
    return (x + m - 1) // m * m


# ----------------------------- in-kernel helpers -----------------------------

def _im2col_3x3(xq, stride, ho, wo, cp):
    """Stack the 9 taps of a 3x3 window into one (ho*wo, 9*cp) tensor.

    xq: (hh, wh, stride*stride*cp) phase-decomposed, spatially padded image;
    phase ph = (dy % stride)*stride + (dx % stride) lives in the channel slab
    [ph*cp, (ph+1)*cp).  Column order matches w.reshape(9*cp, cout): (dy, dx, ci).
    All slices are contiguous (stride handled by the phase layout)."""
    taps = []
    for dy in range(3):
        for dx in range(3):
            ph = (dy % stride) * stride + (dx % stride)
            t = jax.lax.slice(
                xq,
                (dy // stride, dx // stride, ph * cp),
                (dy // stride + ho, dx // stride + wo, (ph + 1) * cp))
            taps.append(t.reshape(ho * wo, cp))
    return jnp.concatenate(taps, axis=-1)


def _pad1_hw(x):
    """Zero-pad a (H, W, C) value by 1 on each spatial side (halo only)."""
    h, w, c = x.shape
    zc = jnp.zeros((h, 1, c), x.dtype)
    x = jnp.concatenate([zc, x, zc], axis=1)
    zr = jnp.zeros((1, w + 2, c), x.dtype)
    return jnp.concatenate([zr, x, zr], axis=0)


def _stats(y):
    """One-pass per-channel (sum, sum-of-squares): (M, C) -> (2, C)."""
    return jnp.concatenate(
        [jnp.sum(y, axis=0, keepdims=True),
         jnp.sum(y * y, axis=0, keepdims=True)], axis=0)


# --------------------------------- kernels -----------------------------------

def _conv1_kernel(*refs, stride, ho, wo, cin_p, proj):
    """conv1 (3x3, stride) [+ 1x1 projection shortcut] + per-image BN stats."""
    if proj:
        xq_ref, w1_ref, ws_ref, y1_ref, st1_ref, sc_ref, sts_ref = refs
    else:
        xq_ref, w1_ref, y1_ref, st1_ref = refs

    xq = xq_ref[0]                                       # (hh, wh, s*s*cin_p) bf16
    patches = _im2col_3x3(xq, stride, ho, wo, cin_p)     # (M, 9*cin_p) bf16
    y1 = jnp.dot(patches, w1_ref[...], preferred_element_type=jnp.float32)
    st1_ref[0] = _stats(y1)                              # stats from f32 accumulator
    y1_ref[0] = y1.astype(y1_ref.dtype)                  # bf16 inter-pass storage

    if proj:
        ph = (1 % stride) * stride + (1 % stride)
        ctr = jax.lax.slice(
            xq, (1 // stride, 1 // stride, ph * cin_p),
            (1 // stride + ho, 1 // stride + wo, (ph + 1) * cin_p))
        sc = jnp.dot(ctr.reshape(ho * wo, cin_p), ws_ref[...],
                     preferred_element_type=jnp.float32)
        sc_ref[0] = sc
        sts_ref[0] = _stats(sc)


def _conv2_kernel(y1_ref, a1_ref, c1_ref, w2_ref, y2_ref, st2_ref, *, ho, wo, cp):
    """bn1 (folded scale/shift) + relu + conv2 (3x3, stride 1) + BN stats."""
    y1 = y1_ref[0]                                                # (M, cp) bf16
    yh = jnp.maximum(y1 * a1_ref[...] + c1_ref[...], 0.0)         # bn1 + relu (f32)
    yp = _pad1_hw(yh.astype(jnp.bfloat16).reshape(ho, wo, cp))    # halo-only pad
    patches = _im2col_3x3(yp, 1, ho, wo, cp)
    y2 = jnp.dot(patches, w2_ref[...], preferred_element_type=jnp.float32)
    y2_ref[0] = y2
    st2_ref[0] = _stats(y2)


def _finalize_kernel(*refs, ho, wo, cp, proj):
    """bn2 [+ shortcut-bn] + residual add + relu; lane-dense NHWC store."""
    if proj:
        y2_ref, sc_ref, a2_ref, c2_ref, as_ref, cs_ref, o_ref = refs
    else:
        y2_ref, sc_ref, a2_ref, c2_ref, o_ref = refs

    y2 = y2_ref[0]
    sc = sc_ref[0]
    out = y2 * a2_ref[...] + c2_ref[...]
    if proj:
        out = out + sc * as_ref[...] + cs_ref[...]
    else:
        out = out + sc                                   # identity shortcut
    o_ref[0] = jnp.maximum(out, 0.0).reshape(ho, wo, cp)


# ------------------------------ XLA-side helpers ------------------------------

def _bn_affine(stats_partial, gamma, beta, count):
    """Fold per-image (sum, sumsq) partials into per-channel BN scale/shift."""
    tot = jnp.sum(stats_partial, axis=0)                  # (2, Cp)
    mean = tot[0] / count
    var = jnp.maximum(tot[1] / count - mean * mean, 0.0)  # biased variance
    scale = gamma * jax.lax.rsqrt(var + BN_EPS)
    shift = beta - mean * scale
    return (scale.reshape(1, -1).astype(jnp.float32),
            shift.reshape(1, -1).astype(jnp.float32))


# --------------------------------- wrapper ------------------------------------

def basic_block_forward(x_nchw, params, stride=1):
    """Forward pass of ResNet BasicBlock.  Input/output are NCHW float32."""
    n, cin, h, w = x_nchw.shape
    cout = params["w1"].shape[-1]
    proj = "ws" in params
    assert proj == (stride != 1 or cin != cout)
    s = stride
    ho = (h - 1) // s + 1          # matches PyTorch conv3x3(pad=1, stride=s)
    wo = (w - 1) // s + 1
    cin_p = _round_up(cin, LANE)
    cout_p = _round_up(cout, LANE)
    m = float(n * ho * wo)
    f32, bf16 = jnp.float32, jnp.bfloat16

    # ---- layout prep: NCHW -> NHWC, channel pad to lane multiple, spatial pad
    #      by 1, and (stride>1) phase decomposition so kernels only take
    #      contiguous tap slices.
    x = jnp.transpose(x_nchw, (0, 2, 3, 1)).astype(f32)
    x = jnp.pad(x, ((0, 0), (0, 0), (0, 0), (0, cin_p - cin)))
    hh = ho + (2 + s - 1) // s
    wh = wo + (2 + s - 1) // s
    hp, wp = s * hh, s * wh
    xq = jnp.pad(x, ((0, 0), (1, hp - h - 1), (1, wp - w - 1), (0, 0)))
    if s > 1:
        xq = xq.reshape(n, hh, s, wh, s, cin_p).transpose(0, 1, 3, 2, 4, 5)
        xq = xq.reshape(n, hh, wh, s * s * cin_p)
    xq = xq.astype(bf16)

    # ---- parameters: channel-pad, fold 3x3 weights to (9*Cin, Cout), bf16 MXU
    def padc(v, c_to):
        return jnp.pad(v.astype(f32), (0, c_to - v.shape[0]))

    w1 = jnp.pad(params["w1"].astype(f32),
                 ((0, 0), (0, 0), (0, cin_p - cin), (0, cout_p - cout)))
    w1 = w1.reshape(9 * cin_p, cout_p).astype(bf16)
    w2 = jnp.pad(params["w2"].astype(f32),
                 ((0, 0), (0, 0), (0, cout_p - cout), (0, cout_p - cout)))
    w2 = w2.reshape(9 * cout_p, cout_p).astype(bf16)
    g1, b1 = padc(params["g1"], cout_p), padc(params["b1"], cout_p)
    g2, b2 = padc(params["g2"], cout_p), padc(params["b2"], cout_p)

    cparams = pltpu.CompilerParams(dimension_semantics=("parallel",),
                                   vmem_limit_bytes=_VMEM_LIMIT)
    grid = (n,)
    vec_spec = pl.BlockSpec((1, cout_p), lambda i: (0, 0))
    row_spec = pl.BlockSpec((1, ho * wo, cout_p), lambda i: (i, 0, 0))
    st_spec = pl.BlockSpec((1, 2, cout_p), lambda i: (i, 0, 0))

    # ---- pass 1: conv1 (+ projection shortcut) and per-image statistics
    in_specs = [pl.BlockSpec((1, hh, wh, s * s * cin_p), lambda i: (i, 0, 0, 0)),
                pl.BlockSpec((9 * cin_p, cout_p), lambda i: (0, 0))]
    args = [xq, w1]
    out_shape = [jax.ShapeDtypeStruct((n, ho * wo, cout_p), bf16),   # y1 in bf16
                 jax.ShapeDtypeStruct((n, 2, cout_p), f32)]
    out_specs = [row_spec, st_spec]
    if proj:
        ws = jnp.pad(params["ws"].astype(f32),
                     ((0, cin_p - cin), (0, cout_p - cout))).astype(bf16)
        in_specs.append(pl.BlockSpec((cin_p, cout_p), lambda i: (0, 0)))
        args.append(ws)
        out_shape += [jax.ShapeDtypeStruct((n, ho * wo, cout_p), f32),
                      jax.ShapeDtypeStruct((n, 2, cout_p), f32)]
        out_specs += [row_spec, st_spec]

    k1 = functools.partial(_conv1_kernel, stride=s, ho=ho, wo=wo,
                           cin_p=cin_p, proj=proj)
    res1 = pl.pallas_call(
        k1, grid=grid, in_specs=in_specs, out_specs=tuple(out_specs),
        out_shape=tuple(out_shape), compiler_params=cparams)(*args)
    if proj:
        y1, st1, sc_raw, sts = res1
    else:
        y1, st1 = res1

    scale1, shift1 = _bn_affine(st1, g1, b1, m)

    # ---- pass 2: bn1 + relu + conv2 and its statistics
    k2 = functools.partial(_conv2_kernel, ho=ho, wo=wo, cp=cout_p)
    y2, st2 = pl.pallas_call(
        k2, grid=grid,
        in_specs=[row_spec, vec_spec, vec_spec,
                  pl.BlockSpec((9 * cout_p, cout_p), lambda i: (0, 0))],
        out_specs=(row_spec, st_spec),
        out_shape=(jax.ShapeDtypeStruct((n, ho * wo, cout_p), f32),
                   jax.ShapeDtypeStruct((n, 2, cout_p), f32)),
        compiler_params=cparams)(y1, scale1, shift1, w2)

    scale2, shift2 = _bn_affine(st2, g2, b2, m)

    # ---- pass 3: bn2 [+ shortcut-bn] + add + relu (lane-dense NHWC store)
    k3 = functools.partial(_finalize_kernel, ho=ho, wo=wo, cp=cout_p, proj=proj)
    in_specs3 = [row_spec, row_spec, vec_spec, vec_spec]
    if proj:
        gs, bs = padc(params["gs"], cout_p), padc(params["bs"], cout_p)
        scale_s, shift_s = _bn_affine(sts, gs, bs, m)
        args3 = [y2, sc_raw, scale2, shift2, scale_s, shift_s]
        in_specs3 += [vec_spec, vec_spec]
    else:
        # identity shortcut: add the (channel-padded) input directly, no affine
        args3 = [y2, x.reshape(n, h * w, cin_p), scale2, shift2]

    out = pl.pallas_call(
        k3, grid=grid,
        in_specs=in_specs3,
        out_specs=pl.BlockSpec((1, ho, wo, cout_p), lambda i: (i, 0, 0, 0)),
        out_shape=jax.ShapeDtypeStruct((n, ho, wo, cout_p), f32),
        compiler_params=cparams)(*args3)

    return jnp.transpose(out[..., :cout], (0, 3, 1, 2))


# ------------------------- pure-JAX reference (check) -------------------------

def _reference_forward(x_nchw, params, stride=1):
    def conv(x, w_hwio, s, pad):
        return jax.lax.conv_general_dilated(
            x, w_hwio, window_strides=(s, s), padding=pad,
            dimension_numbers=("NCHW", "HWIO", "NCHW"),
            precision=jax.lax.Precision.HIGHEST)

    def bn(x, g, b):
        mean = jnp.mean(x, axis=(0, 2, 3), keepdims=True)
        var = jnp.mean((x - mean) ** 2, axis=(0, 2, 3), keepdims=True)
        return ((x - mean) * jax.lax.rsqrt(var + BN_EPS)
                * g.reshape(1, -1, 1, 1) + b.reshape(1, -1, 1, 1))

    out = jax.nn.relu(bn(conv(x_nchw, params["w1"], stride, ((1, 1), (1, 1))),
                         params["g1"], params["b1"]))
    out = bn(conv(out, params["w2"], 1, ((1, 1), (1, 1))),
             params["g2"], params["b2"])
    if "ws" in params:
        w1x1 = params["ws"].reshape(1, 1, *params["ws"].shape)
        sc = bn(conv(x_nchw, w1x1, stride, ((0, 0), (0, 0))),
                params["gs"], params["bs"])
    else:
        sc = x_nchw
    return jax.nn.relu(out + sc)


# -------------------------------- params init ---------------------------------

def init_params(key, in_planes, planes, stride=1):
    ks = jax.random.split(key, 9)
    p = dict(
        w1=0.1 * jax.random.normal(ks[0], (3, 3, in_planes, planes), jnp.float32),
        g1=1.0 + 0.1 * jax.random.normal(ks[1], (planes,), jnp.float32),
        b1=0.1 * jax.random.normal(ks[2], (planes,), jnp.float32),
        w2=0.1 * jax.random.normal(ks[3], (3, 3, planes, planes), jnp.float32),
        g2=1.0 + 0.1 * jax.random.normal(ks[4], (planes,), jnp.float32),
        b2=0.1 * jax.random.normal(ks[5], (planes,), jnp.float32),
    )
    if stride != 1 or in_planes != planes:
        p["ws"] = 0.1 * jax.random.normal(ks[6], (in_planes, planes), jnp.float32)
        p["gs"] = 1.0 + 0.1 * jax.random.normal(ks[7], (planes,), jnp.float32)
        p["bs"] = 0.1 * jax.random.normal(ks[8], (planes,), jnp.float32)
    return p


if __name__ == "__main__":
    key = jax.random.PRNGKey(0)
    kx1, kx2, kp1, kp2, kp3 = jax.random.split(key, 5)

    fwd = jax.jit(basic_block_forward, static_argnames=("stride",))
    # Tolerance reflects bf16 MXU inputs feeding two BatchNorms (which rescale
    # everything to unit variance); real bugs produce O(1) errors.
    TOL = dict(rtol=2e-2, atol=5e-2)

    # Config 1: identity shortcut (stride=1, in_planes == planes).
    N, C, H, W = 2, 8, 16, 16
    x1 = jax.random.normal(kx1, (N, C, H, W), jnp.float32)
    p_id = init_params(kp1, in_planes=C, planes=C, stride=1)
    out = jax.block_until_ready(fwd(x1, p_id, stride=1))
    np.testing.assert_allclose(np.asarray(out),
                               np.asarray(_reference_forward(x1, p_id, stride=1)),
                               **TOL)

    # Config 2: projection shortcut via channel change (stride=1, 8 -> 16).
    p_pr = init_params(kp2, in_planes=C, planes=2 * C, stride=1)
    out = jax.block_until_ready(fwd(x1, p_pr, stride=1))
    np.testing.assert_allclose(np.asarray(out),
                               np.asarray(_reference_forward(x1, p_pr, stride=1)),
                               **TOL)

    # Config 3: projection shortcut with stride=2 and odd spatial dims (15x15).
    x2 = jax.random.normal(kx2, (N, C, 15, 15), jnp.float32)
    p_s2 = init_params(kp3, in_planes=C, planes=2 * C, stride=2)
    out = jax.block_until_ready(fwd(x2, p_s2, stride=2))
    np.testing.assert_allclose(np.asarray(out),
                               np.asarray(_reference_forward(x2, p_s2, stride=2)),
                               **TOL)

    print("KERNEL_OK")
</pallas_src>

<mosaic_0001>
module attributes {stable_mosaic.version = 11 : i64} {
  func.func @_conv1_kernel(%arg0: i32, %arg1: memref<1x18x18x128xbf16, #tpu.memory_space<vmem>>, %arg2: memref<1152x128xbf16, #tpu.memory_space<vmem>>, %arg3: memref<1x256x128xbf16, #tpu.memory_space<vmem>>, %arg4: memref<1x2x128xf32, #tpu.memory_space<vmem>>) attributes {dimension_semantics = [#tpu.dimension_semantics<parallel>], iteration_bounds = array<i64: 2>, scalar_prefetch = 0 : i64, scratch_operands = 0 : i64, tpu.core_type = #tpu.core_type<tc>, window_params = [{transform_indices = @transform_0, window_bounds = array<i64: 1, 18, 18, 128>}, {pipeline_mode = #tpu.pipeline_mode<synchronous>, transform_indices = @transform_1, window_bounds = array<i64: 1152, 128>}, {transform_indices = @transform_2, window_bounds = array<i64: 1, 256, 128>}, {transform_indices = @transform_3, window_bounds = array<i64: 1, 2, 128>}]} {
    %c0 = arith.constant 0 : index
    %c0_0 = arith.constant 0 : index
    %c0_1 = arith.constant 0 : index
    %c0_2 = arith.constant 0 : index
    %0 = vector.load %arg1[%c0, %c0_0, %c0_1, %c0_2] : memref<1x18x18x128xbf16, #tpu.memory_space<vmem>>, vector<1x18x18x128xbf16>
    %1 = vector.shape_cast %0 : vector<1x18x18x128xbf16> to vector<18x18x128xbf16>
    %2 = vector.extract_strided_slice %1 {offsets = [0, 0, 0], sizes = [16, 16, 128], strides = [1, 1, 1]} : vector<18x18x128xbf16> to vector<16x16x128xbf16>
    %3 = vector.shape_cast %2 : vector<16x16x128xbf16> to vector<256x128xbf16>
    %4 = vector.extract_strided_slice %1 {offsets = [0, 1, 0], sizes = [16, 16, 128], strides = [1, 1, 1]} : vector<18x18x128xbf16> to vector<16x16x128xbf16>
    %5 = vector.shape_cast %4 : vector<16x16x128xbf16> to vector<256x128xbf16>
    %6 = vector.extract_strided_slice %1 {offsets = [0, 2, 0], sizes = [16, 16, 128], strides = [1, 1, 1]} : vector<18x18x128xbf16> to vector<16x16x128xbf16>
    %7 = vector.shape_cast %6 : vector<16x16x128xbf16> to vector<256x128xbf16>
    %8 = vector.extract_strided_slice %1 {offsets = [1, 0, 0], sizes = [16, 16, 128], strides = [1, 1, 1]} : vector<18x18x128xbf16> to vector<16x16x128xbf16>
    %9 = vector.shape_cast %8 : vector<16x16x128xbf16> to vector<256x128xbf16>
    %10 = vector.extract_strided_slice %1 {offsets = [1, 1, 0], sizes = [16, 16, 128], strides = [1, 1, 1]} : vector<18x18x128xbf16> to vector<16x16x128xbf16>
    %11 = vector.shape_cast %10 : vector<16x16x128xbf16> to vector<256x128xbf16>
    %12 = vector.extract_strided_slice %1 {offsets = [1, 2, 0], sizes = [16, 16, 128], strides = [1, 1, 1]} : vector<18x18x128xbf16> to vector<16x16x128xbf16>
    %13 = vector.shape_cast %12 : vector<16x16x128xbf16> to vector<256x128xbf16>
    %14 = vector.extract_strided_slice %1 {offsets = [2, 0, 0], sizes = [16, 16, 128], strides = [1, 1, 1]} : vector<18x18x128xbf16> to vector<16x16x128xbf16>
    %15 = vector.shape_cast %14 : vector<16x16x128xbf16> to vector<256x128xbf16>
    %16 = vector.extract_strided_slice %1 {offsets = [2, 1, 0], sizes = [16, 16, 128], strides = [1, 1, 1]} : vector<18x18x128xbf16> to vector<16x16x128xbf16>
    %17 = vector.shape_cast %16 : vector<16x16x128xbf16> to vector<256x128xbf16>
    %18 = vector.extract_strided_slice %1 {offsets = [2, 2, 0], sizes = [16, 16, 128], strides = [1, 1, 1]} : vector<18x18x128xbf16> to vector<16x16x128xbf16>
    %19 = vector.shape_cast %18 : vector<16x16x128xbf16> to vector<256x128xbf16>
    %20 = tpu.concatenate %3, %5, %7, %9, %11, %13, %15, %17, %19 in 1 : vector<256x128xbf16>, vector<256x128xbf16>, vector<256x128xbf16>, vector<256x128xbf16>, vector<256x128xbf16>, vector<256x128xbf16>, vector<256x128xbf16>, vector<256x128xbf16>, vector<256x128xbf16> -> vector<256x1152xbf16>
    %c0_3 = arith.constant 0 : index
    %c0_4 = arith.constant 0 : index
    %21 = vector.load %arg2[%c0_3, %c0_4] : memref<1152x128xbf16, #tpu.memory_space<vmem>>, vector<1152x128xbf16>
    %cst = arith.constant dense<0.000000e+00> : vector<256x128xf32>
    %22 = tpu.matmul %20, %21, %cst {dimension_numbers = #tpu.dot_dimension_numbers<[1], [0], [0], [1], [0, 0, 1, 1], [], []>} : vector<256x1152xbf16>, vector<1152x128xbf16>, vector<256x128xf32> -> vector<256x128xf32>
    %cst_5 = arith.constant dense<0.000000e+00> : vector<128xf32>
    %23 = vector.multi_reduction <add>, %22, %cst_5 [0] : vector<256x128xf32> to vector<128xf32>
    %24 = vector.shape_cast %23 : vector<128xf32> to vector<1x128xf32>
    %25 = arith.mulf %22, %22 : vector<256x128xf32>
    %cst_6 = arith.constant dense<0.000000e+00> : vector<128xf32>
    %26 = vector.multi_reduction <add>, %25, %cst_6 [0] : vector<256x128xf32> to vector<128xf32>
    %27 = vector.shape_cast %26 : vector<128xf32> to vector<1x128xf32>
    %28 = tpu.concatenate %24, %27 in 0 : vector<1x128xf32>, vector<1x128xf32> -> vector<2x128xf32>
    %c0_7 = arith.constant 0 : index
    %c0_8 = arith.constant 0 : index
    %c0_9 = arith.constant 0 : index
    %29 = vector.load %arg4[%c0_7, %c0_8, %c0_9] : memref<1x2x128xf32, #tpu.memory_space<vmem>>, vector<1x2x128xf32>
    %30 = vector.shape_cast %29 : vector<1x2x128xf32> to vector<2x128xf32>
    %31 = vector.shape_cast %28 : vector<2x128xf32> to vector<1x2x128xf32>
    tpu.vector_store %arg4[%c0_7, %c0_8, %c0_9], %31 {strides = array<i32>} : memref<1x2x128xf32, #tpu.memory_space<vmem>>, vector<1x2x128xf32>,
    %32 = arith.truncf %22 : vector<256x128xf32> to vector<256x128xbf16>
    %c0_10 = arith.constant 0 : index
    %c0_11 = arith.constant 0 : index
    %c0_12 = arith.constant 0 : index
    %33 = vector.load %arg3[%c0_10, %c0_11, %c0_12] : memref<1x256x128xbf16, #tpu.memory_space<vmem>>, vector<1x256x128xbf16>
    %34 = vector.shape_cast %33 : vector<1x256x128xbf16> to vector<256x128xbf16>
    %35 = vector.shape_cast %32 : vector<256x128xbf16> to vector<1x256x128xbf16>
    tpu.vector_store %arg3[%c0_10, %c0_11, %c0_12], %35 {strides = array<i32>} : memref<1x256x128xbf16, #tpu.memory_space<vmem>>, vector<1x256x128xbf16>,
    return
  }
  func.func @transform_0(%arg0: i32) -> (i32, i32, i32, i32) {
    %c0_i32 = arith.constant 0 : i32
    %c0_i32_0 = arith.constant 0 : i32
    %c0_i32_1 = arith.constant 0 : i32
    %c0_i32_2 = arith.constant 0 : i32
    return %arg0, %c0_i32, %c0_i32_0, %c0_i32_1 : i32, i32, i32, i32
  }
  func.func @transform_1(%arg0: i32) -> (i32, i32) {
    %c0_i32 = arith.constant 0 : i32
    %c0_i32_0 = arith.constant 0 : i32
    %c0_i32_1 = arith.constant 0 : i32
    return %c0_i32, %c0_i32_0 : i32, i32
  }
  func.func @transform_2(%arg0: i32) -> (i32, i32, i32) {
    %c0_i32 = arith.constant 0 : i32
    %c0_i32_0 = arith.constant 0 : i32
    %c0_i32_1 = arith.constant 0 : i32
    return %arg0, %c0_i32, %c0_i32_0 : i32, i32, i32
  }
  func.func @transform_3(%arg0: i32) -> (i32, i32, i32) {
    %c0_i32 = arith.constant 0 : i32
    %c0_i32_0 = arith.constant 0 : i32
    %c0_i32_1 = arith.constant 0 : i32
    return %arg0, %c0_i32, %c0_i32_0 : i32, i32, i32
  }
}

module attributes {stable_mosaic.version = 11 : i64} {
  func.func @_conv2_kernel(%arg0: i32, %arg1: memref<1x256x128xbf16, #tpu.memory_space<vmem>>, %arg2: memref<1x128xf32, #tpu.memory_space<vmem>>, %arg3: memref<1x128xf32, #tpu.memory_space<vmem>>, %arg4: memref<1152x128xbf16, #tpu.memory_space<vmem>>, %arg5: memref<1x256x128xf32, #tpu.memory_space<vmem>>, %arg6: memref<1x2x128xf32, #tpu.memory_space<vmem>>) attributes {dimension_semantics = [#tpu.dimension_semantics<parallel>], iteration_bounds = array<i64: 2>, scalar_prefetch = 0 : i64, scratch_operands = 0 : i64, tpu.core_type = #tpu.core_type<tc>, window_params = [{transform_indices = @transform_0, window_bounds = array<i64: 1, 256, 128>}, {pipeline_mode = #tpu.pipeline_mode<synchronous>, transform_indices = @transform_1, window_bounds = array<i64: 1, 128>}, {pipeline_mode = #tpu.pipeline_mode<synchronous>, transform_indices = @transform_2, window_bounds = array<i64: 1, 128>}, {pipeline_mode = #tpu.pipeline_mode<synchronous>, transform_indices = @transform_3, window_bounds = array<i64: 1152, 128>}, {transform_indices = @transform_4, window_bounds = array<i64: 1, 256, 128>}, {transform_indices = @transform_5, window_bounds = array<i64: 1, 2, 128>}]} {
    %c0 = arith.constant 0 : index
    %c0_0 = arith.constant 0 : index
    %c0_1 = arith.constant 0 : index
    %0 = vector.load %arg1[%c0, %c0_0, %c0_1] : memref<1x256x128xbf16, #tpu.memory_space<vmem>>, vector<1x256x128xbf16>
    %1 = vector.shape_cast %0 : vector<1x256x128xbf16> to vector<256x128xbf16>
    %c0_2 = arith.constant 0 : index
    %c0_3 = arith.constant 0 : index
    %2 = vector.load %arg2[%c0_2, %c0_3] : memref<1x128xf32, #tpu.memory_space<vmem>>, vector<1x128xf32>
    %3 = arith.extf %1 : vector<256x128xbf16> to vector<256x128xf32>
    %4 = vector.broadcast %2 : vector<1x128xf32> to vector<256x128xf32>
    %5 = arith.mulf %3, %4 : vector<256x128xf32>
    %c0_4 = arith.constant 0 : index
    %c0_5 = arith.constant 0 : index
    %6 = vector.load %arg3[%c0_4, %c0_5] : memref<1x128xf32, #tpu.memory_space<vmem>>, vector<1x128xf32>
    %7 = vector.broadcast %6 : vector<1x128xf32> to vector<256x128xf32>
    %8 = arith.addf %5, %7 : vector<256x128xf32>
    %cst = arith.constant 0.000000e+00 : f32
    %9 = vector.broadcast %cst : f32 to vector<256x128xf32>
    %10 = arith.maximumf %8, %9 : vector<256x128xf32>
    %11 = arith.truncf %10 : vector<256x128xf32> to vector<256x128xbf16>
    %12 = vector.shape_cast %11 : vector<256x128xbf16> to vector<16x16x128xbf16>
    %cst_6 = arith.constant 0.000000e+00 : bf16
    %13 = vector.broadcast %cst_6 : bf16 to vector<16x1x128xbf16>
    %14 = tpu.concatenate %13, %12, %13 in 1 : vector<16x1x128xbf16>, vector<16x16x128xbf16>, vector<16x1x128xbf16> -> vector<16x18x128xbf16>
    %cst_7 = arith.constant 0.000000e+00 : bf16
    %15 = vector.broadcast %cst_7 : bf16 to vector<1x18x128xbf16>
    %16 = tpu.concatenate %15, %14, %15 in 0 : vector<1x18x128xbf16>, vector<16x18x128xbf16>, vector<1x18x128xbf16> -> vector<18x18x128xbf16>
    %17 = vector.extract_strided_slice %16 {offsets = [0, 0, 0], sizes = [16, 16, 128], strides = [1, 1, 1]} : vector<18x18x128xbf16> to vector<16x16x128xbf16>
    %18 = vector.shape_cast %17 : vector<16x16x128xbf16> to vector<256x128xbf16>
    %19 = vector.extract_strided_slice %16 {offsets = [0, 1, 0], sizes = [16, 16, 128], strides = [1, 1, 1]} : vector<18x18x128xbf16> to vector<16x16x128xbf16>
    %20 = vector.shape_cast %19 : vector<16x16x128xbf16> to vector<256x128xbf16>
    %21 = vector.extract_strided_slice %16 {offsets = [0, 2, 0], sizes = [16, 16, 128], strides = [1, 1, 1]} : vector<18x18x128xbf16> to vector<16x16x128xbf16>
    %22 = vector.shape_cast %21 : vector<16x16x128xbf16> to vector<256x128xbf16>
    %23 = vector.extract_strided_slice %16 {offsets = [1, 0, 0], sizes = [16, 16, 128], strides = [1, 1, 1]} : vector<18x18x128xbf16> to vector<16x16x128xbf16>
    %24 = vector.shape_cast %23 : vector<16x16x128xbf16> to vector<256x128xbf16>
    %25 = vector.extract_strided_slice %16 {offsets = [1, 1, 0], sizes = [16, 16, 128], strides = [1, 1, 1]} : vector<18x18x128xbf16> to vector<16x16x128xbf16>
    %26 = vector.shape_cast %25 : vector<16x16x128xbf16> to vector<256x128xbf16>
    %27 = vector.extract_strided_slice %16 {offsets = [1, 2, 0], sizes = [16, 16, 128], strides = [1, 1, 1]} : vector<18x18x128xbf16> to vector<16x16x128xbf16>
    %28 = vector.shape_cast %27 : vector<16x16x128xbf16> to vector<256x128xbf16>
    %29 = vector.extract_strided_slice %16 {offsets = [2, 0, 0], sizes = [16, 16, 128], strides = [1, 1, 1]} : vector<18x18x128xbf16> to vector<16x16x128xbf16>
    %30 = vector.shape_cast %29 : vector<16x16x128xbf16> to vector<256x128xbf16>
    %31 = vector.extract_strided_slice %16 {offsets = [2, 1, 0], sizes = [16, 16, 128], strides = [1, 1, 1]} : vector<18x18x128xbf16> to vector<16x16x128xbf16>
    %32 = vector.shape_cast %31 : vector<16x16x128xbf16> to vector<256x128xbf16>
    %33 = vector.extract_strided_slice %16 {offsets = [2, 2, 0], sizes = [16, 16, 128], strides = [1, 1, 1]} : vector<18x18x128xbf16> to vector<16x16x128xbf16>
    %34 = vector.shape_cast %33 : vector<16x16x128xbf16> to vector<256x128xbf16>
    %35 = tpu.concatenate %18, %20, %22, %24, %26, %28, %30, %32, %34 in 1 : vector<256x128xbf16>, vector<256x128xbf16>, vector<256x128xbf16>, vector<256x128xbf16>, vector<256x128xbf16>, vector<256x128xbf16>, vector<256x128xbf16>, vector<256x128xbf16>, vector<256x128xbf16> -> vector<256x1152xbf16>
    %c0_8 = arith.constant 0 : index
    %c0_9 = arith.constant 0 : index
    %36 = vector.load %arg4[%c0_8, %c0_9] : memref<1152x128xbf16, #tpu.memory_space<vmem>>, vector<1152x128xbf16>
    %cst_10 = arith.constant dense<0.000000e+00> : vector<256x128xf32>
    %37 = tpu.matmul %35, %36, %cst_10 {dimension_numbers = #tpu.dot_dimension_numbers<[1], [0], [0], [1], [0, 0, 1, 1], [], []>} : vector<256x1152xbf16>, vector<1152x128xbf16>, vector<256x128xf32> -> vector<256x128xf32>
    %c0_11 = arith.constant 0 : index
    %c0_12 = arith.constant 0 : index
    %c0_13 = arith.constant 0 : index
    %38 = vector.load %arg5[%c0_11, %c0_12, %c0_13] : memref<1x256x128xf32, #tpu.memory_space<vmem>>, vector<1x256x128xf32>
    %39 = vector.shape_cast %38 : vector<1x256x128xf32> to vector<256x128xf32>
    %40 = vector.shape_cast %37 : vector<256x128xf32> to vector<1x256x128xf32>
    tpu.vector_store %arg5[%c0_11, %c0_12, %c0_13], %40 {strides = array<i32>} : memref<1x256x128xf32, #tpu.memory_space<vmem>>, vector<1x256x128xf32>,
    %cst_14 = arith.constant dense<0.000000e+00> : vector<128xf32>
    %41 = vector.multi_reduction <add>, %37, %cst_14 [0] : vector<256x128xf32> to vector<128xf32>
    %42 = vector.shape_cast %41 : vector<128xf32> to vector<1x128xf32>
    %43 = arith.mulf %37, %37 : vector<256x128xf32>
    %cst_15 = arith.constant dense<0.000000e+00> : vector<128xf32>
    %44 = vector.multi_reduction <add>, %43, %cst_15 [0] : vector<256x128xf32> to vector<128xf32>
    %45 = vector.shape_cast %44 : vector<128xf32> to vector<1x128xf32>
    %46 = tpu.concatenate %42, %45 in 0 : vector<1x128xf32>, vector<1x128xf32> -> vector<2x128xf32>
    %c0_16 = arith.constant 0 : index
    %c0_17 = arith.constant 0 : index
    %c0_18 = arith.constant 0 : index
    %47 = vector.load %arg6[%c0_16, %c0_17, %c0_18] : memref<1x2x128xf32, #tpu.memory_space<vmem>>, vector<1x2x128xf32>
    %48 = vector.shape_cast %47 : vector<1x2x128xf32> to vector<2x128xf32>
    %49 = vector.shape_cast %46 : vector<2x128xf32> to vector<1x2x128xf32>
    tpu.vector_store %arg6[%c0_16, %c0_17, %c0_18], %49 {strides = array<i32>} : memref<1x2x128xf32, #tpu.memory_space<vmem>>, vector<1x2x128xf32>,
    return
  }
  func.func @transform_0(%arg0: i32) -> (i32, i32, i32) {
    %c0_i32 = arith.constant 0 : i32
    %c0_i32_0 = arith.constant 0 : i32
    %c0_i32_1 = arith.constant 0 : i32
    return %arg0, %c0_i32, %c0_i32_0 : i32, i32, i32
  }
  func.func @transform_1(%arg0: i32) -> (i32, i32) {
    %c0_i32 = arith.constant 0 : i32
    %c0_i32_0 = arith.constant 0 : i32
    %c0_i32_1 = arith.constant 0 : i32
    return %c0_i32, %c0_i32_0 : i32, i32
  }
  func.func @transform_2(%arg0: i32) -> (i32, i32) {
    %c0_i32 = arith.constant 0 : i32
    %c0_i32_0 = arith.constant 0 : i32
    %c0_i32_1 = arith.constant 0 : i32
    return %c0_i32, %c0_i32_0 : i32, i32
  }
  func.func @transform_3(%arg0: i32) -> (i32, i32) {
    %c0_i32 = arith.constant 0 : i32
    %c0_i32_0 = arith.constant 0 : i32
    %c0_i32_1 = arith.constant 0 : i32
    return %c0_i32, %c0_i32_0 : i32, i32
  }
  func.func @transform_4(%arg0: i32) -> (i32, i32, i32) {
    %c0_i32 = arith.constant 0 : i32
    %c0_i32_0 = arith.constant 0 : i32
    %c0_i32_1 = arith.constant 0 : i32
    return %arg0, %c0_i32, %c0_i32_0 : i32, i32, i32
  }
  func.func @transform_5(%arg0: i32) -> (i32, i32, i32) {
    %c0_i32 = arith.constant 0 : i32
    %c0_i32_0 = arith.constant 0 : i32
    %c0_i32_1 = arith.constant 0 : i32
    return %arg0, %c0_i32, %c0_i32_0 : i32, i32, i32
  }
}

module attributes {stable_mosaic.version = 11 : i64} {
  func.func @_finalize_kernel(%arg0: i32, %arg1: memref<1x256x128xf32, #tpu.memory_space<vmem>>, %arg2: memref<1x256x128xf32, #tpu.memory_space<vmem>>, %arg3: memref<1x128xf32, #tpu.memory_space<vmem>>, %arg4: memref<1x128xf32, #tpu.memory_space<vmem>>, %arg5: memref<1x16x16x128xf32, #tpu.memory_space<vmem>>) attributes {dimension_semantics = [#tpu.dimension_semantics<parallel>], iteration_bounds = array<i64: 2>, scalar_prefetch = 0 : i64, scratch_operands = 0 : i64, tpu.core_type = #tpu.core_type<tc>, window_params = [{transform_indices = @transform_0, window_bounds = array<i64: 1, 256, 128>}, {transform_indices = @transform_1, window_bounds = array<i64: 1, 256, 128>}, {pipeline_mode = #tpu.pipeline_mode<synchronous>, transform_indices = @transform_2, window_bounds = array<i64: 1, 128>}, {pipeline_mode = #tpu.pipeline_mode<synchronous>, transform_indices = @transform_3, window_bounds = array<i64: 1, 128>}, {transform_indices = @transform_4, window_bounds = array<i64: 1, 16, 16, 128>}]} {
    %c0 = arith.constant 0 : index
    %c0_0 = arith.constant 0 : index
    %c0_1 = arith.constant 0 : index
    %0 = vector.load %arg1[%c0, %c0_0, %c0_1] : memref<1x256x128xf32, #tpu.memory_space<vmem>>, vector<1x256x128xf32>
    %1 = vector.shape_cast %0 : vector<1x256x128xf32> to vector<256x128xf32>
    %c0_2 = arith.constant 0 : index
    %c0_3 = arith.constant 0 : index
    %c0_4 = arith.constant 0 : index
    %2 = vector.load %arg2[%c0_2, %c0_3, %c0_4] : memref<1x256x128xf32, #tpu.memory_space<vmem>>, vector<1x256x128xf32>
    %3 = vector.shape_cast %2 : vector<1x256x128xf32> to vector<256x128xf32>
    %c0_5 = arith.constant 0 : index
    %c0_6 = arith.constant 0 : index
    %4 = vector.load %arg3[%c0_5, %c0_6] : memref<1x128xf32, #tpu.memory_space<vmem>>, vector<1x128xf32>
    %5 = vector.broadcast %4 : vector<1x128xf32> to vector<256x128xf32>
    %6 = arith.mulf %1, %5 : vector<256x128xf32>
    %c0_7 = arith.constant 0 : index
    %c0_8 = arith.constant 0 : index
    %7 = vector.load %arg4[%c0_7, %c0_8] : memref<1x128xf32, #tpu.memory_space<vmem>>, vector<1x128xf32>
    %8 = vector.broadcast %7 : vector<1x128xf32> to vector<256x128xf32>
    %9 = arith.addf %6, %8 : vector<256x128xf32>
    %10 = arith.addf %9, %3 : vector<256x128xf32>
    %cst = arith.constant 0.000000e+00 : f32
    %11 = vector.broadcast %cst : f32 to vector<256x128xf32>
    %12 = arith.maximumf %10, %11 : vector<256x128xf32>
    %13 = vector.shape_cast %12 : vector<256x128xf32> to vector<16x16x128xf32>
    %c0_9 = arith.constant 0 : index
    %c0_10 = arith.constant 0 : index
    %c0_11 = arith.constant 0 : index
    %c0_12 = arith.constant 0 : index
    %14 = vector.load %arg5[%c0_9, %c0_10, %c0_11, %c0_12] : memref<1x16x16x128xf32, #tpu.memory_space<vmem>>, vector<1x16x16x128xf32>
    %15 = vector.shape_cast %14 : vector<1x16x16x128xf32> to vector<16x16x128xf32>
    %16 = vector.shape_cast %13 : vector<16x16x128xf32> to vector<1x16x16x128xf32>
    tpu.vector_store %arg5[%c0_9, %c0_10, %c0_11, %c0_12], %16 {strides = array<i32>} : memref<1x16x16x128xf32, #tpu.memory_space<vmem>>, vector<1x16x16x128xf32>,
    return
  }
  func.func @transform_0(%arg0: i32) -> (i32, i32, i32) {
    %c0_i32 = arith.constant 0 : i32
    %c0_i32_0 = arith.constant 0 : i32
    %c0_i32_1 = arith.constant 0 : i32
    return %arg0, %c0_i32, %c0_i32_0 : i32, i32, i32
  }
  func.func @transform_1(%arg0: i32) -> (i32, i32, i32) {
    %c0_i32 = arith.constant 0 : i32
    %c0_i32_0 = arith.constant 0 : i32
    %c0_i32_1 = arith.constant 0 : i32
    return %arg0, %c0_i32, %c0_i32_0 : i32, i32, i32
  }
  func.func @transform_2(%arg0: i32) -> (i32, i32) {
    %c0_i32 = arith.constant 0 : i32
    %c0_i32_0 = arith.constant 0 : i32
    %c0_i32_1 = arith.constant 0 : i32
    return %c0_i32, %c0_i32_0 : i32, i32
  }
  func.func @transform_3(%arg0: i32) -> (i32, i32) {
    %c0_i32 = arith.constant 0 : i32
    %c0_i32_0 = arith.constant 0 : i32
    %c0_i32_1 = arith.constant 0 : i32
    return %c0_i32, %c0_i32_0 : i32, i32
  }
  func.func @transform_4(%arg0: i32) -> (i32, i32, i32, i32) {
    %c0_i32 = arith.constant 0 : i32
    %c0_i32_0 = arith.constant 0 : i32
    %c0_i32_1 = arith.constant 0 : i32
    %c0_i32_2 = arith.constant 0 : i32
    return %arg0, %c0_i32, %c0_i32_0, %c0_i32_1 : i32, i32, i32, i32
  }
}

</mosaic_0001>

<llo_original>
// kernel: basic_block_forward.5
$region0: #{basic_block_forward.5}
  #allocation0 [shape = 'u32[]', space=smem, size = 0x4, offset = 0x4, fixed_abs, tag = 'smem constant byte address 0x4 - core index']
  #allocation1 [shape = 'u32[72,128]{1,0:T(1,128)}', space=vmem, size = 0x9000, scoped, tag = 'internal scratch']
  %s0 = inlined_call_operand.vmem [shape: f32[2,256,128], index: 0, kind: input, shape index: {}]
  %s1 = inlined_call_operand.vmem [shape: f32[2,256,128], index: 1, kind: input, shape index: {}]
  %s2 = inlined_call_operand.vmem [shape: f32[1,128], index: 2, kind: input, shape index: {}]
  %s3 = inlined_call_operand.vmem [shape: f32[1,128], index: 3, kind: input, shape index: {}]
  %s4 = inlined_call_operand.vmem [shape: f32[2,16,16,128], index: 4, kind: output, shape index: {}]
  %s5 = sld [smem:[#allocation0]]
  $region49: #{basic_block_forward.5} parent=0
    _
  %s7 = ssub.s32 1, %s5
  %s8 = scalar_select 0, %s7, %s5
  loop: start=0, step=1, limit=4
  $region2: #{basic_block_forward.5} parent=0 // loop_pre_header
    _
  $region3: #{basic_block_forward.5} parent=0 // loop_header
    %s10 = sphi 0, %s14
    %p11 = scmp.ge.s32.totalorder %s10, 4
    %s20 = sphi 0, %s22
    %s23 = sphi 0, %s20
    %s24 = sphi 0, %s23
    %s40 = sphi 0, %s24
    %s46 = sphi 0, %s48
    %s49 = sphi 0, %s46
    %s50 = sphi 0, %s49
    %s66 = sphi 0, %s50
    %s70 = sphi 0, %s70
    %s72 = sphi 0, %s70
    %s73 = sphi 0, %s72
    %s87 = sphi 0, %s73
    %s91 = sphi 0, %s91
    %s93 = sphi 0, %s91
    %s94 = sphi 0, %s93
    %s108 = sphi 0, %s94
    %s114 = sphi 0, %s116
    %s117 = sphi 0, %s114
    %s118 = sphi 0, %s117
    %s134 = sphi 0, %s118
  $region4: #{basic_block_forward.5} parent=0 // loop_header_branch
    %13 = sbr.rel (%p11) target = $region8
  $region5: #{basic_block_forward.5} parent=0 // loop_body
    %s15 = ssub.s32 %s10, 1
    %s16 = ssub.s32 %s10, 2
    %s17 = sadd.s32 %s10, 1
    %s18 = ssub.s32 %s10, %s17
    %p19 = scmp.eq.s32.totalorder %s18, 0
    %s21 = sadd.s32 %s20, 1
    %s22 = scalar_select %p19, %s20, %s21
    %p25 = pneg %p19
    %p26 = scmp.eq.s32.totalorder %s10, 1
    %p27 = por %p25, %p26
    %p28 = scmp.ne.s32.totalorder %s20, %s23
    %p29 = scmp.eq.s32.totalorder %s10, 0
    %p30 = por %p28, %p29
    %p31 = scmp.ne.s32.totalorder %s20, %s23
    %p32 = scmp.eq.s32.totalorder %s15, 1
    %p33 = por %p31, %p32
    %p34 = scmp.ne.s32.totalorder %s23, %s24
    %p35 = scmp.eq.s32.totalorder %s15, 0
    %p36 = por %p34, %p35
    %p37 = scmp.ne.s32.totalorder %s23, %s24
    %p38 = scmp.eq.s32.totalorder %s16, 1
    %p39 = por %p37, %p38
    %p41 = scmp.ne.s32.totalorder %s24, %s40
    %p42 = scmp.eq.s32.totalorder %s16, 0
    %p43 = por %p41, %p42
    %s44 = ssub.s32 %s10, %s17
    %p45 = scmp.eq.s32.totalorder %s44, 0
    %s47 = sadd.s32 %s46, 1
    %s48 = scalar_select %p45, %s46, %s47
    %p51 = pneg %p45
    %p52 = scmp.eq.s32.totalorder %s10, 1
    %p53 = por %p51, %p52
    %p54 = scmp.ne.s32.totalorder %s46, %s49
    %p55 = scmp.eq.s32.totalorder %s10, 0
    %p56 = por %p54, %p55
    %p57 = scmp.ne.s32.totalorder %s46, %s49
    %p58 = scmp.eq.s32.totalorder %s15, 1
    %p59 = por %p57, %p58
    %p60 = scmp.ne.s32.totalorder %s49, %s50
    %p61 = scmp.eq.s32.totalorder %s15, 0
    %p62 = por %p60, %p61
    %p63 = scmp.ne.s32.totalorder %s49, %s50
    %p64 = scmp.eq.s32.totalorder %s16, 1
    %p65 = por %p63, %p64
    %p67 = scmp.ne.s32.totalorder %s50, %s66
    %p68 = scmp.eq.s32.totalorder %s16, 0
    %p69 = por %p67, %p68
    %s71 = sadd.s32 %s70, 1
    %p74 = scmp.eq.s32.totalorder %s10, 1
    %p75 = scmp.ne.s32.totalorder %s70, %s72
    %p76 = scmp.eq.s32.totalorder %s10, 0
    %p77 = por %p75, %p76
    %p78 = scmp.ne.s32.totalorder %s70, %s72
    %p79 = scmp.eq.s32.totalorder %s15, 1
    %p80 = por %p78, %p79
    %p81 = scmp.ne.s32.totalorder %s72, %s73
    %p82 = scmp.eq.s32.totalorder %s15, 0
    %p83 = por %p81, %p82
    %p84 = scmp.ne.s32.totalorder %s72, %s73
    %p85 = scmp.eq.s32.totalorder %s16, 1
    %p86 = por %p84, %p85
    %p88 = scmp.ne.s32.totalorder %s73, %s87
    %p89 = scmp.eq.s32.totalorder %s16, 0
    %p90 = por %p88, %p89
    %s92 = sadd.s32 %s91, 1
    %p95 = scmp.eq.s32.totalorder %s10, 1
    %p96 = scmp.ne.s32.totalorder %s91, %s93
    %p97 = scmp.eq.s32.totalorder %s10, 0
    %p98 = por %p96, %p97
    %p99 = scmp.ne.s32.totalorder %s91, %s93
    %p100 = scmp.eq.s32.totalorder %s15, 1
    %p101 = por %p99, %p100
    %p102 = scmp.ne.s32.totalorder %s93, %s94
    %p103 = scmp.eq.s32.totalorder %s15, 0
    %p104 = por %p102, %p103
    %p105 = scmp.ne.s32.totalorder %s93, %s94
    %p106 = scmp.eq.s32.totalorder %s16, 1
    %p107 = por %p105, %p106
    %p109 = scmp.ne.s32.totalorder %s94, %s108
    %p110 = scmp.eq.s32.totalorder %s16, 0
    %p111 = por %p109, %p110
    %s112 = ssub.s32 %s10, %s17
    %p113 = scmp.eq.s32.totalorder %s112, 0
    %s115 = sadd.s32 %s114, 1
    %s116 = scalar_select %p113, %s114, %s115
    %p119 = pneg %p113
    %p120 = scmp.eq.s32.totalorder %s10, 1
    %p121 = por %p119, %p120
    %p122 = scmp.ne.s32.totalorder %s114, %s117
    %p123 = scmp.eq.s32.totalorder %s10, 0
    %p124 = por %p122, %p123
    %p125 = scmp.ne.s32.totalorder %s114, %s117
    %p126 = scmp.eq.s32.totalorder %s15, 1
    %p127 = por %p125, %p126
    %p128 = scmp.ne.s32.totalorder %s117, %s118
    %p129 = scmp.eq.s32.totalorder %s15, 0
    %p130 = por %p128, %p129
    %p131 = scmp.ne.s32.totalorder %s117, %s118
    %p132 = scmp.eq.s32.totalorder %s16, 1
    %p133 = por %p131, %p132
    %p135 = scmp.ne.s32.totalorder %s118, %s134
    %p136 = scmp.eq.s32.totalorder %s16, 0
    %p137 = por %p135, %p136
    %p138 = scmp.le.s32.totalorder 1, %s10
    %p139 = scmp.lt.s32.totalorder %s10, 3
    %p140 = pnand %p138, %p139
    %p141 = pneg %p140
    // Predicated region
    $region9: #{basic_block_forward.5} parent=5 // pred_check
      _
    $region10: #{basic_block_forward.5} parent=5 // pred_check_branch
      %143 = sbr.rel (%p140) target = $region12
    $region11: #{basic_block_forward.5} parent=5 // pred_region
      %s144 = ssub.s32 %s10, 1
      // Predicated region
      $region13: #{basic_block_forward.5} parent=11 // pred_check
        %p145 = pneg %p83
      $region14: #{basic_block_forward.5} parent=11 // pred_check_branch
        %147 = sbr.rel (%p145) target = $region16
      $region15: #{basic_block_forward.5} parent=11 // pred_region
        _
      $region16: #{basic_block_forward.5} parent=11 // pred_fallthru
        _
      // Predicated region
      $region17: #{basic_block_forward.5} parent=11 // pred_check
        %p148 = pneg %p104
      $region18: #{basic_block_forward.5} parent=11 // pred_check_branch
        %150 = sbr.rel (%p148) target = $region20
      $region19: #{basic_block_forward.5} parent=11 // pred_region
        _
      $region20: #{basic_block_forward.5} parent=11 // pred_fallthru
        _
    $region12: #{basic_block_forward.5} parent=5 // pred_fallthru
      _
    %p151 = scmp.lt.s32.totalorder %s10, 2
    // Predicated region
    $region21: #{basic_block_forward.5} parent=5 // pred_check
      %p152 = pneg %p151
    $region22: #{basic_block_forward.5} parent=5 // pred_check_branch
      %154 = sbr.rel (%p152) target = $region24
    $region23: #{basic_block_forward.5} parent=5 // pred_region
      // Predicated region
      $region25: #{basic_block_forward.5} parent=23 // pred_check
        %p155 = pneg %p30
      $region26: #{basic_block_forward.5} parent=23 // pred_check_branch
        %157 = sbr.rel (%p155) target = $region28
      $region27: #{basic_block_forward.5} parent=23 // pred_region
        %p158 = scmp.lt.s32.totalorder %s10, 1
        %s159 = scalar_select %p158, %s10, 1
        %s160 = smul.addr %s159, 32
        %s161 = smul.addr %s160, 8
        %s162 = scalar_lea.vmem %s0, %s161
      $region28: #{basic_block_forward.5} parent=23 // pred_fallthru
        _
      // Predicated region
      $region29: #{basic_block_forward.5} parent=23 // pred_check
        %p163 = pneg %p56
      $region30: #{basic_block_forward.5} parent=23 // pred_check_branch
        %165 = sbr.rel (%p163) target = $region32
      $region31: #{basic_block_forward.5} parent=23 // pred_region
        %p166 = scmp.lt.s32.totalorder %s10, 1
        %s167 = scalar_select %p166, %s10, 1
        %s168 = smul.addr %s167, 32
        %s169 = smul.addr %s168, 8
        %s170 = scalar_lea.vmem %s1, %s169
      $region32: #{basic_block_forward.5} parent=23 // pred_fallthru
        _
    $region24: #{basic_block_forward.5} parent=5 // pred_fallthru
      _
    %p171 = scmp.le.s32.totalorder 1, %s10
    %p172 = scmp.lt.s32.totalorder %s10, 3
    %p173 = pnand %p171, %p172
    %p174 = pneg %p173
    // Predicated region
    $region33: #{basic_block_forward.5} parent=5 // pred_check
      _
    $region34: #{basic_block_forward.5} parent=5 // pred_check_branch
      %176 = sbr.rel (%p173) target = $region36
    $region35: #{basic_block_forward.5} parent=5 // pred_region
      %s177 = ssub.s32 %s10, 1
      %p178 = scmp.lt.s32.totalorder %s15, 1
      %s179 = scalar_select %p178, %s15, 1
      %s180 = smul.addr %s179, 32
      %s181 = smul.addr %s180, 8
      %s182 = scalar_lea.vmem %s0, %s181
      %p183 = pneg %p36
      %p184 = pneg %p33
      %p185 = scmp.lt.s32.totalorder %s15, 1
      %s186 = scalar_select %p185, %s15, 1
      %s187 = smul.addr %s186, 32
      %s188 = smul.addr %s187, 8
      %s189 = scalar_lea.vmem %s1, %s188
      %p190 = pneg %p62
      %p191 = pneg %p59
      %p192 = pneg %p83
      %p193 = pneg %p80
      %p194 = pneg %p104
      %p195 = pneg %p101
      %p196 = pneg %p130
      %p197 = pneg %p127
      %p198 = scmp.lt.s32.totalorder %s15, 1
      %s199 = scalar_select %p198, %s15, 1
      %s200 = smul.addr %s199, 32
      %s201 = smul.addr %s200, 8
      %s202 = scalar_lea.vmem %s4, %s201
      %p203 = scmp.lt.s32.totalorder %s15, 1
      %s204 = scalar_select %p203, %s15, 1
      %s205 = smul.addr %s204, 32
      %s206 = smul.addr %s205, 8
      %s207 = scalar_lea.vmem %s0, %s206
      %p208 = scmp.lt.s32.totalorder %s15, 1
      %s209 = scalar_select %p208, %s15, 1
      %s210 = smul.addr %s209, 32
      %s211 = smul.addr %s210, 8
      %s212 = scalar_lea.vmem %s1, %s211
      %p213 = scmp.lt.s32.totalorder %s15, 1
      %s214 = scalar_select %p213, %s15, 1
      %s215 = smul.addr %s214, 32
      %s216 = smul.addr %s215, 8
      %s217 = scalar_lea.vmem %s4, %s216
      %v218 = vld [vmem:[%s207] sm:$0xff]
      %v219 = vld [vmem:[%s207 + $0x8] sm:$0xff]
      %v220 = vld [vmem:[%s207 + $0x10] sm:$0xff]
      %v221 = vld [vmem:[%s207 + $0x18] sm:$0xff]
      %v222 = vld [vmem:[%s207 + $0x20] sm:$0xff]
      %v223 = vld [vmem:[%s207 + $0x28] sm:$0xff]
      %v224 = vld [vmem:[%s207 + $0x30] sm:$0xff]
      %v225 = vld [vmem:[%s207 + $0x38] sm:$0xff]
      %v226 = vld [vmem:[%s207 + $0x40] sm:$0xff]
      %v227 = vld [vmem:[%s207 + $0x48] sm:$0xff]
      %v228 = vld [vmem:[%s207 + $0x50] sm:$0xff]
      %v229 = vld [vmem:[%s207 + $0x58] sm:$0xff]
      %v230 = vld [vmem:[%s207 + $0x60] sm:$0xff]
      %v231 = vld [vmem:[%s207 + $0x68] sm:$0xff]
      %v232 = vld [vmem:[%s207 + $0x70] sm:$0xff]
      %v233 = vld [vmem:[%s207 + $0x78] sm:$0xff]
      %v234 = vld [vmem:[%s207 + $0x80] sm:$0xff]
      %v235 = vld [vmem:[%s207 + $0x88] sm:$0xff]
      %v236 = vld [vmem:[%s207 + $0x90] sm:$0xff]
      %v237 = vld [vmem:[%s207 + $0x98] sm:$0xff]
      %v238 = vld [vmem:[%s207 + $0xa0] sm:$0xff]
      %v239 = vld [vmem:[%s207 + $0xa8] sm:$0xff]
      %v240 = vld [vmem:[%s207 + $0xb0] sm:$0xff]
      %v241 = vld [vmem:[%s207 + $0xb8] sm:$0xff]
      %v242 = vld [vmem:[%s207 + $0xc0] sm:$0xff]
      %v243 = vld [vmem:[%s207 + $0xc8] sm:$0xff]
      %v244 = vld [vmem:[%s207 + $0xd0] sm:$0xff]
      %v245 = vld [vmem:[%s207 + $0xd8] sm:$0xff]
      %v246 = vld [vmem:[%s207 + $0xe0] sm:$0xff]
      %v247 = vld [vmem:[%s207 + $0xe8] sm:$0xff]
      %v248 = vld [vmem:[%s207 + $0xf0] sm:$0xff]
      %v249 = vld [vmem:[%s207 + $0xf8] sm:$0xff]
      %v250 = vld [vmem:[%s212] sm:$0xff]
      %v251 = vld [vmem:[%s212 + $0x8] sm:$0xff]
      %v252 = vld [vmem:[%s212 + $0x10] sm:$0xff]
      %v253 = vld [vmem:[%s212 + $0x18] sm:$0xff]
      %v254 = vld [vmem:[%s212 + $0x20] sm:$0xff]
      %v255 = vld [vmem:[%s212 + $0x28] sm:$0xff]
      %v256 = vld [vmem:[%s212 + $0x30] sm:$0xff]
      %v257 = vld [vmem:[%s212 + $0x38] sm:$0xff]
      %v258 = vld [vmem:[%s212 + $0x40] sm:$0xff]
      %v259 = vld [vmem:[%s212 + $0x48] sm:$0xff]
      %v260 = vld [vmem:[%s212 + $0x50] sm:$0xff]
      %v261 = vld [vmem:[%s212 + $0x58] sm:$0xff]
      %v262 = vld [vmem:[%s212 + $0x60] sm:$0xff]
      %v263 = vld [vmem:[%s212 + $0x68] sm:$0xff]
      %v264 = vld [vmem:[%s212 + $0x70] sm:$0xff]
      %v265 = vld [vmem:[%s212 + $0x78] sm:$0xff]
      %v266 = vld [vmem:[%s212 + $0x80] sm:$0xff]
      %v267 = vld [vmem:[%s212 + $0x88] sm:$0xff]
      %v268 = vld [vmem:[%s212 + $0x90] sm:$0xff]
      %v269 = vld [vmem:[%s212 + $0x98] sm:$0xff]
      %v270 = vld [vmem:[%s212 + $0xa0] sm:$0xff]
      %v271 = vld [vmem:[%s212 + $0xa8] sm:$0xff]
      %v272 = vld [vmem:[%s212 + $0xb0] sm:$0xff]
      %v273 = vld [vmem:[%s212 + $0xb8] sm:$0xff]
      %v274 = vld [vmem:[%s212 + $0xc0] sm:$0xff]
      %v275 = vld [vmem:[%s212 + $0xc8] sm:$0xff]
      %v276 = vld [vmem:[%s212 + $0xd0] sm:$0xff]
      %v277 = vld [vmem:[%s212 + $0xd8] sm:$0xff]
      %v278 = vld [vmem:[%s212 + $0xe0] sm:$0xff]
      %v279 = vld [vmem:[%s212 + $0xe8] sm:$0xff]
      %v280 = vld [vmem:[%s212 + $0xf0] sm:$0xff]
      %v281 = vld [vmem:[%s212 + $0xf8] sm:$0xff]
      %v282 = vld [vmem:[%s2] sm:$0x1]
      %v284 = vperm.slane %v282, 0
      %v286 = vmul.f32 %v218, %v284
      %v287 = vmul.f32 %v219, %v284
      %v288 = vmul.f32 %v220, %v284
      %v289 = vmul.f32 %v221, %v284
      %v290 = vmul.f32 %v222, %v284
      %v291 = vmul.f32 %v223, %v284
      %v292 = vmul.f32 %v224, %v284
      %v293 = vmul.f32 %v225, %v284
      %v294 = vmul.f32 %v226, %v284
      %v295 = vmul.f32 %v227, %v284
      %v296 = vmul.f32 %v228, %v284
      %v297 = vmul.f32 %v229, %v284
      %v298 = vmul.f32 %v230, %v284
      %v299 = vmul.f32 %v231, %v284
      %v300 = vmul.f32 %v232, %v284
      %v301 = vmul.f32 %v233, %v284
      %v302 = vmul.f32 %v234, %v284
      %v303 = vmul.f32 %v235, %v284
      %v304 = vmul.f32 %v236, %v284
      %v305 = vmul.f32 %v237, %v284
      %v306 = vmul.f32 %v238, %v284
      %v307 = vmul.f32 %v239, %v284
      %v308 = vmul.f32 %v240, %v284
      %v309 = vmul.f32 %v241, %v284
      %v310 = vmul.f32 %v242, %v284
      %v311 = vmul.f32 %v243, %v284
      %v312 = vmul.f32 %v244, %v284
      %v313 = vmul.f32 %v245, %v284
      %v314 = vmul.f32 %v246, %v284
      %v315 = vmul.f32 %v247, %v284
      %v316 = vmul.f32 %v248, %v284
      %v317 = vmul.f32 %v249, %v284
      %v318 = vld [vmem:[%s3] sm:$0x1]
      %v320 = vperm.slane %v318, 0
      %v322 = vadd.f32 %v286, %v320
      %v323 = vadd.f32 %v287, %v320
      %v324 = vadd.f32 %v288, %v320
      %v325 = vadd.f32 %v289, %v320
      %v326 = vadd.f32 %v290, %v320
      %v327 = vadd.f32 %v291, %v320
      %v328 = vadd.f32 %v292, %v320
      %v329 = vadd.f32 %v293, %v320
      %v330 = vadd.f32 %v294, %v320
      %v331 = vadd.f32 %v295, %v320
      %v332 = vadd.f32 %v296, %v320
      %v333 = vadd.f32 %v297, %v320
      %v334 = vadd.f32 %v298, %v320
      %v335 = vadd.f32 %v299, %v320
      %v336 = vadd.f32 %v300, %v320
      %v337 = vadd.f32 %v301, %v320
      %v338 = vadd.f32 %v302, %v320
      %v339 = vadd.f32 %v303, %v320
      %v340 = vadd.f32 %v304, %v320
      %v341 = vadd.f32 %v305, %v320
      %v342 = vadd.f32 %v306, %v320
      %v343 = vadd.f32 %v307, %v320
      %v344 = vadd.f32 %v308, %v320
      %v345 = vadd.f32 %v309, %v320
      %v346 = vadd.f32 %v310, %v320
      %v347 = vadd.f32 %v311, %v320
      %v348 = vadd.f32 %v312, %v320
      %v349 = vadd.f32 %v313, %v320
      %v350 = vadd.f32 %v314, %v320
      %v351 = vadd.f32 %v315, %v320
      %v352 = vadd.f32 %v316, %v320
      %v353 = vadd.f32 %v317, %v320
      %v354 = vadd.f32 %v322, %v250
      %v355 = vadd.f32 %v323, %v251
      %v356 = vadd.f32 %v324, %v252
      %v357 = vadd.f32 %v325, %v253
      %v358 = vadd.f32 %v326, %v254
      %v359 = vadd.f32 %v327, %v255
      %v360 = vadd.f32 %v328, %v256
      %v361 = vadd.f32 %v329, %v257
      %v362 = vadd.f32 %v330, %v258
      %v363 = vadd.f32 %v331, %v259
      %v364 = vadd.f32 %v332, %v260
      %v365 = vadd.f32 %v333, %v261
      %v366 = vadd.f32 %v334, %v262
      %v367 = vadd.f32 %v335, %v263
      %v368 = vadd.f32 %v336, %v264
      %v369 = vadd.f32 %v337, %v265
      %v370 = vadd.f32 %v338, %v266
      %v371 = vadd.f32 %v339, %v267
      %v372 = vadd.f32 %v340, %v268
      %v373 = vadd.f32 %v341, %v269
      %v374 = vadd.f32 %v342, %v270
      %v375 = vadd.f32 %v343, %v271
      %v376 = vadd.f32 %v344, %v272
      %v377 = vadd.f32 %v345, %v273
      %v378 = vadd.f32 %v346, %v274
      %v379 = vadd.f32 %v347, %v275
      %v380 = vadd.f32 %v348, %v276
      %v381 = vadd.f32 %v349, %v277
      %v382 = vadd.f32 %v350, %v278
      %v383 = vadd.f32 %v351, %v279
      %v384 = vadd.f32 %v352, %v280
      %v385 = vadd.f32 %v353, %v281
      %v386 = vmax.f32 %v354, 0.0
      %v387 = vmax.f32 %v355, 0.0
      %v388 = vmax.f32 %v356, 0.0
      %v389 = vmax.f32 %v357, 0.0
      %v390 = vmax.f32 %v358, 0.0
      %v391 = vmax.f32 %v359, 0.0
      %v392 = vmax.f32 %v360, 0.0
      %v393 = vmax.f32 %v361, 0.0
      %v394 = vmax.f32 %v362, 0.0
      %v395 = vmax.f32 %v363, 0.0
      %v396 = vmax.f32 %v364, 0.0
      %v397 = vmax.f32 %v365, 0.0
      %v398 = vmax.f32 %v366, 0.0
      %v399 = vmax.f32 %v367, 0.0
      %v400 = vmax.f32 %v368, 0.0
      %v401 = vmax.f32 %v369, 0.0
      %v402 = vmax.f32 %v370, 0.0
      %v403 = vmax.f32 %v371, 0.0
      %v404 = vmax.f32 %v372, 0.0
      %v405 = vmax.f32 %v373, 0.0
      %v406 = vmax.f32 %v374, 0.0
      %v407 = vmax.f32 %v375, 0.0
      %v408 = vmax.f32 %v376, 0.0
      %v409 = vmax.f32 %v377, 0.0
      %v410 = vmax.f32 %v378, 0.0
      %v411 = vmax.f32 %v379, 0.0
      %v412 = vmax.f32 %v380, 0.0
      %v413 = vmax.f32 %v381, 0.0
      %v414 = vmax.f32 %v382, 0.0
      %v415 = vmax.f32 %v383, 0.0
      %v416 = vmax.f32 %v384, 0.0
      %v417 = vmax.f32 %v385, 0.0
      %418 = vst [vmem:[%s217] sm:$0xff] %v386
      %419 = vst [vmem:[%s217 + $0x8] sm:$0xff] %v387
      %420 = vst [vmem:[%s217 + $0x10] sm:$0xff] %v388
      %421 = vst [vmem:[%s217 + $0x18] sm:$0xff] %v389
      %422 = vst [vmem:[%s217 + $0x20] sm:$0xff] %v390
      %423 = vst [vmem:[%s217 + $0x28] sm:$0xff] %v391
      %424 = vst [vmem:[%s217 + $0x30] sm:$0xff] %v392
      %425 = vst [vmem:[%s217 + $0x38] sm:$0xff] %v393
      %426 = vst [vmem:[%s217 + $0x40] sm:$0xff] %v394
      %427 = vst [vmem:[%s217 + $0x48] sm:$0xff] %v395
      %428 = vst [vmem:[%s217 + $0x50] sm:$0xff] %v396
      %429 = vst [vmem:[%s217 + $0x58] sm:$0xff] %v397
      %430 = vst [vmem:[%s217 + $0x60] sm:$0xff] %v398
      %431 = vst [vmem:[%s217 + $0x68] sm:$0xff] %v399
      %432 = vst [vmem:[%s217 + $0x70] sm:$0xff] %v400
      %433 = vst [vmem:[%s217 + $0x78] sm:$0xff] %v401
      %434 = vst [vmem:[%s217 + $0x80] sm:$0xff] %v402
      %435 = vst [vmem:[%s217 + $0x88] sm:$0xff] %v403
      %436 = vst [vmem:[%s217 + $0x90] sm:$0xff] %v404
      %437 = vst [vmem:[%s217 + $0x98] sm:$0xff] %v405
      %438 = vst [vmem:[%s217 + $0xa0] sm:$0xff] %v406
      %439 = vst [vmem:[%s217 + $0xa8] sm:$0xff] %v407
      %440 = vst [vmem:[%s217 + $0xb0] sm:$0xff] %v408
      %441 = vst [vmem:[%s217 + $0xb8] sm:$0xff] %v409
      %442 = vst [vmem:[%s217 + $0xc0] sm:$0xff] %v410
      %443 = vst [vmem:[%s217 + $0xc8] sm:$0xff] %v411
      %444 = vst [vmem:[%s217 + $0xd0] sm:$0xff] %v412
      %445 = vst [vmem:[%s217 + $0xd8] sm:$0xff] %v413
      %446 = vst [vmem:[%s217 + $0xe0] sm:$0xff] %v414
      %447 = vst [vmem:[%s217 + $0xe8] sm:$0xff] %v415
      %448 = vst [vmem:[%s217 + $0xf0] sm:$0xff] %v416
      %449 = vst [vmem:[%s217 + $0xf8] sm:$0xff] %v417
      %p450 = scmp.lt.s32.totalorder %s15, 1
      %s451 = scalar_select %p450, %s15, 1
      %s452 = smul.addr %s451, 32
      %s453 = smul.addr %s452, 8
      %s454 = scalar_lea.vmem %s4, %s453
      // Predicated region
      $region37: #{basic_block_forward.5} parent=35 // pred_check
        %p455 = pneg %p127
      $region38: #{basic_block_forward.5} parent=35 // pred_check_branch
        %457 = sbr.rel (%p455) target = $region40
      $region39: #{basic_block_forward.5} parent=35 // pred_region
        _
      $region40: #{basic_block_forward.5} parent=35 // pred_fallthru
        _
    $region36: #{basic_block_forward.5} parent=5 // pred_fallthru
      _
    %p458 = scmp.le.s32.totalorder 2, %s10
    // Predicated region
    $region41: #{basic_block_forward.5} parent=5 // pred_check
      %p459 = pneg %p458
    $region42: #{basic_block_forward.5} parent=5 // pred_check_branch
      %461 = sbr.rel (%p459) target = $region44
    $region43: #{basic_block_forward.5} parent=5 // pred_region
      %s462 = ssub.s32 %s10, 2
      // Predicated region
      $region45: #{basic_block_forward.5} parent=43 // pred_check
        %p463 = pneg %p133
      $region46: #{basic_block_forward.5} parent=43 // pred_check_branch
        %465 = sbr.rel (%p463) target = $region48
      $region47: #{basic_block_forward.5} parent=43 // pred_region
        %p466 = scmp.lt.s32.totalorder %s16, 1
        %s467 = scalar_select %p466, %s16, 1
        %s468 = smul.addr %s467, 32
        %s469 = smul.addr %s468, 8
        %s470 = scalar_lea.vmem %s4, %s469
      $region48: #{basic_block_forward.5} parent=43 // pred_fallthru
        _
    $region44: #{basic_block_forward.5} parent=5 // pred_fallthru
      _
  $region6: #{basic_block_forward.5} parent=0 // loop_footer
    %s14 = sadd.s32 1, %s10
  $region7: #{basic_block_forward.5} parent=0 // loop_footer_branch
    %9 = sbr.rel target = $region3
  $region8: #{basic_block_forward.5} parent=0 // loop_exit
    _

// kernel: basic_block_forward.4
$region0: #{basic_block_forward.4}
  #allocation0 [shape = 'u32[]', space=smem, size = 0x4, offset = 0x4, fixed_abs, tag = 'smem constant byte address 0x4 - core index']
  #allocation1 [shape = 'u32[72,128]{1,0:T(1,128)}', space=vmem, size = 0x9000, scoped, tag = 'internal scratch']
  %s0 = inlined_call_operand.vmem [shape: bf16[2,256,128], index: 0, kind: input, shape index: {}]
  %s1 = inlined_call_operand.vmem [shape: f32[1,128], index: 1, kind: input, shape index: {}]
  %s2 = inlined_call_operand.vmem [shape: f32[1,128], index: 2, kind: input, shape index: {}]
  %s3 = inlined_call_operand.vmem [shape: bf16[1152,128], index: 3, kind: input, shape index: {}]
  %s4 = inlined_call_operand.vmem [shape: f32[2,256,128], index: 4, kind: output, shape index: {0}]
  %s5 = inlined_call_operand.vmem [shape: f32[2,2,128], index: 5, kind: output, shape index: {1}]
  %6 = xla_tuple %s4, %s5
  %s7 = sld [smem:[#allocation0]]
  $region57: #{basic_block_forward.4} parent=0
    _
  %s9 = ssub.s32 1, %s7
  %s10 = scalar_select 0, %s9, %s7
  loop: start=0, step=1, limit=4
  $region2: #{basic_block_forward.4} parent=0 // loop_pre_header
    _
  $region3: #{basic_block_forward.4} parent=0 // loop_header
    %s12 = sphi 0, %s16
    %p13 = scmp.ge.s32.totalorder %s12, 4
    %s22 = sphi 0, %s24
    %s25 = sphi 0, %s22
    %s26 = sphi 0, %s25
    %s42 = sphi 0, %s26
    %s46 = sphi 0, %s46
    %s48 = sphi 0, %s46
    %s49 = sphi 0, %s48
    %s63 = sphi 0, %s49
    %s67 = sphi 0, %s67
    %s69 = sphi 0, %s67
    %s70 = sphi 0, %s69
    %s84 = sphi 0, %s70
    %s88 = sphi 0, %s88
    %s90 = sphi 0, %s88
    %s91 = sphi 0, %s90
    %s105 = sphi 0, %s91
    %s111 = sphi 0, %s113
    %s114 = sphi 0, %s111
    %s115 = sphi 0, %s114
    %s131 = sphi 0, %s115
    %s137 = sphi 0, %s139
    %s140 = sphi 0, %s137
    %s141 = sphi 0, %s140
    %s157 = sphi 0, %s141
  $region4: #{basic_block_forward.4} parent=0 // loop_header_branch
    %15 = sbr.rel (%p13) target = $region8
  $region5: #{basic_block_forward.4} parent=0 // loop_body
    %s17 = ssub.s32 %s12, 1
    %s18 = ssub.s32 %s12, 2
    %s19 = sadd.s32 %s12, 1
    %s20 = ssub.s32 %s12, %s19
    %p21 = scmp.eq.s32.totalorder %s20, 0
    %s23 = sadd.s32 %s22, 1
    %s24 = scalar_select %p21, %s22, %s23
    %p27 = pneg %p21
    %p28 = scmp.eq.s32.totalorder %s12, 1
    %p29 = por %p27, %p28
    %p30 = scmp.ne.s32.totalorder %s22, %s25
    %p31 = scmp.eq.s32.totalorder %s12, 0
    %p32 = por %p30, %p31
    %p33 = scmp.ne.s32.totalorder %s22, %s25
    %p34 = scmp.eq.s32.totalorder %s17, 1
    %p35 = por %p33, %p34
    %p36 = scmp.ne.s32.totalorder %s25, %s26
    %p37 = scmp.eq.s32.totalorder %s17, 0
    %p38 = por %p36, %p37
    %p39 = scmp.ne.s32.totalorder %s25, %s26
    %p40 = scmp.eq.s32.totalorder %s18, 1
    %p41 = por %p39, %p40
    %p43 = scmp.ne.s32.totalorder %s26, %s42
    %p44 = scmp.eq.s32.totalorder %s18, 0
    %p45 = por %p43, %p44
    %s47 = sadd.s32 %s46, 1
    %p50 = scmp.eq.s32.totalorder %s12, 1
    %p51 = scmp.ne.s32.totalorder %s46, %s48
    %p52 = scmp.eq.s32.totalorder %s12, 0
    %p53 = por %p51, %p52
    %p54 = scmp.ne.s32.totalorder %s46, %s48
    %p55 = scmp.eq.s32.totalorder %s17, 1
    %p56 = por %p54, %p55
    %p57 = scmp.ne.s32.totalorder %s48, %s49
    %p58 = scmp.eq.s32.totalorder %s17, 0
    %p59 = por %p57, %p58
    %p60 = scmp.ne.s32.totalorder %s48, %s49
    %p61 = scmp.eq.s32.totalorder %s18, 1
    %p62 = por %p60, %p61
    %p64 = scmp.ne.s32.totalorder %s49, %s63
    %p65 = scmp.eq.s32.totalorder %s18, 0
    %p66 = por %p64, %p65
    %s68 = sadd.s32 %s67, 1
    %p71 = scmp.eq.s32.totalorder %s12, 1
    %p72 = scmp.ne.s32.totalorder %s67, %s69
    %p73 = scmp.eq.s32.totalorder %s12, 0
    %p74 = por %p72, %p73
    %p75 = scmp.ne.s32.totalorder %s67, %s69
    %p76 = scmp.eq.s32.totalorder %s17, 1
    %p77 = por %p75, %p76
    %p78 = scmp.ne.s32.totalorder %s69, %s70
    %p79 = scmp.eq.s32.totalorder %s17, 0
    %p80 = por %p78, %p79
    %p81 = scmp.ne.s32.totalorder %s69, %s70
    %p82 = scmp.eq.s32.totalorder %s18, 1
    %p83 = por %p81, %p82
    %p85 = scmp.ne.s32.totalorder %s70, %s84
    %p86 = scmp.eq.s32.totalorder %s18, 0
    %p87 = por %p85, %p86
    %s89 = sadd.s32 %s88, 1
    %p92 = scmp.eq.s32.totalorder %s12, 1
    %p93 = scmp.ne.s32.totalorder %s88, %s90
    %p94 = scmp.eq.s32.totalorder %s12, 0
    %p95 = por %p93, %p94
    %p96 = scmp.ne.s32.totalorder %s88, %s90
    %p97 = scmp.eq.s32.totalorder %s17, 1
    %p98 = por %p96, %p97
    %p99 = scmp.ne.s32.totalorder %s90, %s91
    %p100 = scmp.eq.s32.totalorder %s17, 0
    %p101 = por %p99, %p100
    %p102 = scmp.ne.s32.totalorder %s90, %s91
    %p103 = scmp.eq.s32.totalorder %s18, 1
    %p104 = por %p102, %p103
    %p106 = scmp.ne.s32.totalorder %s91, %s105
    %p107 = scmp.eq.s32.totalorder %s18, 0
    %p108 = por %p106, %p107
    %s109 = ssub.s32 %s12, %s19
    %p110 = scmp.eq.s32.totalorder %s109, 0
    %s112 = sadd.s32 %s111, 1
    %s113 = scalar_select %p110, %s111, %s112
    %p116 = pneg %p110
    %p117 = scmp.eq.s32.totalorder %s12, 1
    %p118 = por %p116, %p117
    %p119 = scmp.ne.s32.totalorder %s111, %s114
    %p120 = scmp.eq.s32.totalorder %s12, 0
    %p121 = por %p119, %p120
    %p122 = scmp.ne.s32.totalorder %s111, %s114
    %p123 = scmp.eq.s32.totalorder %s17, 1
    %p124 = por %p122, %p123
    %p125 = scmp.ne.s32.totalorder %s114, %s115
    %p126 = scmp.eq.s32.totalorder %s17, 0
    %p127 = por %p125, %p126
    %p128 = scmp.ne.s32.totalorder %s114, %s115
    %p129 = scmp.eq.s32.totalorder %s18, 1
    %p130 = por %p128, %p129
    %p132 = scmp.ne.s32.totalorder %s115, %s131
    %p133 = scmp.eq.s32.totalorder %s18, 0
    %p134 = por %p132, %p133
    %s135 = ssub.s32 %s12, %s19
    %p136 = scmp.eq.s32.totalorder %s135, 0
    %s138 = sadd.s32 %s137, 1
    %s139 = scalar_select %p136, %s137, %s138
    %p142 = pneg %p136
    %p143 = scmp.eq.s32.totalorder %s12, 1
    %p144 = por %p142, %p143
    %p145 = scmp.ne.s32.totalorder %s137, %s140
    %p146 = scmp.eq.s32.totalorder %s12, 0
    %p147 = por %p145, %p146
    %p148 = scmp.ne.s32.totalorder %s137, %s140
    %p149 = scmp.eq.s32.totalorder %s17, 1
    %p150 = por %p148, %p149
    %p151 = scmp.ne.s32.totalorder %s140, %s141
    %p152 = scmp.eq.s32.totalorder %s17, 0
    %p153 = por %p151, %p152
    %p154 = scmp.ne.s32.totalorder %s140, %s141
    %p155 = scmp.eq.s32.totalorder %s18, 1
    %p156 = por %p154, %p155
    %p158 = scmp.ne.s32.totalorder %s141, %s157
    %p159 = scmp.eq.s32.totalorder %s18, 0
    %p160 = por %p158, %p159
    %p161 = scmp.le.s32.totalorder 1, %s12
    %p162 = scmp.lt.s32.totalorder %s12, 3
    %p163 = pnand %p161, %p162
    %p164 = pneg %p163
    // Predicated region
    $region9: #{basic_block_forward.4} parent=5 // pred_check
      _
    $region10: #{basic_block_forward.4} parent=5 // pred_check_branch
      %166 = sbr.rel (%p163) target = $region12
    $region11: #{basic_block_forward.4} parent=5 // pred_region
      %s167 = ssub.s32 %s12, 1
      // Predicated region
      $region13: #{basic_block_forward.4} parent=11 // pred_check
        %p168 = pneg %p59
      $region14: #{basic_block_forward.4} parent=11 // pred_check_branch
        %170 = sbr.rel (%p168) target = $region16
      $region15: #{basic_block_forward.4} parent=11 // pred_region
        _
      $region16: #{basic_block_forward.4} parent=11 // pred_fallthru
        _
      // Predicated region
      $region17: #{basic_block_forward.4} parent=11 // pred_check
        %p171 = pneg %p80
      $region18: #{basic_block_forward.4} parent=11 // pred_check_branch
        %173 = sbr.rel (%p171) target = $region20
      $region19: #{basic_block_forward.4} parent=11 // pred_region
        _
      $region20: #{basic_block_forward.4} parent=11 // pred_fallthru
        _
      // Predicated region
      $region21: #{basic_block_forward.4} parent=11 // pred_check
        %p174 = pneg %p101
      $region22: #{basic_block_forward.4} parent=11 // pred_check_branch
        %176 = sbr.rel (%p174) target = $region24
      $region23: #{basic_block_forward.4} parent=11 // pred_region
        _
      $region24: #{basic_block_forward.4} parent=11 // pred_fallthru
        _
    $region12: #{basic_block_forward.4} parent=5 // pred_fallthru
      _
    %p177 = scmp.lt.s32.totalorder %s12, 2
    // Predicated region
    $region25: #{basic_block_forward.4} parent=5 // pred_check
      %p178 = pneg %p177
    $region26: #{basic_block_forward.4} parent=5 // pred_check_branch
      %180 = sbr.rel (%p178) target = $region28
    $region27: #{basic_block_forward.4} parent=5 // pred_region
      // Predicated region
      $region29: #{basic_block_forward.4} parent=27 // pred_check
        %p181 = pneg %p32
      $region30: #{basic_block_forward.4} parent=27 // pred_check_branch
        %183 = sbr.rel (%p181) target = $region32
      $region31: #{basic_block_forward.4} parent=27 // pred_region
        %p184 = scmp.lt.s32.totalorder %s12, 1
        %s185 = scalar_select %p184, %s12, 1
        %s186 = smul.addr %s185, 32
        %s187 = smul.addr %s186, 4
        %s188 = scalar_lea.vmem %s0, %s187
      $region32: #{basic_block_forward.4} parent=27 // pred_fallthru
        _
    $region28: #{basic_block_forward.4} parent=5 // pred_fallthru
      _
    %p189 = scmp.le.s32.totalorder 1, %s12
    %p190 = scmp.lt.s32.totalorder %s12, 3
    %p191 = pnand %p189, %p190
    %p192 = pneg %p191
    // Predicated region
    $region33: #{basic_block_forward.4} parent=5 // pred_check
      _
    $region34: #{basic_block_forward.4} parent=5 // pred_check_branch
      %194 = sbr.rel (%p191) target = $region36
    $region35: #{basic_block_forward.4} parent=5 // pred_region
      %s195 = ssub.s32 %s12, 1
      %p196 = scmp.lt.s32.totalorder %s17, 1
      %s197 = scalar_select %p196, %s17, 1
      %s198 = smul.addr %s197, 32
      %s199 = smul.addr %s198, 4
      %s200 = scalar_lea.vmem %s0, %s199
      %p201 = pneg %p38
      %p202 = pneg %p35
      %p203 = pneg %p59
      %p204 = pneg %p56
      %p205 = pneg %p80
      %p206 = pneg %p77
      %p207 = pneg %p101
      %p208 = pneg %p98
      %p209 = pneg %p127
      %p210 = pneg %p124
      %p211 = scmp.lt.s32.totalorder %s17, 1
      %s212 = scalar_select %p211, %s17, 1
      %s213 = smul.addr %s212, 32
      %s214 = smul.addr %s213, 8
      %s215 = scalar_lea.vmem %s4, %s214
      %p216 = pneg %p153
      %p217 = pneg %p150
      %p218 = scmp.lt.s32.totalorder %s17, 1
      %s219 = scalar_select %p218, %s17, 1
      %s220 = smul.addr %s219, 2
      %s221 = scalar_lea.vmem %s5, %s220
      %p222 = scmp.lt.s32.totalorder %s17, 1
      %s223 = scalar_select %p222, %s17, 1
      %s224 = smul.addr %s223, 32
      %s225 = smul.addr %s224, 4
      %s226 = scalar_lea.vmem %s0, %s225
      %p227 = scmp.lt.s32.totalorder %s17, 1
      %s228 = scalar_select %p227, %s17, 1
      %s229 = smul.addr %s228, 32
      %s230 = smul.addr %s229, 8
      %s231 = scalar_lea.vmem %s4, %s230
      %p232 = scmp.lt.s32.totalorder %s17, 1
      %s233 = scalar_select %p232, %s17, 1
      %s234 = smul.addr %s233, 2
      %s235 = scalar_lea.vmem %s5, %s234
      %v237 = vld [vmem:[%s226] sm:$0xf]
      %v238 = vld [vmem:[%s226 + $0x4] sm:$0xf]
      %v239 = vld [vmem:[%s226 + $0x8] sm:$0xf]
      %v240 = vld [vmem:[%s226 + $0xc] sm:$0xf]
      %v241 = vld [vmem:[%s226 + $0x10] sm:$0xf]
      %v242 = vld [vmem:[%s226 + $0x14] sm:$0xf]
      %v243 = vld [vmem:[%s226 + $0x18] sm:$0xf]
      %v244 = vld [vmem:[%s226 + $0x1c] sm:$0xf]
      %v245 = vld [vmem:[%s226 + $0x20] sm:$0xf]
      %v246 = vld [vmem:[%s226 + $0x24] sm:$0xf]
      %v247 = vld [vmem:[%s226 + $0x28] sm:$0xf]
      %v248 = vld [vmem:[%s226 + $0x2c] sm:$0xf]
      %v249 = vld [vmem:[%s226 + $0x30] sm:$0xf]
      %v250 = vld [vmem:[%s226 + $0x34] sm:$0xf]
      %v251 = vld [vmem:[%s226 + $0x38] sm:$0xf]
      %v252 = vld [vmem:[%s226 + $0x3c] sm:$0xf]
      %v253 = vld [vmem:[%s226 + $0x40] sm:$0xf]
      %v254 = vld [vmem:[%s226 + $0x44] sm:$0xf]
      %v255 = vld [vmem:[%s226 + $0x48] sm:$0xf]
      %v256 = vld [vmem:[%s226 + $0x4c] sm:$0xf]
      %v257 = vld [vmem:[%s226 + $0x50] sm:$0xf]
      %v258 = vld [vmem:[%s226 + $0x54] sm:$0xf]
      %v259 = vld [vmem:[%s226 + $0x58] sm:$0xf]
      %v260 = vld [vmem:[%s226 + $0x5c] sm:$0xf]
      %v261 = vld [vmem:[%s226 + $0x60] sm:$0xf]
      %v262 = vld [vmem:[%s226 + $0x64] sm:$0xf]
      %v263 = vld [vmem:[%s226 + $0x68] sm:$0xf]
      %v264 = vld [vmem:[%s226 + $0x6c] sm:$0xf]
      %v265 = vld [vmem:[%s226 + $0x70] sm:$0xf]
      %v266 = vld [vmem:[%s226 + $0x74] sm:$0xf]
      %v267 = vld [vmem:[%s226 + $0x78] sm:$0xf]
      %v268 = vld [vmem:[%s226 + $0x7c] sm:$0xf]
      %v269 = vld [vmem:[%s1] sm:$0x1]
      %v270 = vunpack.c.l.bf16 %v237
      %v271 = vunpack.c.l.bf16 %v238
      %v272 = vunpack.c.l.bf16 %v239
      %v273 = vunpack.c.l.bf16 %v240
      %v274 = vunpack.c.l.bf16 %v241
      %v275 = vunpack.c.l.bf16 %v242
      %v276 = vunpack.c.l.bf16 %v243
      %v277 = vunpack.c.l.bf16 %v244
      %v278 = vunpack.c.l.bf16 %v245
      %v279 = vunpack.c.l.bf16 %v246
      %v280 = vunpack.c.l.bf16 %v247
      %v281 = vunpack.c.l.bf16 %v248
      %v282 = vunpack.c.l.bf16 %v249
      %v283 = vunpack.c.l.bf16 %v250
      %v284 = vunpack.c.l.bf16 %v251
      %v285 = vunpack.c.l.bf16 %v252
      %v286 = vunpack.c.l.bf16 %v253
      %v287 = vunpack.c.l.bf16 %v254
      %v288 = vunpack.c.l.bf16 %v255
      %v289 = vunpack.c.l.bf16 %v256
      %v290 = vunpack.c.l.bf16 %v257
      %v291 = vunpack.c.l.bf16 %v258
      %v292 = vunpack.c.l.bf16 %v259
      %v293 = vunpack.c.l.bf16 %v260
      %v294 = vunpack.c.l.bf16 %v261
      %v295 = vunpack.c.l.bf16 %v262
      %v296 = vunpack.c.l.bf16 %v263
      %v297 = vunpack.c.l.bf16 %v264
      %v298 = vunpack.c.l.bf16 %v265
      %v299 = vunpack.c.l.bf16 %v266
      %v300 = vunpack.c.l.bf16 %v267
      %v301 = vunpack.c.l.bf16 %v268
      %v303 = vperm.slane %v269, 0
      %v305 = vmul.f32 %v270, %v303
      %v306 = vmul.f32 %v271, %v303
      %v307 = vmul.f32 %v272, %v303
      %v308 = vmul.f32 %v273, %v303
      %v309 = vmul.f32 %v274, %v303
      %v310 = vmul.f32 %v275, %v303
      %v311 = vmul.f32 %v276, %v303
      %v312 = vmul.f32 %v277, %v303
      %v313 = vmul.f32 %v278, %v303
      %v314 = vmul.f32 %v279, %v303
      %v315 = vmul.f32 %v280, %v303
      %v316 = vmul.f32 %v281, %v303
      %v317 = vmul.f32 %v282, %v303
      %v318 = vmul.f32 %v283, %v303
      %v319 = vmul.f32 %v284, %v303
      %v320 = vmul.f32 %v285, %v303
      %v321 = vmul.f32 %v286, %v303
      %v322 = vmul.f32 %v287, %v303
      %v323 = vmul.f32 %v288, %v303
      %v324 = vmul.f32 %v289, %v303
      %v325 = vmul.f32 %v290, %v303
      %v326 = vmul.f32 %v291, %v303
      %v327 = vmul.f32 %v292, %v303
      %v328 = vmul.f32 %v293, %v303
      %v329 = vmul.f32 %v294, %v303
      %v330 = vmul.f32 %v295, %v303
      %v331 = vmul.f32 %v296, %v303
      %v332 = vmul.f32 %v297, %v303
      %v333 = vmul.f32 %v298, %v303
      %v334 = vmul.f32 %v299, %v303
      %v335 = vmul.f32 %v300, %v303
      %v336 = vmul.f32 %v301, %v303
      %v337 = vld [vmem:[%s2] sm:$0x1]
      %v339 = vperm.slane %v337, 0
      %v341 = vadd.f32 %v305, %v339
      %v342 = vadd.f32 %v306, %v339
      %v343 = vadd.f32 %v307, %v339
      %v344 = vadd.f32 %v308, %v339
      %v345 = vadd.f32 %v309, %v339
      %v346 = vadd.f32 %v310, %v339
      %v347 = vadd.f32 %v311, %v339
      %v348 = vadd.f32 %v312, %v339
      %v349 = vadd.f32 %v313, %v339
      %v350 = vadd.f32 %v314, %v339
      %v351 = vadd.f32 %v315, %v339
      %v352 = vadd.f32 %v316, %v339
      %v353 = vadd.f32 %v317, %v339
      %v354 = vadd.f32 %v318, %v339
      %v355 = vadd.f32 %v319, %v339
      %v356 = vadd.f32 %v320, %v339
      %v357 = vadd.f32 %v321, %v339
      %v358 = vadd.f32 %v322, %v339
      %v359 = vadd.f32 %v323, %v339
      %v360 = vadd.f32 %v324, %v339
      %v361 = vadd.f32 %v325, %v339
      %v362 = vadd.f32 %v326, %v339
      %v363 = vadd.f32 %v327, %v339
      %v364 = vadd.f32 %v328, %v339
      %v365 = vadd.f32 %v329, %v339
      %v366 = vadd.f32 %v330, %v339
      %v367 = vadd.f32 %v331, %v339
      %v368 = vadd.f32 %v332, %v339
      %v369 = vadd.f32 %v333, %v339
      %v370 = vadd.f32 %v334, %v339
      %v371 = vadd.f32 %v335, %v339
      %v372 = vadd.f32 %v336, %v339
      %v373 = vmax.f32 %v341, 0.0
      %v374 = vmax.f32 %v342, 0.0
      %v375 = vmax.f32 %v343, 0.0
      %v376 = vmax.f32 %v344, 0.0
      %v377 = vmax.f32 %v345, 0.0
      %v378 = vmax.f32 %v346, 0.0
      %v379 = vmax.f32 %v347, 0.0
      %v380 = vmax.f32 %v348, 0.0
      %v381 = vmax.f32 %v349, 0.0
      %v382 = vmax.f32 %v350, 0.0
      %v383 = vmax.f32 %v351, 0.0
      %v384 = vmax.f32 %v352, 0.0
      %v385 = vmax.f32 %v353, 0.0
      %v386 = vmax.f32 %v354, 0.0
      %v387 = vmax.f32 %v355, 0.0
      %v388 = vmax.f32 %v356, 0.0
      %v389 = vmax.f32 %v357, 0.0
      %v390 = vmax.f32 %v358, 0.0
      %v391 = vmax.f32 %v359, 0.0
      %v392 = vmax.f32 %v360, 0.0
      %v393 = vmax.f32 %v361, 0.0
      %v394 = vmax.f32 %v362, 0.0
      %v395 = vmax.f32 %v363, 0.0
      %v396 = vmax.f32 %v364, 0.0
      %v397 = vmax.f32 %v365, 0.0
      %v398 = vmax.f32 %v366, 0.0
      %v399 = vmax.f32 %v367, 0.0
      %v400 = vmax.f32 %v368, 0.0
      %v401 = vmax.f32 %v369, 0.0
      %v402 = vmax.f32 %v370, 0.0
      %v403 = vmax.f32 %v371, 0.0
      %v404 = vmax.f32 %v372, 0.0
      %v405 = vpack.c.bf16 %v373, %v373
      %v406 = vpack.c.bf16 %v374, %v374
      %v407 = vpack.c.bf16 %v375, %v375
      %v408 = vpack.c.bf16 %v376, %v376
      %v409 = vpack.c.bf16 %v377, %v377
      %v410 = vpack.c.bf16 %v378, %v378
      %v411 = vpack.c.bf16 %v379, %v379
      %v412 = vpack.c.bf16 %v380, %v380
      %v413 = vpack.c.bf16 %v381, %v381
      %v414 = vpack.c.bf16 %v382, %v382
      %v415 = vpack.c.bf16 %v383, %v383
      %v416 = vpack.c.bf16 %v384, %v384
      %v417 = vpack.c.bf16 %v385, %v385
      %v418 = vpack.c.bf16 %v386, %v386
      %v419 = vpack.c.bf16 %v387, %v387
      %v420 = vpack.c.bf16 %v388, %v388
      %v421 = vpack.c.bf16 %v389, %v389
      %v422 = vpack.c.bf16 %v390, %v390
      %v423 = vpack.c.bf16 %v391, %v391
      %v424 = vpack.c.bf16 %v392, %v392
      %v425 = vpack.c.bf16 %v393, %v393
      %v426 = vpack.c.bf16 %v394, %v394
      %v427 = vpack.c.bf16 %v395, %v395
      %v428 = vpack.c.bf16 %v396, %v396
      %v429 = vpack.c.bf16 %v397, %v397
      %v430 = vpack.c.bf16 %v398, %v398
      %v431 = vpack.c.bf16 %v399, %v399
      %v432 = vpack.c.bf16 %v400, %v400
      %v433 = vpack.c.bf16 %v401, %v401
      %v434 = vpack.c.bf16 %v402, %v402
      %v435 = vpack.c.bf16 %v403, %v403
      %v436 = vpack.c.bf16 %v404, %v404
      %v469 = vunpack.c.l.b16 %v405
      %v470 = vunpack.c.l.b16 %v406
      %v471 = vunpack.c.l.b16 %v407
      %v472 = vunpack.c.l.b16 %v408
      %v473 = vunpack.c.l.b16 %v409
      %v474 = vunpack.c.l.b16 %v410
      %v475 = vunpack.c.l.b16 %v411
      %v476 = vunpack.c.l.b16 %v412
      %v477 = vunpack.c.l.b16 %v413
      %v478 = vunpack.c.l.b16 %v414
      %v479 = vunpack.c.l.b16 %v415
      %v480 = vunpack.c.l.b16 %v416
      %v481 = vunpack.c.l.b16 %v417
      %v482 = vunpack.c.l.b16 %v418
      %v483 = vunpack.c.l.b16 %v419
      %v484 = vunpack.c.l.b16 %v420
      %v485 = vunpack.c.l.b16 %v421
      %v486 = vunpack.c.l.b16 %v422
      %v487 = vunpack.c.l.b16 %v423
      %v488 = vunpack.c.l.b16 %v424
      %v489 = vunpack.c.l.b16 %v425
      %v490 = vunpack.c.l.b16 %v426
      %v491 = vunpack.c.l.b16 %v427
      %v492 = vunpack.c.l.b16 %v428
      %v493 = vunpack.c.l.b16 %v429
      %v494 = vunpack.c.l.b16 %v430
      %v495 = vunpack.c.l.b16 %v431
      %v496 = vunpack.c.l.b16 %v432
      %v497 = vunpack.c.l.b16 %v433
      %v498 = vunpack.c.l.b16 %v434
      %v499 = vunpack.c.l.b16 %v435
      %v500 = vunpack.c.l.b16 %v436
      %v501 = vpack.c.b16 %v470, %v469
      %v502 = vpack.c.b16 %v472, %v471
      %v503 = vpack.c.b16 %v474, %v473
      %v504 = vpack.c.b16 %v476, %v475
      %v505 = vpack.c.b16 %v478, %v477
      %v506 = vpack.c.b16 %v480, %v479
      %v507 = vpack.c.b16 %v482, %v481
      %v508 = vpack.c.b16 %v484, %v483
      %v509 = vpack.c.b16 %v486, %v485
      %v510 = vpack.c.b16 %v488, %v487
      %v511 = vpack.c.b16 %v490, %v489
      %v512 = vpack.c.b16 %v492, %v491
      %v513 = vpack.c.b16 %v494, %v493
      %v514 = vpack.c.b16 %v496, %v495
      %v515 = vpack.c.b16 %v498, %v497
      %v516 = vpack.c.b16 %v500, %v499
      %v518 = vshrl.u32 %v501, 16
      %v520 = vrot.slane %v518, 7
      %v521 = vshll.u32 %v501, 16
      %v523 = vor.u32 %v520, %v521
      %v525 = vshrl.u32 %v502, 16
      %v527 = vrot.slane %v525, 7
      %v528 = vshll.u32 %v502, 16
      %v530 = vor.u32 %v527, %v528
      %v532 = vshrl.u32 %v503, 16
      %v534 = vrot.slane %v532, 7
      %v535 = vshll.u32 %v503, 16
      %v537 = vor.u32 %v534, %v535
      %v539 = vshrl.u32 %v504, 16
      %v541 = vrot.slane %v539, 7
      %v542 = vshll.u32 %v504, 16
      %v544 = vor.u32 %v541, %v542
      %v546 = vshrl.u32 %v505, 16
      %v548 = vrot.slane %v546, 7
      %v549 = vshll.u32 %v505, 16
      %v551 = vor.u32 %v548, %v549
      %v553 = vshrl.u32 %v506, 16
      %v555 = vrot.slane %v553, 7
      %v556 = vshll.u32 %v506, 16
      %v558 = vor.u32 %v555, %v556
      %v560 = vshrl.u32 %v507, 16
      %v562 = vrot.slane %v560, 7
      %v563 = vshll.u32 %v507, 16
      %v565 = vor.u32 %v562, %v563
      %v567 = vshrl.u32 %v508, 16
      %v569 = vrot.slane %v567, 7
      %v570 = vshll.u32 %v508, 16
      %v572 = vor.u32 %v569, %v570
      %v574 = vshrl.u32 %v509, 16
      %v576 = vrot.slane %v574, 7
      %v577 = vshll.u32 %v509, 16
      %v579 = vor.u32 %v576, %v577
      %v581 = vshrl.u32 %v510, 16
      %v583 = vrot.slane %v581, 7
      %v584 = vshll.u32 %v510, 16
      %v586 = vor.u32 %v583, %v584
      %v588 = vshrl.u32 %v511, 16
      %v590 = vrot.slane %v588, 7
      %v591 = vshll.u32 %v511, 16
      %v593 = vor.u32 %v590, %v591
      %v595 = vshrl.u32 %v512, 16
      %v597 = vrot.slane %v595, 7
      %v598 = vshll.u32 %v512, 16
      %v600 = vor.u32 %v597, %v598
      %v602 = vshrl.u32 %v513, 16
      %v604 = vrot.slane %v602, 7
      %v605 = vshll.u32 %v513, 16
      %v607 = vor.u32 %v604, %v605
      %v609 = vshrl.u32 %v514, 16
      %v611 = vrot.slane %v609, 7
      %v612 = vshll.u32 %v514, 16
      %v614 = vor.u32 %v611, %v612
      %v616 = vshrl.u32 %v515, 16
      %v618 = vrot.slane %v616, 7
      %v619 = vshll.u32 %v515, 16
      %v621 = vor.u32 %v618, %v619
      %v623 = vshrl.u32 %v516, 16
      %v625 = vrot.slane %v623, 7
      %v626 = vshll.u32 %v516, 16
      %v628 = vor.u32 %v625, %v626
      %vm661 = vcmask 1040384
      %vm662 = vsmask.f32 256
      %vm663 = vmand %vm661, %vm662
      %v664 = vsel %vm663, 0, %v523
      %v665 = vsel %vm663, 0, %v530
      %v666 = vsel %vm663, 0, %v537
      %v667 = vsel %vm663, 0, %v544
      %v668 = vsel %vm663, 0, %v551
      %v669 = vsel %vm663, 0, %v558
      %v670 = vsel %vm663, 0, %v565
      %v671 = vsel %vm663, 0, %v572
      %v672 = vsel %vm663, 0, %v579
      %v673 = vsel %vm663, 0, %v586
      %v674 = vsel %vm663, 0, %v593
      %v675 = vsel %vm663, 0, %v600
      %v676 = vsel %vm663, 0, %v607
      %v677 = vsel %vm663, 0, %v614
      %v678 = vsel %vm663, 0, %v621
      %v679 = vsel %vm663, 0, %v628
      %v680 = vsel %vm663, %v520, 0
      %v681 = vsel %vm663, %v527, 0
      %v682 = vsel %vm663, %v534, 0
      %v683 = vsel %vm663, %v541, 0
      %v684 = vsel %vm663, %v548, 0
      %v685 = vsel %vm663, %v555, 0
      %v686 = vsel %vm663, %v562, 0
      %v687 = vsel %vm663, %v569, 0
      %v688 = vsel %vm663, %v576, 0
      %v689 = vsel %vm663, %v583, 0
      %v690 = vsel %vm663, %v590, 0
      %v691 = vsel %vm663, %v597, 0
      %v692 = vsel %vm663, %v604, 0
      %v693 = vsel %vm663, %v611, 0
      %v694 = vsel %vm663, %v618, 0
      %v695 = vsel %vm663, %v625, 0
      %vm696 = vsmask.f32 7424
      %v698 = vshrl.u32 0, 16
      %v700 = vshll.u32 0, 16
      %v702 = vrot.slane %v700, 1
      %v703 = vor.u32 %v698, %v702
      %v704 = vsel %vm696, %v703, %v702
      %v706 = vshrl.u32 %v664, 16
      %v708 = vshll.u32 %v664, 16
      %v710 = vrot.slane %v708, 1
      %v711 = vor.u32 %v706, %v710
      %v713 = vshll.u32 %v680, 16
      %v715 = vrot.slane %v713, 1
      %v716 = vsel %vm696, %v711, %v715
      %v718 = vshrl.u32 %v665, 16
      %v720 = vshll.u32 %v665, 16
      %v722 = vrot.slane %v720, 1
      %v723 = vor.u32 %v718, %v722
      %v725 = vshll.u32 %v681, 16
      %v727 = vrot.slane %v725, 1
      %v728 = vsel %vm696, %v723, %v727
      %v730 = vshrl.u32 %v666, 16
      %v732 = vshll.u32 %v666, 16
      %v734 = vrot.slane %v732, 1
      %v735 = vor.u32 %v730, %v734
      %v737 = vshll.u32 %v682, 16
      %v739 = vrot.slane %v737, 1
      %v740 = vsel %vm696, %v735, %v739
      %v742 = vshrl.u32 %v667, 16
      %v744 = vshll.u32 %v667, 16
      %v746 = vrot.slane %v744, 1
      %v747 = vor.u32 %v742, %v746
      %v749 = vshll.u32 %v683, 16
      %v751 = vrot.slane %v749, 1
      %v752 = vsel %vm696, %v747, %v751
      %v754 = vshrl.u32 %v668, 16
      %v756 = vshll.u32 %v668, 16
      %v758 = vrot.slane %v756, 1
      %v759 = vor.u32 %v754, %v758
      %v761 = vshll.u32 %v684, 16
      %v763 = vrot.slane %v761, 1
      %v764 = vsel %vm696, %v759, %v763
      %v766 = vshrl.u32 %v669, 16
      %v768 = vshll.u32 %v669, 16
      %v770 = vrot.slane %v768, 1
      %v771 = vor.u32 %v766, %v770
      %v773 = vshll.u32 %v685, 16
      %v775 = vrot.slane %v773, 1
      %v776 = vsel %vm696, %v771, %v775
      %v778 = vshrl.u32 %v670, 16
      %v780 = vshll.u32 %v670, 16
      %v782 = vrot.slane %v780, 1
      %v783 = vor.u32 %v778, %v782
      %v785 = vshll.u32 %v686, 16
      %v787 = vrot.slane %v785, 1
      %v788 = vsel %vm696, %v783, %v787
      %v790 = vshrl.u32 %v671, 16
      %v792 = vshll.u32 %v671, 16
      %v794 = vrot.slane %v792, 1
      %v795 = vor.u32 %v790, %v794
      %v797 = vshll.u32 %v687, 16
      %v799 = vrot.slane %v797, 1
      %v800 = vsel %vm696, %v795, %v799
      %v802 = vshrl.u32 %v672, 16
      %v804 = vshll.u32 %v672, 16
      %v806 = vrot.slane %v804, 1
      %v807 = vor.u32 %v802, %v806
      %v809 = vshll.u32 %v688, 16
      %v811 = vrot.slane %v809, 1
      %v812 = vsel %vm696, %v807, %v811
      %v814 = vshrl.u32 %v673, 16
      %v816 = vshll.u32 %v673, 16
      %v818 = vrot.slane %v816, 1
      %v819 = vor.u32 %v814, %v818
      %v821 = vshll.u32 %v689, 16
      %v823 = vrot.slane %v821, 1
      %v824 = vsel %vm696, %v819, %v823
      %v826 = vshrl.u32 %v674, 16
      %v828 = vshll.u32 %v674, 16
      %v830 = vrot.slane %v828, 1
      %v831 = vor.u32 %v826, %v830
      %v833 = vshll.u32 %v690, 16
      %v835 = vrot.slane %v833, 1
      %v836 = vsel %vm696, %v831, %v835
      %v838 = vshrl.u32 %v675, 16
      %v840 = vshll.u32 %v675, 16
      %v842 = vrot.slane %v840, 1
      %v843 = vor.u32 %v838, %v842
      %v845 = vshll.u32 %v691, 16
      %v847 = vrot.slane %v845, 1
      %v848 = vsel %vm696, %v843, %v847
      %v850 = vshrl.u32 %v676, 16
      %v852 = vshll.u32 %v676, 16
      %v854 = vrot.slane %v852, 1
      %v855 = vor.u32 %v850, %v854
      %v857 = vshll.u32 %v692, 16
      %v859 = vrot.slane %v857, 1
      %v860 = vsel %vm696, %v855, %v859
      %v862 = vshrl.u32 %v677, 16
      %v864 = vshll.u32 %v677, 16
      %v866 = vrot.slane %v864, 1
      %v867 = vor.u32 %v862, %v866
      %v869 = vshll.u32 %v693, 16
      %v871 = vrot.slane %v869, 1
      %v872 = vsel %vm696, %v867, %v871
      %v874 = vshrl.u32 %v678, 16
      %v876 = vshll.u32 %v678, 16
      %v878 = vrot.slane %v876, 1
      %v879 = vor.u32 %v874, %v878
      %v881 = vshll.u32 %v694, 16
      %v883 = vrot.slane %v881, 1
      %v884 = vsel %vm696, %v879, %v883
      %vm932 = vcmask 1046528
      %v933 = vrot.slane 0, 1
      %v934 = vsel %vm932, %v933, %v933
      %v935 = vrot.slane %v664, 1
      %v936 = vrot.slane %v680, 1
      %v937 = vsel %vm932, %v935, %v936
      %v938 = vrot.slane %v665, 1
      %v939 = vrot.slane %v681, 1
      %v940 = vsel %vm932, %v938, %v939
      %v941 = vrot.slane %v666, 1
      %v942 = vrot.slane %v682, 1
      %v943 = vsel %vm932, %v941, %v942
      %v944 = vrot.slane %v667, 1
      %v945 = vrot.slane %v683, 1
      %v946 = vsel %vm932, %v944, %v945
      %v947 = vrot.slane %v668, 1
      %v948 = vrot.slane %v684, 1
      %v949 = vsel %vm932, %v947, %v948
      %v950 = vrot.slane %v669, 1
      %v951 = vrot.slane %v685, 1
      %v952 = vsel %vm932, %v950, %v951
      %v953 = vrot.slane %v670, 1
      %v954 = vrot.slane %v686, 1
      %v955 = vsel %vm932, %v953, %v954
      %v956 = vrot.slane %v671, 1
      %v957 = vrot.slane %v687, 1
      %v958 = vsel %vm932, %v956, %v957
      %v959 = vrot.slane %v672, 1
      %v960 = vrot.slane %v688, 1
      %v961 = vsel %vm932, %v959, %v960
      %v962 = vrot.slane %v673, 1
      %v963 = vrot.slane %v689, 1
      %v964 = vsel %vm932, %v962, %v963
      %v965 = vrot.slane %v674, 1
      %v966 = vrot.slane %v690, 1
      %v967 = vsel %vm932, %v965, %v966
      %v968 = vrot.slane %v675, 1
      %v969 = vrot.slane %v691, 1
      %v970 = vsel %vm932, %v968, %v969
      %v971 = vrot.slane %v676, 1
      %v972 = vrot.slane %v692, 1
      %v973 = vsel %vm932, %v971, %v972
      %v974 = vrot.slane %v677, 1
      %v975 = vrot.slane %v693, 1
      %v976 = vsel %vm932, %v974, %v975
      %v977 = vrot.slane %v678, 1
      %v978 = vrot.slane %v694, 1
      %v979 = vsel %vm932, %v977, %v978
      %v997 = vshrl.u32 %v679, 16
      %v999 = vshll.u32 %v679, 16
      %v1001 = vrot.slane %v999, 1
      %v1002 = vor.u32 %v997, %v1001
      %v1004 = vshll.u32 %v695, 16
      %v1006 = vrot.slane %v1004, 1
      %v1007 = vsel %vm696, %v1002, %v1006
      %v1011 = vrot.slane %v679, 1
      %v1012 = vrot.slane %v695, 1
      %v1013 = vsel %vm932, %v1011, %v1012
      %v1015 = vld [vmem:[%s3] sm:$0xf]
      %v1016 = vld [vmem:[%s3 + $0x4] sm:$0xf]
      %v1017 = vld [vmem:[%s3 + $0x8] sm:$0xf]
      %v1018 = vld [vmem:[%s3 + $0xc] sm:$0xf]
      %v1019 = vld [vmem:[%s3 + $0x10] sm:$0xf]
      %v1020 = vld [vmem:[%s3 + $0x14] sm:$0xf]
      %v1021 = vld [vmem:[%s3 + $0x18] sm:$0xf]
      %v1022 = vld [vmem:[%s3 + $0x1c] sm:$0xf]
      %v1023 = vld [vmem:[%s3 + $0x20] sm:$0xf]
      %v1024 = vld [vmem:[%s3 + $0x24] sm:$0xf]
      %v1025 = vld [vmem:[%s3 + $0x28] sm:$0xf]
      %v1026 = vld [vmem:[%s3 + $0x2c] sm:$0xf]
      %v1027 = vld [vmem:[%s3 + $0x30] sm:$0xf]
      %v1028 = vld [vmem:[%s3 + $0x34] sm:$0xf]
      %v1029 = vld [vmem:[%s3 + $0x38] sm:$0xf]
      %v1030 = vld [vmem:[%s3 + $0x3c] sm:$0xf]
      %v1031 = vld [vmem:[%s3 + $0x40] sm:$0xf]
      %v1032 = vld [vmem:[%s3 + $0x44] sm:$0xf]
      %v1033 = vld [vmem:[%s3 + $0x48] sm:$0xf]
      %v1034 = vld [vmem:[%s3 + $0x4c] sm:$0xf]
      %v1035 = vld [vmem:[%s3 + $0x50] sm:$0xf]
      %v1036 = vld [vmem:[%s3 + $0x54] sm:$0xf]
      %v1037 = vld [vmem:[%s3 + $0x58] sm:$0xf]
      %v1038 = vld [vmem:[%s3 + $0x5c] sm:$0xf]
      %v1039 = vld [vmem:[%s3 + $0x60] sm:$0xf]
      %v1040 = vld [vmem:[%s3 + $0x64] sm:$0xf]
      %v1041 = vld [vmem:[%s3 + $0x68] sm:$0xf]
      %v1042 = vld [vmem:[%s3 + $0x6c] sm:$0xf]
      %v1043 = vld [vmem:[%s3 + $0x70] sm:$0xf]
      %v1044 = vld [vmem:[%s3 + $0x74] sm:$0xf]
      %v1045 = vld [vmem:[%s3 + $0x78] sm:$0xf]
      %v1046 = vld [vmem:[%s3 + $0x7c] sm:$0xf]
      %v1047 = vld [vmem:[%s3 + $0x80] sm:$0xf]
      %v1048 = vld [vmem:[%s3 + $0x84] sm:$0xf]
      %v1049 = vld [vmem:[%s3 + $0x88] sm:$0xf]
      %v1050 = vld [vmem:[%s3 + $0x8c] sm:$0xf]
      %v1051 = vld [vmem:[%s3 + $0x90] sm:$0xf]
      %v1052 = vld [vmem:[%s3 + $0x94] sm:$0xf]
      %v1053 = vld [vmem:[%s3 + $0x98] sm:$0xf]
      %v1054 = vld [vmem:[%s3 + $0x9c] sm:$0xf]
      %v1055 = vld [vmem:[%s3 + $0xa0] sm:$0xf]
      %v1056 = vld [vmem:[%s3 + $0xa4] sm:$0xf]
      %v1057 = vld [vmem:[%s3 + $0xa8] sm:$0xf]
      %v1058 = vld [vmem:[%s3 + $0xac] sm:$0xf]
      %v1059 = vld [vmem:[%s3 + $0xb0] sm:$0xf]
      %v1060 = vld [vmem:[%s3 + $0xb4] sm:$0xf]
      %v1061 = vld [vmem:[%s3 + $0xb8] sm:$0xf]
      %v1062 = vld [vmem:[%s3 + $0xbc] sm:$0xf]
      %v1063 = vld [vmem:[%s3 + $0xc0] sm:$0xf]
      %v1064 = vld [vmem:[%s3 + $0xc4] sm:$0xf]
      %v1065 = vld [vmem:[%s3 + $0xc8] sm:$0xf]
      %v1066 = vld [vmem:[%s3 + $0xcc] sm:$0xf]
      %v1067 = vld [vmem:[%s3 + $0xd0] sm:$0xf]
      %v1068 = vld [vmem:[%s3 + $0xd4] sm:$0xf]
      %v1069 = vld [vmem:[%s3 + $0xd8] sm:$0xf]
      %v1070 = vld [vmem:[%s3 + $0xdc] sm:$0xf]
      %v1071 = vld [vmem:[%s3 + $0xe0] sm:$0xf]
      %v1072 = vld [vmem:[%s3 + $0xe4] sm:$0xf]
      %v1073 = vld [vmem:[%s3 + $0xe8] sm:$0xf]
      %v1074 = vld [vmem:[%s3 + $0xec] sm:$0xf]
      %v1075 = vld [vmem:[%s3 + $0xf0] sm:$0xf]
      %v1076 = vld [vmem:[%s3 + $0xf4] sm:$0xf]
      %v1077 = vld [vmem:[%s3 + $0xf8] sm:$0xf]
      %v1078 = vld [vmem:[%s3 + $0xfc] sm:$0xf]
      %v1079 = vld [vmem:[%s3 + $0x100] sm:$0xf]
      %v1080 = vld [vmem:[%s3 + $0x104] sm:$0xf]
      %v1081 = vld [vmem:[%s3 + $0x108] sm:$0xf]
      %v1082 = vld [vmem:[%s3 + $0x10c] sm:$0xf]
      %v1083 = vld [vmem:[%s3 + $0x110] sm:$0xf]
      %v1084 = vld [vmem:[%s3 + $0x114] sm:$0xf]
      %v1085 = vld [vmem:[%s3 + $0x118] sm:$0xf]
      %v1086 = vld [vmem:[%s3 + $0x11c] sm:$0xf]
      %v1087 = vld [vmem:[%s3 + $0x120] sm:$0xf]
      %v1088 = vld [vmem:[%s3 + $0x124] sm:$0xf]
      %v1089 = vld [vmem:[%s3 + $0x128] sm:$0xf]
      %v1090 = vld [vmem:[%s3 + $0x12c] sm:$0xf]
      %v1091 = vld [vmem:[%s3 + $0x130] sm:$0xf]
      %v1092 = vld [vmem:[%s3 + $0x134] sm:$0xf]
      %v1093 = vld [vmem:[%s3 + $0x138] sm:$0xf]
      %v1094 = vld [vmem:[%s3 + $0x13c] sm:$0xf]
      %v1095 = vld [vmem:[%s3 + $0x140] sm:$0xf]
      %v1096 = vld [vmem:[%s3 + $0x144] sm:$0xf]
      %v1097 = vld [vmem:[%s3 + $0x148] sm:$0xf]
      %v1098 = vld [vmem:[%s3 + $0x14c] sm:$0xf]
      %v1099 = vld [vmem:[%s3 + $0x150] sm:$0xf]
      %v1100 = vld [vmem:[%s3 + $0x154] sm:$0xf]
      %v1101 = vld [vmem:[%s3 + $0x158] sm:$0xf]
      %v1102 = vld [vmem:[%s3 + $0x15c] sm:$0xf]
      %v1103 = vld [vmem:[%s3 + $0x160] sm:$0xf]
      %v1104 = vld [vmem:[%s3 + $0x164] sm:$0xf]
      %v1105 = vld [vmem:[%s3 + $0x168] sm:$0xf]
      %v1106 = vld [vmem:[%s3 + $0x16c] sm:$0xf]
      %v1107 = vld [vmem:[%s3 + $0x170] sm:$0xf]
      %v1108 = vld [vmem:[%s3 + $0x174] sm:$0xf]
      %v1109 = vld [vmem:[%s3 + $0x178] sm:$0xf]
      %v1110 = vld [vmem:[%s3 + $0x17c] sm:$0xf]
      %v1111 = vld [vmem:[%s3 + $0x180] sm:$0xf]
      %v1112 = vld [vmem:[%s3 + $0x184] sm:$0xf]
      %v1113 = vld [vmem:[%s3 + $0x188] sm:$0xf]
      %v1114 = vld [vmem:[%s3 + $0x18c] sm:$0xf]
      %v1115 = vld [vmem:[%s3 + $0x190] sm:$0xf]
      %v1116 = vld [vmem:[%s3 + $0x194] sm:$0xf]
      %v1117 = vld [vmem:[%s3 + $0x198] sm:$0xf]
      %v1118 = vld [vmem:[%s3 + $0x19c] sm:$0xf]
      %v1119 = vld [vmem:[%s3 + $0x1a0] sm:$0xf]
      %v1120 = vld [vmem:[%s3 + $0x1a4] sm:$0xf]
      %v1121 = vld [vmem:[%s3 + $0x1a8] sm:$0xf]
      %v1122 = vld [vmem:[%s3 + $0x1ac] sm:$0xf]
      %v1123 = vld [vmem:[%s3 + $0x1b0] sm:$0xf]
      %v1124 = vld [vmem:[%s3 + $0x1b4] sm:$0xf]
      %v1125 = vld [vmem:[%s3 + $0x1b8] sm:$0xf]
      %v1126 = vld [vmem:[%s3 + $0x1bc] sm:$0xf]
      %v1127 = vld [vmem:[%s3 + $0x1c0] sm:$0xf]
      %v1128 = vld [vmem:[%s3 + $0x1c4] sm:$0xf]
      %v1129 = vld [vmem:[%s3 + $0x1c8] sm:$0xf]
      %v1130 = vld [vmem:[%s3 + $0x1cc] sm:$0xf]
      %v1131 = vld [vmem:[%s3 + $0x1d0] sm:$0xf]
      %v1132 = vld [vmem:[%s3 + $0x1d4] sm:$0xf]
      %v1133 = vld [vmem:[%s3 + $0x1d8] sm:$0xf]
      %v1134 = vld [vmem:[%s3 + $0x1dc] sm:$0xf]
      %v1135 = vld [vmem:[%s3 + $0x1e0] sm:$0xf]
      %v1136 = vld [vmem:[%s3 + $0x1e4] sm:$0xf]
      %v1137 = vld [vmem:[%s3 + $0x1e8] sm:$0xf]
      %v1138 = vld [vmem:[%s3 + $0x1ec] sm:$0xf]
      %v1139 = vld [vmem:[%s3 + $0x1f0] sm:$0xf]
      %v1140 = vld [vmem:[%s3 + $0x1f4] sm:$0xf]
      %v1141 = vld [vmem:[%s3 + $0x1f8] sm:$0xf]
      %v1142 = vld [vmem:[%s3 + $0x1fc] sm:$0xf]
      %v1143 = vld [vmem:[%s3 + $0x200] sm:$0xf]
      %v1144 = vld [vmem:[%s3 + $0x204] sm:$0xf]
      %v1145 = vld [vmem:[%s3 + $0x208] sm:$0xf]
      %v1146 = vld [vmem:[%s3 + $0x20c] sm:$0xf]
      %v1147 = vld [vmem:[%s3 + $0x210] sm:$0xf]
      %v1148 = vld [vmem:[%s3 + $0x214] sm:$0xf]
      %v1149 = vld [vmem:[%s3 + $0x218] sm:$0xf]
      %v1150 = vld [vmem:[%s3 + $0x21c] sm:$0xf]
      %v1151 = vld [vmem:[%s3 + $0x220] sm:$0xf]
      %v1152 = vld [vmem:[%s3 + $0x224] sm:$0xf]
      %v1153 = vld [vmem:[%s3 + $0x228] sm:$0xf]
      %v1154 = vld [vmem:[%s3 + $0x22c] sm:$0xf]
      %v1155 = vld [vmem:[%s3 + $0x230] sm:$0xf]
      %v1156 = vld [vmem:[%s3 + $0x234] sm:$0xf]
      %v1157 = vld [vmem:[%s3 + $0x238] sm:$0xf]
      %v1158 = vld [vmem:[%s3 + $0x23c] sm:$0xf]
      %v1303 = vunpack.c.l.b16 %v1015
      %v1304 = vunpack.c.l.b16 %v1016
      %v1305 = vunpack.c.l.b16 %v1017
      %v1306 = vunpack.c.l.b16 %v1018
      %v1307 = vunpack.c.l.b16 %v1019
      %v1308 = vunpack.c.l.b16 %v1020
      %v1309 = vunpack.c.l.b16 %v1021
      %v1310 = vunpack.c.l.b16 %v1022
      %v1311 = vunpack.c.l.b16 %v1023
      %v1312 = vunpack.c.l.b16 %v1024
      %v1313 = vunpack.c.l.b16 %v1025
      %v1314 = vunpack.c.l.b16 %v1026
      %v1315 = vunpack.c.l.b16 %v1027
      %v1316 = vunpack.c.l.b16 %v1028
      %v1317 = vunpack.c.l.b16 %v1029
      %v1318 = vunpack.c.l.b16 %v1030
      %v1319 = vunpack.c.l.b16 %v1031
      %v1320 = vunpack.c.l.b16 %v1032
      %v1321 = vunpack.c.l.b16 %v1033
      %v1322 = vunpack.c.l.b16 %v1034
      %v1323 = vunpack.c.l.b16 %v1035
      %v1324 = vunpack.c.l.b16 %v1036
      %v1325 = vunpack.c.l.b16 %v1037
      %v1326 = vunpack.c.l.b16 %v1038
      %v1327 = vunpack.c.l.b16 %v1039
      %v1328 = vunpack.c.l.b16 %v1040
      %v1329 = vunpack.c.l.b16 %v1041
      %v1330 = vunpack.c.l.b16 %v1042
      %v1331 = vunpack.c.l.b16 %v1043
      %v1332 = vunpack.c.l.b16 %v1044
      %v1333 = vunpack.c.l.b16 %v1045
      %v1334 = vunpack.c.l.b16 %v1046
      %v1335 = vunpack.c.l.b16 %v1047
      %v1336 = vunpack.c.l.b16 %v1048
      %v1337 = vunpack.c.l.b16 %v1049
      %v1338 = vunpack.c.l.b16 %v1050
      %v1339 = vunpack.c.l.b16 %v1051
      %v1340 = vunpack.c.l.b16 %v1052
      %v1341 = vunpack.c.l.b16 %v1053
      %v1342 = vunpack.c.l.b16 %v1054
      %v1343 = vunpack.c.l.b16 %v1055
      %v1344 = vunpack.c.l.b16 %v1056
      %v1345 = vunpack.c.l.b16 %v1057
      %v1346 = vunpack.c.l.b16 %v1058
      %v1347 = vunpack.c.l.b16 %v1059
      %v1348 = vunpack.c.l.b16 %v1060
      %v1349 = vunpack.c.l.b16 %v1061
      %v1350 = vunpack.c.l.b16 %v1062
      %v1351 = vunpack.c.l.b16 %v1063
      %v1352 = vunpack.c.l.b16 %v1064
      %v1353 = vunpack.c.l.b16 %v1065
      %v1354 = vunpack.c.l.b16 %v1066
      %v1355 = vunpack.c.l.b16 %v1067
      %v1356 = vunpack.c.l.b16 %v1068
      %v1357 = vunpack.c.l.b16 %v1069
      %v1358 = vunpack.c.l.b16 %v1070
      %v1359 = vunpack.c.l.b16 %v1071
      %v1360 = vunpack.c.l.b16 %v1072
      %v1361 = vunpack.c.l.b16 %v1073
      %v1362 = vunpack.c.l.b16 %v1074
      %v1363 = vunpack.c.l.b16 %v1075
      %v1364 = vunpack.c.l.b16 %v1076
      %v1365 = vunpack.c.l.b16 %v1077
      %v1366 = vunpack.c.l.b16 %v1078
      %v1367 = vunpack.c.l.b16 %v1079
      %v1368 = vunpack.c.l.b16 %v1080
      %v1369 = vunpack.c.l.b16 %v1081
      %v1370 = vunpack.c.l.b16 %v1082
      %v1371 = vunpack.c.l.b16 %v1083
      %v1372 = vunpack.c.l.b16 %v1084
      %v1373 = vunpack.c.l.b16 %v1085
      %v1374 = vunpack.c.l.b16 %v1086
      %v1375 = vunpack.c.l.b16 %v1087
      %v1376 = vunpack.c.l.b16 %v1088
      %v1377 = vunpack.c.l.b16 %v1089
      %v1378 = vunpack.c.l.b16 %v1090
      %v1379 = vunpack.c.l.b16 %v1091
      %v1380 = vunpack.c.l.b16 %v1092
      %v1381 = vunpack.c.l.b16 %v1093
      %v1382 = vunpack.c.l.b16 %v1094
      %v1383 = vunpack.c.l.b16 %v1095
      %v1384 = vunpack.c.l.b16 %v1096
      %v1385 = vunpack.c.l.b16 %v1097
      %v1386 = vunpack.c.l.b16 %v1098
      %v1387 = vunpack.c.l.b16 %v1099
      %v1388 = vunpack.c.l.b16 %v1100
      %v1389 = vunpack.c.l.b16 %v1101
      %v1390 = vunpack.c.l.b16 %v1102
      %v1391 = vunpack.c.l.b16 %v1103
      %v1392 = vunpack.c.l.b16 %v1104
      %v1393 = vunpack.c.l.b16 %v1105
      %v1394 = vunpack.c.l.b16 %v1106
      %v1395 = vunpack.c.l.b16 %v1107
      %v1396 = vunpack.c.l.b16 %v1108
      %v1397 = vunpack.c.l.b16 %v1109
      %v1398 = vunpack.c.l.b16 %v1110
      %v1399 = vunpack.c.l.b16 %v1111
      %v1400 = vunpack.c.l.b16 %v1112
      %v1401 = vunpack.c.l.b16 %v1113
      %v1402 = vunpack.c.l.b16 %v1114
      %v1403 = vunpack.c.l.b16 %v1115
      %v1404 = vunpack.c.l.b16 %v1116
      %v1405 = vunpack.c.l.b16 %v1117
      %v1406 = vunpack.c.l.b16 %v1118
      %v1407 = vunpack.c.l.b16 %v1119
      %v1408 = vunpack.c.l.b16 %v1120
      %v1409 = vunpack.c.l.b16 %v1121
      %v1410 = vunpack.c.l.b16 %v1122
      %v1411 = vunpack.c.l.b16 %v1123
      %v1412 = vunpack.c.l.b16 %v1124
      %v1413 = vunpack.c.l.b16 %v1125
      %v1414 = vunpack.c.l.b16 %v1126
      %v1415 = vunpack.c.l.b16 %v1127
      %v1416 = vunpack.c.l.b16 %v1128
      %v1417 = vunpack.c.l.b16 %v1129
      %v1418 = vunpack.c.l.b16 %v1130
      %v1419 = vunpack.c.l.b16 %v1131
      %v1420 = vunpack.c.l.b16 %v1132
      %v1421 = vunpack.c.l.b16 %v1133
      %v1422 = vunpack.c.l.b16 %v1134
      %v1423 = vunpack.c.l.b16 %v1135
      %v1424 = vunpack.c.l.b16 %v1136
      %v1425 = vunpack.c.l.b16 %v1137
      %v1426 = vunpack.c.l.b16 %v1138
      %v1427 = vunpack.c.l.b16 %v1139
      %v1428 = vunpack.c.l.b16 %v1140
      %v1429 = vunpack.c.l.b16 %v1141
      %v1430 = vunpack.c.l.b16 %v1142
      %v1431 = vunpack.c.l.b16 %v1143
      %v1432 = vunpack.c.l.b16 %v1144
      %v1433 = vunpack.c.l.b16 %v1145
      %v1434 = vunpack.c.l.b16 %v1146
      %v1435 = vunpack.c.l.b16 %v1147
      %v1436 = vunpack.c.l.b16 %v1148
      %v1437 = vunpack.c.l.b16 %v1149
      %v1438 = vunpack.c.l.b16 %v1150
      %v1439 = vunpack.c.l.b16 %v1151
      %v1440 = vunpack.c.l.b16 %v1152
      %v1441 = vunpack.c.l.b16 %v1153
      %v1442 = vunpack.c.l.b16 %v1154
      %v1443 = vunpack.c.l.b16 %v1155
      %v1444 = vunpack.c.l.b16 %v1156
      %v1445 = vunpack.c.l.b16 %v1157
      %v1446 = vunpack.c.l.b16 %v1158
      %v1447 = vpack.c.b16 %v1304, %v1303
      %v1448 = vpack.c.b16 %v1306, %v1305
      %v1449 = vpack.c.b16 %v1308, %v1307
      %v1450 = vpack.c.b16 %v1310, %v1309
      %v1451 = vpack.c.b16 %v1312, %v1311
      %v1452 = vpack.c.b16 %v1314, %v1313
      %v1453 = vpack.c.b16 %v1316, %v1315
      %v1454 = vpack.c.b16 %v1318, %v1317
      %v1455 = vpack.c.b16 %v1320, %v1319
      %v1456 = vpack.c.b16 %v1322, %v1321
      %v1457 = vpack.c.b16 %v1324, %v1323
      %v1458 = vpack.c.b16 %v1326, %v1325
      %v1459 = vpack.c.b16 %v1328, %v1327
      %v1460 = vpack.c.b16 %v1330, %v1329
      %v1461 = vpack.c.b16 %v1332, %v1331
      %v1462 = vpack.c.b16 %v1334, %v1333
      %v1463 = vpack.c.b16 %v1336, %v1335
      %v1464 = vpack.c.b16 %v1338, %v1337
      %v1465 = vpack.c.b16 %v1340, %v1339
      %v1466 = vpack.c.b16 %v1342, %v1341
      %v1467 = vpack.c.b16 %v1344, %v1343
      %v1468 = vpack.c.b16 %v1346, %v1345
      %v1469 = vpack.c.b16 %v1348, %v1347
      %v1470 = vpack.c.b16 %v1350, %v1349
      %v1471 = vpack.c.b16 %v1352, %v1351
      %v1472 = vpack.c.b16 %v1354, %v1353
      %v1473 = vpack.c.b16 %v1356, %v1355
      %v1474 = vpack.c.b16 %v1358, %v1357
      %v1475 = vpack.c.b16 %v1360, %v1359
      %v1476 = vpack.c.b16 %v1362, %v1361
      %v1477 = vpack.c.b16 %v1364, %v1363
      %v1478 = vpack.c.b16 %v1366, %v1365
      %v1479 = vpack.c.b16 %v1368, %v1367
      %v1480 = vpack.c.b16 %v1370, %v1369
      %v1481 = vpack.c.b16 %v1372, %v1371
      %v1482 = vpack.c.b16 %v1374, %v1373
      %v1483 = vpack.c.b16 %v1376, %v1375
      %v1484 = vpack.c.b16 %v1378, %v1377
      %v1485 = vpack.c.b16 %v1380, %v1379
      %v1486 = vpack.c.b16 %v1382, %v1381
      %v1487 = vpack.c.b16 %v1384, %v1383
      %v1488 = vpack.c.b16 %v1386, %v1385
      %v1489 = vpack.c.b16 %v1388, %v1387
      %v1490 = vpack.c.b16 %v1390, %v1389
      %v1491 = vpack.c.b16 %v1392, %v1391
      %v1492 = vpack.c.b16 %v1394, %v1393
      %v1493 = vpack.c.b16 %v1396, %v1395
      %v1494 = vpack.c.b16 %v1398, %v1397
      %v1495 = vpack.c.b16 %v1400, %v1399
      %v1496 = vpack.c.b16 %v1402, %v1401
      %v1497 = vpack.c.b16 %v1404, %v1403
      %v1498 = vpack.c.b16 %v1406, %v1405
      %v1499 = vpack.c.b16 %v1408, %v1407
      %v1500 = vpack.c.b16 %v1410, %v1409
      %v1501 = vpack.c.b16 %v1412, %v1411
      %v1502 = vpack.c.b16 %v1414, %v1413
      %v1503 = vpack.c.b16 %v1416, %v1415
      %v1504 = vpack.c.b16 %v1418, %v1417
      %v1505 = vpack.c.b16 %v1420, %v1419
      %v1506 = vpack.c.b16 %v1422, %v1421
      %v1507 = vpack.c.b16 %v1424, %v1423
      %v1508 = vpack.c.b16 %v1426, %v1425
      %v1509 = vpack.c.b16 %v1428, %v1427
      %v1510 = vpack.c.b16 %v1430, %v1429
      %v1511 = vpack.c.b16 %v1432, %v1431
      %v1512 = vpack.c.b16 %v1434, %v1433
      %v1513 = vpack.c.b16 %v1436, %v1435
      %v1514 = vpack.c.b16 %v1438, %v1437
      %v1515 = vpack.c.b16 %v1440, %v1439
      %v1516 = vpack.c.b16 %v1442, %v1441
      %v1517 = vpack.c.b16 %v1444, %v1443
      %v1518 = vpack.c.b16 %v1446, %v1445
      %1591 = vmatpush.bf16.msra.mxu0 %v1454
      %1592 = vmatpush.bf16.msra.mxu0 %v1453
      %1593 = vmatpush.bf16.msra.mxu0 %v1452
      %1594 = vmatpush.bf16.msra.mxu0 %v1451
      %1595 = vmatpush.bf16.msra.mxu0 %v1450
      %1596 = vmatpush.bf16.msra.mxu0 %v1449
      %1597 = vmatpush.bf16.msra.mxu0 %v1448
      %1598 = vmatpush.bf16.msra.mxu0 %v1447
      %1599 = vmatmul.bf16.gmra.mxu0 0
      %v1600 = vpop.f32.mrf.mxu0
      %v1601 = vadd.f32 0.0, %v1600
      %v1602 = vpop.f32.mrf.mxu0
      %v1603 = vadd.f32 0.0, %v1602
      %1604 = vmatmul.bf16.gmra.mxu0 %v664
      %v1605 = vpop.f32.mrf.mxu0
      %v1606 = vadd.f32 0.0, %v1605
      %v1607 = vpop.f32.mrf.mxu0
      %v1608 = vadd.f32 0.0, %v1607
      %1609 = vmatmul.bf16.gmra.mxu0 %v665
      %v1610 = vpop.f32.mrf.mxu0
      %v1611 = vadd.f32 0.0, %v1610
      %v1612 = vpop.f32.mrf.mxu0
      %v1613 = vadd.f32 0.0, %v1612
      %1614 = vmatmul.bf16.gmra.mxu0 %v666
      %v1615 = vpop.f32.mrf.mxu0
      %v1616 = vadd.f32 0.0, %v1615
      %v1617 = vpop.f32.mrf.mxu0
      %v1618 = vadd.f32 0.0, %v1617
      %1619 = vmatmul.bf16.gmra.mxu0 %v667
      %v1620 = vpop.f32.mrf.mxu0
      %v1621 = vadd.f32 0.0, %v1620
      %v1622 = vpop.f32.mrf.mxu0
      %v1623 = vadd.f32 0.0, %v1622
      %1624 = vmatmul.bf16.gmra.mxu0 %v668
      %v1625 = vpop.f32.mrf.mxu0
      %v1626 = vadd.f32 0.0, %v1625
      %v1627 = vpop.f32.mrf.mxu0
      %v1628 = vadd.f32 0.0, %v1627
      %1629 = vmatmul.bf16.gmra.mxu0 %v669
      %v1630 = vpop.f32.mrf.mxu0
      %v1631 = vadd.f32 0.0, %v1630
      %v1632 = vpop.f32.mrf.mxu0
      %v1633 = vadd.f32 0.0, %v1632
      %1634 = vmatmul.bf16.gmra.mxu0 %v670
      %v1635 = vpop.f32.mrf.mxu0
      %v1636 = vadd.f32 0.0, %v1635
      %v1637 = vpop.f32.mrf.mxu0
      %v1638 = vadd.f32 0.0, %v1637
      %1639 = vmatmul.bf16.gmra.mxu0 %v671
      %v1640 = vpop.f32.mrf.mxu0
      %v1641 = vadd.f32 0.0, %v1640
      %v1642 = vpop.f32.mrf.mxu0
      %v1643 = vadd.f32 0.0, %v1642
      %1644 = vmatmul.bf16.gmra.mxu0 %v672
      %v1645 = vpop.f32.mrf.mxu0
      %v1646 = vadd.f32 0.0, %v1645
      %v1647 = vpop.f32.mrf.mxu0
      %v1648 = vadd.f32 0.0, %v1647
      %1649 = vmatmul.bf16.gmra.mxu0 %v673
      %v1650 = vpop.f32.mrf.mxu0
      %v1651 = vadd.f32 0.0, %v1650
      %v1652 = vpop.f32.mrf.mxu0
      %v1653 = vadd.f32 0.0, %v1652
      %1654 = vmatmul.bf16.gmra.mxu0 %v674
      %v1655 = vpop.f32.mrf.mxu0
      %v1656 = vadd.f32 0.0, %v1655
      %v1657 = vpop.f32.mrf.mxu0
      %v1658 = vadd.f32 0.0, %v1657
      %1659 = vmatmul.bf16.gmra.mxu0 %v675
      %v1660 = vpop.f32.mrf.mxu0
      %v1661 = vadd.f32 0.0, %v1660
      %v1662 = vpop.f32.mrf.mxu0
      %v1663 = vadd.f32 0.0, %v1662
      %1664 = vmatmul.bf16.gmra.mxu0 %v676
      %v1665 = vpop.f32.mrf.mxu0
      %v1666 = vadd.f32 0.0, %v1665
      %v1667 = vpop.f32.mrf.mxu0
      %v1668 = vadd.f32 0.0, %v1667
      %1669 = vmatmul.bf16.gmra.mxu0 %v677
      %v1670 = vpop.f32.mrf.mxu0
      %v1671 = vadd.f32 0.0, %v1670
      %v1672 = vpop.f32.mrf.mxu0
      %v1673 = vadd.f32 0.0, %v1672
      %1674 = vmatmul.bf16.gmra.mxu0 %v678
      %v1675 = vpop.f32.mrf.mxu0
      %v1676 = vadd.f32 0.0, %v1675
      %v1677 = vpop.f32.mrf.mxu0
      %v1678 = vadd.f32 0.0, %v1677
      %1679 = vdwg.mxu0
      %1680 = vmatpush.bf16.msra.mxu0 %v1462
      %1681 = vmatpush.bf16.msra.mxu0 %v1461
      %1682 = vmatpush.bf16.msra.mxu0 %v1460
      %1683 = vmatpush.bf16.msra.mxu0 %v1459
      %1684 = vmatpush.bf16.msra.mxu0 %v1458
      %1685 = vmatpush.bf16.msra.mxu0 %v1457
      %1686 = vmatpush.bf16.msra.mxu0 %v1456
      %1687 = vmatpush.bf16.msra.mxu0 %v1455
      %1688 = vmatmul.bf16.gmra.mxu0 %v704
      %v1689 = vpop.f32.mrf.mxu0
      %v1690 = vadd.f32 %v1601, %v1689
      %v1691 = vpop.f32.mrf.mxu0
      %v1692 = vadd.f32 %v1603, %v1691
      %1693 = vmatmul.bf16.gmra.mxu0 %v716
      %v1694 = vpop.f32.mrf.mxu0
      %v1695 = vadd.f32 %v1606, %v1694
      %v1696 = vpop.f32.mrf.mxu0
      %v1697 = vadd.f32 %v1608, %v1696
      %1698 = vmatmul.bf16.gmra.mxu0 %v728
      %v1699 = vpop.f32.mrf.mxu0
      %v1700 = vadd.f32 %v1611, %v1699
      %v1701 = vpop.f32.mrf.mxu0
      %v1702 = vadd.f32 %v1613, %v1701
      %1703 = vmatmul.bf16.gmra.mxu0 %v740
      %v1704 = vpop.f32.mrf.mxu0
      %v1705 = vadd.f32 %v1616, %v1704
      %v1706 = vpop.f32.mrf.mxu0
      %v1707 = vadd.f32 %v1618, %v1706
      %1708 = vmatmul.bf16.gmra.mxu0 %v752
      %v1709 = vpop.f32.mrf.mxu0
      %v1710 = vadd.f32 %v1621, %v1709
      %v1711 = vpop.f32.mrf.mxu0
      %v1712 = vadd.f32 %v1623, %v1711
      %1713 = vmatmul.bf16.gmra.mxu0 %v764
      %v1714 = vpop.f32.mrf.mxu0
      %v1715 = vadd.f32 %v1626, %v1714
      %v1716 = vpop.f32.mrf.mxu0
      %v1717 = vadd.f32 %v1628, %v1716
      %1718 = vmatmul.bf16.gmra.mxu0 %v776
      %v1719 = vpop.f32.mrf.mxu0
      %v1720 = vadd.f32 %v1631, %v1719
      %v1721 = vpop.f32.mrf.mxu0
      %v1722 = vadd.f32 %v1633, %v1721
      %1723 = vmatmul.bf16.gmra.mxu0 %v788
      %v1724 = vpop.f32.mrf.mxu0
      %v1725 = vadd.f32 %v1636, %v1724
      %v1726 = vpop.f32.mrf.mxu0
      %v1727 = vadd.f32 %v1638, %v1726
      %1728 = vmatmul.bf16.gmra.mxu0 %v800
      %v1729 = vpop.f32.mrf.mxu0
      %v1730 = vadd.f32 %v1641, %v1729
      %v1731 = vpop.f32.mrf.mxu0
      %v1732 = vadd.f32 %v1643, %v1731
      %1733 = vmatmul.bf16.gmra.mxu0 %v812
      %v1734 = vpop.f32.mrf.mxu0
      %v1735 = vadd.f32 %v1646, %v1734
      %v1736 = vpop.f32.mrf.mxu0
      %v1737 = vadd.f32 %v1648, %v1736
      %1738 = vmatmul.bf16.gmra.mxu0 %v824
      %v1739 = vpop.f32.mrf.mxu0
      %v1740 = vadd.f32 %v1651, %v1739
      %v1741 = vpop.f32.mrf.mxu0
      %v1742 = vadd.f32 %v1653, %v1741
      %1743 = vmatmul.bf16.gmra.mxu0 %v836
      %v1744 = vpop.f32.mrf.mxu0
      %v1745 = vadd.f32 %v1656, %v1744
      %v1746 = vpop.f32.mrf.mxu0
      %v1747 = vadd.f32 %v1658, %v1746
      %1748 = vmatmul.bf16.gmra.mxu0 %v848
      %v1749 = vpop.f32.mrf.mxu0
      %v1750 = vadd.f32 %v1661, %v1749
      %v1751 = vpop.f32.mrf.mxu0
      %v1752 = vadd.f32 %v1663, %v1751
      %1753 = vmatmul.bf16.gmra.mxu0 %v860
      %v1754 = vpop.f32.mrf.mxu0
      %v1755 = vadd.f32 %v1666, %v1754
      %v1756 = vpop.f32.mrf.mxu0
      %v1757 = vadd.f32 %v1668, %v1756
      %1758 = vmatmul.bf16.gmra.mxu0 %v872
      %v1759 = vpop.f32.mrf.mxu0
      %v1760 = vadd.f32 %v1671, %v1759
      %v1761 = vpop.f32.mrf.mxu0
      %v1762 = vadd.f32 %v1673, %v1761
      %1763 = vmatmul.bf16.gmra.mxu0 %v884
      %v1764 = vpop.f32.mrf.mxu0
      %v1765 = vadd.f32 %v1676, %v1764
      %v1766 = vpop.f32.mrf.mxu0
      %v1767 = vadd.f32 %v1678, %v1766
      %1768 = vdwg.mxu0
      %1769 = vmatpush.bf16.msra.mxu0 %v1470
      %1770 = vmatpush.bf16.msra.mxu0 %v1469
      %1771 = vmatpush.bf16.msra.mxu0 %v1468
      %1772 = vmatpush.bf16.msra.mxu0 %v1467
      %1773 = vmatpush.bf16.msra.mxu0 %v1466
      %1774 = vmatpush.bf16.msra.mxu0 %v1465
      %1775 = vmatpush.bf16.msra.mxu0 %v1464
      %1776 = vmatpush.bf16.msra.mxu0 %v1463
      %1777 = vmatmul.bf16.gmra.mxu0 %v934
      %v1778 = vpop.f32.mrf.mxu0
      %v1779 = vadd.f32 %v1690, %v1778
      %v1780 = vpop.f32.mrf.mxu0
      %v1781 = vadd.f32 %v1692, %v1780
      %1782 = vmatmul.bf16.gmra.mxu0 %v937
      %v1783 = vpop.f32.mrf.mxu0
      %v1784 = vadd.f32 %v1695, %v1783
      %v1785 = vpop.f32.mrf.mxu0
      %v1786 = vadd.f32 %v1697, %v1785
      %1787 = vmatmul.bf16.gmra.mxu0 %v940
      %v1788 = vpop.f32.mrf.mxu0
      %v1789 = vadd.f32 %v1700, %v1788
      %v1790 = vpop.f32.mrf.mxu0
      %v1791 = vadd.f32 %v1702, %v1790
      %1792 = vmatmul.bf16.gmra.mxu0 %v943
      %v1793 = vpop.f32.mrf.mxu0
      %v1794 = vadd.f32 %v1705, %v1793
      %v1795 = vpop.f32.mrf.mxu0
      %v1796 = vadd.f32 %v1707, %v1795
      %1797 = vmatmul.bf16.gmra.mxu0 %v946
      %v1798 = vpop.f32.mrf.mxu0
      %v1799 = vadd.f32 %v1710, %v1798
      %v1800 = vpop.f32.mrf.mxu0
      %v1801 = vadd.f32 %v1712, %v1800
      %1802 = vmatmul.bf16.gmra.mxu0 %v949
      %v1803 = vpop.f32.mrf.mxu0
      %v1804 = vadd.f32 %v1715, %v1803
      %v1805 = vpop.f32.mrf.mxu0
      %v1806 = vadd.f32 %v1717, %v1805
      %1807 = vmatmul.bf16.gmra.mxu0 %v952
      %v1808 = vpop.f32.mrf.mxu0
      %v1809 = vadd.f32 %v1720, %v1808
      %v1810 = vpop.f32.mrf.mxu0
      %v1811 = vadd.f32 %v1722, %v1810
      %1812 = vmatmul.bf16.gmra.mxu0 %v955
      %v1813 = vpop.f32.mrf.mxu0
      %v1814 = vadd.f32 %v1725, %v1813
      %v1815 = vpop.f32.mrf.mxu0
      %v1816 = vadd.f32 %v1727, %v1815
      %1817 = vmatmul.bf16.gmra.mxu0 %v958
      %v1818 = vpop.f32.mrf.mxu0
      %v1819 = vadd.f32 %v1730, %v1818
      %v1820 = vpop.f32.mrf.mxu0
      %v1821 = vadd.f32 %v1732, %v1820
      %1822 = vmatmul.bf16.gmra.mxu0 %v961
      %v1823 = vpop.f32.mrf.mxu0
      %v1824 = vadd.f32 %v1735, %v1823
      %v1825 = vpop.f32.mrf.mxu0
      %v1826 = vadd.f32 %v1737, %v1825
      %1827 = vmatmul.bf16.gmra.mxu0 %v964
      %v1828 = vpop.f32.mrf.mxu0
      %v1829 = vadd.f32 %v1740, %v1828
      %v1830 = vpop.f32.mrf.mxu0
      %v1831 = vadd.f32 %v1742, %v1830
      %1832 = vmatmul.bf16.gmra.mxu0 %v967
      %v1833 = vpop.f32.mrf.mxu0
      %v1834 = vadd.f32 %v1745, %v1833
      %v1835 = vpop.f32.mrf.mxu0
      %v1836 = vadd.f32 %v1747, %v1835
      %1837 = vmatmul.bf16.gmra.mxu0 %v970
      %v1838 = vpop.f32.mrf.mxu0
      %v1839 = vadd.f32 %v1750, %v1838
      %v1840 = vpop.f32.mrf.mxu0
      %v1841 = vadd.f32 %v1752, %v1840
      %1842 = vmatmul.bf16.gmra.mxu0 %v973
      %v1843 = vpop.f32.mrf.mxu0
      %v1844 = vadd.f32 %v1755, %v1843
      %v1845 = vpop.f32.mrf.mxu0
      %v1846 = vadd.f32 %v1757, %v1845
      %1847 = vmatmul.bf16.gmra.mxu0 %v976
      %v1848 = vpop.f32.mrf.mxu0
      %v1849 = vadd.f32 %v1760, %v1848
      %v1850 = vpop.f32.mrf.mxu0
      %v1851 = vadd.f32 %v1762, %v1850
      %1852 = vmatmul.bf16.gmra.mxu0 %v979
      %v1853 = vpop.f32.mrf.mxu0
      %v1854 = vadd.f32 %v1765, %v1853
      %v1855 = vpop.f32.mrf.mxu0
      %v1856 = vadd.f32 %v1767, %v1855
      %1857 = vdwg.mxu0
      %1858 = vmatpush.bf16.msra.mxu0 %v1478
      %1859 = vmatpush.bf16.msra.mxu0 %v1477
      %1860 = vmatpush.bf16.msra.mxu0 %v1476
      %1861 = vmatpush.bf16.msra.mxu0 %v1475
      %1862 = vmatpush.bf16.msra.mxu0 %v1474
      %1863 = vmatpush.bf16.msra.mxu0 %v1473
      %1864 = vmatpush.bf16.msra.mxu0 %v1472
      %1865 = vmatpush.bf16.msra.mxu0 %v1471
      %1866 = vmatmul.bf16.gmra.mxu0 %v664
      %v1867 = vpop.f32.mrf.mxu0
      %v1868 = vadd.f32 %v1779, %v1867
      %v1869 = vpop.f32.mrf.mxu0
      %v1870 = vadd.f32 %v1781, %v1869
      %1871 = vmatmul.bf16.gmra.mxu0 %v665
      %v1872 = vpop.f32.mrf.mxu0
      %v1873 = vadd.f32 %v1784, %v1872
      %v1874 = vpop.f32.mrf.mxu0
      %v1875 = vadd.f32 %v1786, %v1874
      %1876 = vmatmul.bf16.gmra.mxu0 %v666
      %v1877 = vpop.f32.mrf.mxu0
      %v1878 = vadd.f32 %v1789, %v1877
      %v1879 = vpop.f32.mrf.mxu0
      %v1880 = vadd.f32 %v1791, %v1879
      %1881 = vmatmul.bf16.gmra.mxu0 %v667
      %v1882 = vpop.f32.mrf.mxu0
      %v1883 = vadd.f32 %v1794, %v1882
      %v1884 = vpop.f32.mrf.mxu0
      %v1885 = vadd.f32 %v1796, %v1884
      %1886 = vmatmul.bf16.gmra.mxu0 %v668
      %v1887 = vpop.f32.mrf.mxu0
      %v1888 = vadd.f32 %v1799, %v1887
      %v1889 = vpop.f32.mrf.mxu0
      %v1890 = vadd.f32 %v1801, %v1889
      %1891 = vmatmul.bf16.gmra.mxu0 %v669
      %v1892 = vpop.f32.mrf.mxu0
      %v1893 = vadd.f32 %v1804, %v1892
      %v1894 = vpop.f32.mrf.mxu0
      %v1895 = vadd.f32 %v1806, %v1894
      %1896 = vmatmul.bf16.gmra.mxu0 %v670
      %v1897 = vpop.f32.mrf.mxu0
      %v1898 = vadd.f32 %v1809, %v1897
      %v1899 = vpop.f32.mrf.mxu0
      %v1900 = vadd.f32 %v1811, %v1899
      %1901 = vmatmul.bf16.gmra.mxu0 %v671
      %v1902 = vpop.f32.mrf.mxu0
      %v1903 = vadd.f32 %v1814, %v1902
      %v1904 = vpop.f32.mrf.mxu0
      %v1905 = vadd.f32 %v1816, %v1904
      %1906 = vmatmul.bf16.gmra.mxu0 %v672
      %v1907 = vpop.f32.mrf.mxu0
      %v1908 = vadd.f32 %v1819, %v1907
      %v1909 = vpop.f32.mrf.mxu0
      %v1910 = vadd.f32 %v1821, %v1909
      %1911 = vmatmul.bf16.gmra.mxu0 %v673
      %v1912 = vpop.f32.mrf.mxu0
      %v1913 = vadd.f32 %v1824, %v1912
      %v1914 = vpop.f32.mrf.mxu0
      %v1915 = vadd.f32 %v1826, %v1914
      %1916 = vmatmul.bf16.gmra.mxu0 %v674
      %v1917 = vpop.f32.mrf.mxu0
      %v1918 = vadd.f32 %v1829, %v1917
      %v1919 = vpop.f32.mrf.mxu0
      %v1920 = vadd.f32 %v1831, %v1919
      %1921 = vmatmul.bf16.gmra.mxu0 %v675
      %v1922 = vpop.f32.mrf.mxu0
      %v1923 = vadd.f32 %v1834, %v1922
      %v1924 = vpop.f32.mrf.mxu0
      %v1925 = vadd.f32 %v1836, %v1924
      %1926 = vmatmul.bf16.gmra.mxu0 %v676
      %v1927 = vpop.f32.mrf.mxu0
      %v1928 = vadd.f32 %v1839, %v1927
      %v1929 = vpop.f32.mrf.mxu0
      %v1930 = vadd.f32 %v1841, %v1929
      %1931 = vmatmul.bf16.gmra.mxu0 %v677
      %v1932 = vpop.f32.mrf.mxu0
      %v1933 = vadd.f32 %v1844, %v1932
      %v1934 = vpop.f32.mrf.mxu0
      %v1935 = vadd.f32 %v1846, %v1934
      %1936 = vmatmul.bf16.gmra.mxu0 %v678
      %v1937 = vpop.f32.mrf.mxu0
      %v1938 = vadd.f32 %v1849, %v1937
      %v1939 = vpop.f32.mrf.mxu0
      %v1940 = vadd.f32 %v1851, %v1939
      %1941 = vmatmul.bf16.gmra.mxu0 %v679
      %v1942 = vpop.f32.mrf.mxu0
      %v1943 = vadd.f32 %v1854, %v1942
      %v1944 = vpop.f32.mrf.mxu0
      %v1945 = vadd.f32 %v1856, %v1944
      %1946 = vdwg.mxu0
      %1947 = vmatpush.bf16.msra.mxu0 %v1486
      %1948 = vmatpush.bf16.msra.mxu0 %v1485
      %1949 = vmatpush.bf16.msra.mxu0 %v1484
      %1950 = vmatpush.bf16.msra.mxu0 %v1483
      %1951 = vmatpush.bf16.msra.mxu0 %v1482
      %1952 = vmatpush.bf16.msra.mxu0 %v1481
      %1953 = vmatpush.bf16.msra.mxu0 %v1480
      %1954 = vmatpush.bf16.msra.mxu0 %v1479
      %1955 = vmatmul.bf16.gmra.mxu0 %v716
      %v1956 = vpop.f32.mrf.mxu0
      %v1957 = vadd.f32 %v1868, %v1956
      %v1958 = vpop.f32.mrf.mxu0
      %v1959 = vadd.f32 %v1870, %v1958
      %1960 = vmatmul.bf16.gmra.mxu0 %v728
      %v1961 = vpop.f32.mrf.mxu0
      %v1962 = vadd.f32 %v1873, %v1961
      %v1963 = vpop.f32.mrf.mxu0
      %v1964 = vadd.f32 %v1875, %v1963
      %1965 = vmatmul.bf16.gmra.mxu0 %v740
      %v1966 = vpop.f32.mrf.mxu0
      %v1967 = vadd.f32 %v1878, %v1966
      %v1968 = vpop.f32.mrf.mxu0
      %v1969 = vadd.f32 %v1880, %v1968
      %1970 = vmatmul.bf16.gmra.mxu0 %v752
      %v1971 = vpop.f32.mrf.mxu0
      %v1972 = vadd.f32 %v1883, %v1971
      %v1973 = vpop.f32.mrf.mxu0
      %v1974 = vadd.f32 %v1885, %v1973
      %1975 = vmatmul.bf16.gmra.mxu0 %v764
      %v1976 = vpop.f32.mrf.mxu0
      %v1977 = vadd.f32 %v1888, %v1976
      %v1978 = vpop.f32.mrf.mxu0
      %v1979 = vadd.f32 %v1890, %v1978
      %1980 = vmatmul.bf16.gmra.mxu0 %v776
      %v1981 = vpop.f32.mrf.mxu0
      %v1982 = vadd.f32 %v1893, %v1981
      %v1983 = vpop.f32.mrf.mxu0
      %v1984 = vadd.f32 %v1895, %v1983
      %1985 = vmatmul.bf16.gmra.mxu0 %v788
      %v1986 = vpop.f32.mrf.mxu0
      %v1987 = vadd.f32 %v1898, %v1986
      %v1988 = vpop.f32.mrf.mxu0
      %v1989 = vadd.f32 %v1900, %v1988
      %1990 = vmatmul.bf16.gmra.mxu0 %v800
      %v1991 = vpop.f32.mrf.mxu0
      %v1992 = vadd.f32 %v1903, %v1991
      %v1993 = vpop.f32.mrf.mxu0
      %v1994 = vadd.f32 %v1905, %v1993
      %1995 = vmatmul.bf16.gmra.mxu0 %v812
      %v1996 = vpop.f32.mrf.mxu0
      %v1997 = vadd.f32 %v1908, %v1996
      %v1998 = vpop.f32.mrf.mxu0
      %v1999 = vadd.f32 %v1910, %v1998
      %2000 = vmatmul.bf16.gmra.mxu0 %v824
      %v2001 = vpop.f32.mrf.mxu0
      %v2002 = vadd.f32 %v1913, %v2001
      %v2003 = vpop.f32.mrf.mxu0
      %v2004 = vadd.f32 %v1915, %v2003
      %2005 = vmatmul.bf16.gmra.mxu0 %v836
      %v2006 = vpop.f32.mrf.mxu0
      %v2007 = vadd.f32 %v1918, %v2006
      %v2008 = vpop.f32.mrf.mxu0
      %v2009 = vadd.f32 %v1920, %v2008
      %2010 = vmatmul.bf16.gmra.mxu0 %v848
      %v2011 = vpop.f32.mrf.mxu0
      %v2012 = vadd.f32 %v1923, %v2011
      %v2013 = vpop.f32.mrf.mxu0
      %v2014 = vadd.f32 %v1925, %v2013
      %2015 = vmatmul.bf16.gmra.mxu0 %v860
      %v2016 = vpop.f32.mrf.mxu0
      %v2017 = vadd.f32 %v1928, %v2016
      %v2018 = vpop.f32.mrf.mxu0
      %v2019 = vadd.f32 %v1930, %v2018
      %2020 = vmatmul.bf16.gmra.mxu0 %v872
      %v2021 = vpop.f32.mrf.mxu0
      %v2022 = vadd.f32 %v1933, %v2021
      %v2023 = vpop.f32.mrf.mxu0
      %v2024 = vadd.f32 %v1935, %v2023
      %2025 = vmatmul.bf16.gmra.mxu0 %v884
      %v2026 = vpop.f32.mrf.mxu0
      %v2027 = vadd.f32 %v1938, %v2026
      %v2028 = vpop.f32.mrf.mxu0
      %v2029 = vadd.f32 %v1940, %v2028
      %2030 = vmatmul.bf16.gmra.mxu0 %v1007
      %v2031 = vpop.f32.mrf.mxu0
      %v2032 = vadd.f32 %v1943, %v2031
      %v2033 = vpop.f32.mrf.mxu0
      %v2034 = vadd.f32 %v1945, %v2033
      %2035 = vdwg.mxu0
      %2036 = vmatpush.bf16.msra.mxu0 %v1494
      %2037 = vmatpush.bf16.msra.mxu0 %v1493
      %2038 = vmatpush.bf16.msra.mxu0 %v1492
      %2039 = vmatpush.bf16.msra.mxu0 %v1491
      %2040 = vmatpush.bf16.msra.mxu0 %v1490
      %2041 = vmatpush.bf16.msra.mxu0 %v1489
      %2042 = vmatpush.bf16.msra.mxu0 %v1488
      %2043 = vmatpush.bf16.msra.mxu0 %v1487
      %2044 = vmatmul.bf16.gmra.mxu0 %v937
      %v2045 = vpop.f32.mrf.mxu0
      %v2046 = vadd.f32 %v1957, %v2045
      %v2047 = vpop.f32.mrf.mxu0
      %v2048 = vadd.f32 %v1959, %v2047
      %2049 = vmatmul.bf16.gmra.mxu0 %v940
      %v2050 = vpop.f32.mrf.mxu0
      %v2051 = vadd.f32 %v1962, %v2050
      %v2052 = vpop.f32.mrf.mxu0
      %v2053 = vadd.f32 %v1964, %v2052
      %2054 = vmatmul.bf16.gmra.mxu0 %v943
      %v2055 = vpop.f32.mrf.mxu0
      %v2056 = vadd.f32 %v1967, %v2055
      %v2057 = vpop.f32.mrf.mxu0
      %v2058 = vadd.f32 %v1969, %v2057
      %2059 = vmatmul.bf16.gmra.mxu0 %v946
      %v2060 = vpop.f32.mrf.mxu0
      %v2061 = vadd.f32 %v1972, %v2060
      %v2062 = vpop.f32.mrf.mxu0
      %v2063 = vadd.f32 %v1974, %v2062
      %2064 = vmatmul.bf16.gmra.mxu0 %v949
      %v2065 = vpop.f32.mrf.mxu0
      %v2066 = vadd.f32 %v1977, %v2065
      %v2067 = vpop.f32.mrf.mxu0
      %v2068 = vadd.f32 %v1979, %v2067
      %2069 = vmatmul.bf16.gmra.mxu0 %v952
      %v2070 = vpop.f32.mrf.mxu0
      %v2071 = vadd.f32 %v1982, %v2070
      %v2072 = vpop.f32.mrf.mxu0
      %v2073 = vadd.f32 %v1984, %v2072
      %2074 = vmatmul.bf16.gmra.mxu0 %v955
      %v2075 = vpop.f32.mrf.mxu0
      %v2076 = vadd.f32 %v1987, %v2075
      %v2077 = vpop.f32.mrf.mxu0
      %v2078 = vadd.f32 %v1989, %v2077
      %2079 = vmatmul.bf16.gmra.mxu0 %v958
      %v2080 = vpop.f32.mrf.mxu0
      %v2081 = vadd.f32 %v1992, %v2080
      %v2082 = vpop.f32.mrf.mxu0
      %v2083 = vadd.f32 %v1994, %v2082
      %2084 = vmatmul.bf16.gmra.mxu0 %v961
      %v2085 = vpop.f32.mrf.mxu0
      %v2086 = vadd.f32 %v1997, %v2085
      %v2087 = vpop.f32.mrf.mxu0
      %v2088 = vadd.f32 %v1999, %v2087
      %2089 = vmatmul.bf16.gmra.mxu0 %v964
      %v2090 = vpop.f32.mrf.mxu0
      %v2091 = vadd.f32 %v2002, %v2090
      %v2092 = vpop.f32.mrf.mxu0
      %v2093 = vadd.f32 %v2004, %v2092
      %2094 = vmatmul.bf16.gmra.mxu0 %v967
      %v2095 = vpop.f32.mrf.mxu0
      %v2096 = vadd.f32 %v2007, %v2095
      %v2097 = vpop.f32.mrf.mxu0
      %v2098 = vadd.f32 %v2009, %v2097
      %2099 = vmatmul.bf16.gmra.mxu0 %v970
      %v2100 = vpop.f32.mrf.mxu0
      %v2101 = vadd.f32 %v2012, %v2100
      %v2102 = vpop.f32.mrf.mxu0
      %v2103 = vadd.f32 %v2014, %v2102
      %2104 = vmatmul.bf16.gmra.mxu0 %v973
      %v2105 = vpop.f32.mrf.mxu0
      %v2106 = vadd.f32 %v2017, %v2105
      %v2107 = vpop.f32.mrf.mxu0
      %v2108 = vadd.f32 %v2019, %v2107
      %2109 = vmatmul.bf16.gmra.mxu0 %v976
      %v2110 = vpop.f32.mrf.mxu0
      %v2111 = vadd.f32 %v2022, %v2110
      %v2112 = vpop.f32.mrf.mxu0
      %v2113 = vadd.f32 %v2024, %v2112
      %2114 = vmatmul.bf16.gmra.mxu0 %v979
      %v2115 = vpop.f32.mrf.mxu0
      %v2116 = vadd.f32 %v2027, %v2115
      %v2117 = vpop.f32.mrf.mxu0
      %v2118 = vadd.f32 %v2029, %v2117
      %2119 = vmatmul.bf16.gmra.mxu0 %v1013
      %v2120 = vpop.f32.mrf.mxu0
      %v2121 = vadd.f32 %v2032, %v2120
      %v2122 = vpop.f32.mrf.mxu0
      %v2123 = vadd.f32 %v2034, %v2122
      %2124 = vdwg.mxu0
      %2125 = vmatpush.bf16.msra.mxu0 %v1502
      %2126 = vmatpush.bf16.msra.mxu0 %v1501
      %2127 = vmatpush.bf16.msra.mxu0 %v1500
      %2128 = vmatpush.bf16.msra.mxu0 %v1499
      %2129 = vmatpush.bf16.msra.mxu0 %v1498
      %2130 = vmatpush.bf16.msra.mxu0 %v1497
      %2131 = vmatpush.bf16.msra.mxu0 %v1496
      %2132 = vmatpush.bf16.msra.mxu0 %v1495
      %2133 = vmatmul.bf16.gmra.mxu0 %v665
      %v2134 = vpop.f32.mrf.mxu0
      %v2135 = vadd.f32 %v2046, %v2134
      %v2136 = vpop.f32.mrf.mxu0
      %v2137 = vadd.f32 %v2048, %v2136
      %2138 = vmatmul.bf16.gmra.mxu0 %v666
      %v2139 = vpop.f32.mrf.mxu0
      %v2140 = vadd.f32 %v2051, %v2139
      %v2141 = vpop.f32.mrf.mxu0
      %v2142 = vadd.f32 %v2053, %v2141
      %2143 = vmatmul.bf16.gmra.mxu0 %v667
      %v2144 = vpop.f32.mrf.mxu0
      %v2145 = vadd.f32 %v2056, %v2144
      %v2146 = vpop.f32.mrf.mxu0
      %v2147 = vadd.f32 %v2058, %v2146
      %2148 = vmatmul.bf16.gmra.mxu0 %v668
      %v2149 = vpop.f32.mrf.mxu0
      %v2150 = vadd.f32 %v2061, %v2149
      %v2151 = vpop.f32.mrf.mxu0
      %v2152 = vadd.f32 %v2063, %v2151
      %2153 = vmatmul.bf16.gmra.mxu0 %v669
      %v2154 = vpop.f32.mrf.mxu0
      %v2155 = vadd.f32 %v2066, %v2154
      %v2156 = vpop.f32.mrf.mxu0
      %v2157 = vadd.f32 %v2068, %v2156
      %2158 = vmatmul.bf16.gmra.mxu0 %v670
      %v2159 = vpop.f32.mrf.mxu0
      %v2160 = vadd.f32 %v2071, %v2159
      %v2161 = vpop.f32.mrf.mxu0
      %v2162 = vadd.f32 %v2073, %v2161
      %2163 = vmatmul.bf16.gmra.mxu0 %v671
      %v2164 = vpop.f32.mrf.mxu0
      %v2165 = vadd.f32 %v2076, %v2164
      %v2166 = vpop.f32.mrf.mxu0
      %v2167 = vadd.f32 %v2078, %v2166
      %2168 = vmatmul.bf16.gmra.mxu0 %v672
      %v2169 = vpop.f32.mrf.mxu0
      %v2170 = vadd.f32 %v2081, %v2169
      %v2171 = vpop.f32.mrf.mxu0
      %v2172 = vadd.f32 %v2083, %v2171
      %2173 = vmatmul.bf16.gmra.mxu0 %v673
      %v2174 = vpop.f32.mrf.mxu0
      %v2175 = vadd.f32 %v2086, %v2174
      %v2176 = vpop.f32.mrf.mxu0
      %v2177 = vadd.f32 %v2088, %v2176
      %2178 = vmatmul.bf16.gmra.mxu0 %v674
      %v2179 = vpop.f32.mrf.mxu0
      %v2180 = vadd.f32 %v2091, %v2179
      %v2181 = vpop.f32.mrf.mxu0
      %v2182 = vadd.f32 %v2093, %v2181
      %2183 = vmatmul.bf16.gmra.mxu0 %v675
      %v2184 = vpop.f32.mrf.mxu0
      %v2185 = vadd.f32 %v2096, %v2184
      %v2186 = vpop.f32.mrf.mxu0
      %v2187 = vadd.f32 %v2098, %v2186
      %2188 = vmatmul.bf16.gmra.mxu0 %v676
      %v2189 = vpop.f32.mrf.mxu0
      %v2190 = vadd.f32 %v2101, %v2189
      %v2191 = vpop.f32.mrf.mxu0
      %v2192 = vadd.f32 %v2103, %v2191
      %2193 = vmatmul.bf16.gmra.mxu0 %v677
      %v2194 = vpop.f32.mrf.mxu0
      %v2195 = vadd.f32 %v2106, %v2194
      %v2196 = vpop.f32.mrf.mxu0
      %v2197 = vadd.f32 %v2108, %v2196
      %2198 = vmatmul.bf16.gmra.mxu0 %v678
      %v2199 = vpop.f32.mrf.mxu0
      %v2200 = vadd.f32 %v2111, %v2199
      %v2201 = vpop.f32.mrf.mxu0
      %v2202 = vadd.f32 %v2113, %v2201
      %2203 = vmatmul.bf16.gmra.mxu0 %v679
      %v2204 = vpop.f32.mrf.mxu0
      %v2205 = vadd.f32 %v2116, %v2204
      %v2206 = vpop.f32.mrf.mxu0
      %v2207 = vadd.f32 %v2118, %v2206
      %2208 = vmatmul.bf16.gmra.mxu0 0
      %v2209 = vpop.f32.mrf.mxu0
      %v2210 = vadd.f32 %v2121, %v2209
      %v2211 = vpop.f32.mrf.mxu0
      %v2212 = vadd.f32 %v2123, %v2211
      %2213 = vdwg.mxu0
      %2214 = vmatpush.bf16.msra.mxu0 %v1510
      %2215 = vmatpush.bf16.msra.mxu0 %v1509
      %2216 = vmatpush.bf16.msra.mxu0 %v1508
      %2217 = vmatpush.bf16.msra.mxu0 %v1507
      %2218 = vmatpush.bf16.msra.mxu0 %v1506
      %2219 = vmatpush.bf16.msra.mxu0 %v1505
      %2220 = vmatpush.bf16.msra.mxu0 %v1504
      %2221 = vmatpush.bf16.msra.mxu0 %v1503
      %2222 = vmatmul.bf16.gmra.mxu0 %v728
      %v2223 = vpop.f32.mrf.mxu0
      %v2224 = vadd.f32 %v2135, %v2223
      %v2225 = vpop.f32.mrf.mxu0
      %v2226 = vadd.f32 %v2137, %v2225
      %2227 = vmatmul.bf16.gmra.mxu0 %v740
      %v2228 = vpop.f32.mrf.mxu0
      %v2229 = vadd.f32 %v2140, %v2228
      %v2230 = vpop.f32.mrf.mxu0
      %v2231 = vadd.f32 %v2142, %v2230
      %2232 = vmatmul.bf16.gmra.mxu0 %v752
      %v2233 = vpop.f32.mrf.mxu0
      %v2234 = vadd.f32 %v2145, %v2233
      %v2235 = vpop.f32.mrf.mxu0
      %v2236 = vadd.f32 %v2147, %v2235
      %2237 = vmatmul.bf16.gmra.mxu0 %v764
      %v2238 = vpop.f32.mrf.mxu0
      %v2239 = vadd.f32 %v2150, %v2238
      %v2240 = vpop.f32.mrf.mxu0
      %v2241 = vadd.f32 %v2152, %v2240
      %2242 = vmatmul.bf16.gmra.mxu0 %v776
      %v2243 = vpop.f32.mrf.mxu0
      %v2244 = vadd.f32 %v2155, %v2243
      %v2245 = vpop.f32.mrf.mxu0
      %v2246 = vadd.f32 %v2157, %v2245
      %2247 = vmatmul.bf16.gmra.mxu0 %v788
      %v2248 = vpop.f32.mrf.mxu0
      %v2249 = vadd.f32 %v2160, %v2248
      %v2250 = vpop.f32.mrf.mxu0
      %v2251 = vadd.f32 %v2162, %v2250
      %2252 = vmatmul.bf16.gmra.mxu0 %v800
      %v2253 = vpop.f32.mrf.mxu0
      %v2254 = vadd.f32 %v2165, %v2253
      %v2255 = vpop.f32.mrf.mxu0
      %v2256 = vadd.f32 %v2167, %v2255
      %2257 = vmatmul.bf16.gmra.mxu0 %v812
      %v2258 = vpop.f32.mrf.mxu0
      %v2259 = vadd.f32 %v2170, %v2258
      %v2260 = vpop.f32.mrf.mxu0
      %v2261 = vadd.f32 %v2172, %v2260
      %2262 = vmatmul.bf16.gmra.mxu0 %v824
      %v2263 = vpop.f32.mrf.mxu0
      %v2264 = vadd.f32 %v2175, %v2263
      %v2265 = vpop.f32.mrf.mxu0
      %v2266 = vadd.f32 %v2177, %v2265
      %2267 = vmatmul.bf16.gmra.mxu0 %v836
      %v2268 = vpop.f32.mrf.mxu0
      %v2269 = vadd.f32 %v2180, %v2268
      %v2270 = vpop.f32.mrf.mxu0
      %v2271 = vadd.f32 %v2182, %v2270
      %2272 = vmatmul.bf16.gmra.mxu0 %v848
      %v2273 = vpop.f32.mrf.mxu0
      %v2274 = vadd.f32 %v2185, %v2273
      %v2275 = vpop.f32.mrf.mxu0
      %v2276 = vadd.f32 %v2187, %v2275
      %2277 = vmatmul.bf16.gmra.mxu0 %v860
      %v2278 = vpop.f32.mrf.mxu0
      %v2279 = vadd.f32 %v2190, %v2278
      %v2280 = vpop.f32.mrf.mxu0
      %v2281 = vadd.f32 %v2192, %v2280
      %2282 = vmatmul.bf16.gmra.mxu0 %v872
      %v2283 = vpop.f32.mrf.mxu0
      %v2284 = vadd.f32 %v2195, %v2283
      %v2285 = vpop.f32.mrf.mxu0
      %v2286 = vadd.f32 %v2197, %v2285
      %2287 = vmatmul.bf16.gmra.mxu0 %v884
      %v2288 = vpop.f32.mrf.mxu0
      %v2289 = vadd.f32 %v2200, %v2288
      %v2290 = vpop.f32.mrf.mxu0
      %v2291 = vadd.f32 %v2202, %v2290
      %2292 = vmatmul.bf16.gmra.mxu0 %v1007
      %v2293 = vpop.f32.mrf.mxu0
      %v2294 = vadd.f32 %v2205, %v2293
      %v2295 = vpop.f32.mrf.mxu0
      %v2296 = vadd.f32 %v2207, %v2295
      %2297 = vmatmul.bf16.gmra.mxu0 %v704
      %v2298 = vpop.f32.mrf.mxu0
      %v2299 = vadd.f32 %v2210, %v2298
      %v2300 = vpop.f32.mrf.mxu0
      %v2301 = vadd.f32 %v2212, %v2300
      %2302 = vdwg.mxu0
      %2303 = vmatpush.bf16.msra.mxu0 %v1518
      %2304 = vmatpush.bf16.msra.mxu0 %v1517
      %2305 = vmatpush.bf16.msra.mxu0 %v1516
      %2306 = vmatpush.bf16.msra.mxu0 %v1515
      %2307 = vmatpush.bf16.msra.mxu0 %v1514
      %2308 = vmatpush.bf16.msra.mxu0 %v1513
      %2309 = vmatpush.bf16.msra.mxu0 %v1512
      %2310 = vmatpush.bf16.msra.mxu0 %v1511
      %2311 = vmatmul.bf16.gmra.mxu0 %v940
      %v2312 = vpop.f32.mrf.mxu0
      %v2313 = vadd.f32 %v2224, %v2312
      %v2314 = vpop.f32.mrf.mxu0
      %v2315 = vadd.f32 %v2226, %v2314
      %2316 = vmatmul.bf16.gmra.mxu0 %v943
      %v2317 = vpop.f32.mrf.mxu0
      %v2318 = vadd.f32 %v2229, %v2317
      %v2319 = vpop.f32.mrf.mxu0
      %v2320 = vadd.f32 %v2231, %v2319
      %2321 = vmatmul.bf16.gmra.mxu0 %v946
      %v2322 = vpop.f32.mrf.mxu0
      %v2323 = vadd.f32 %v2234, %v2322
      %v2324 = vpop.f32.mrf.mxu0
      %v2325 = vadd.f32 %v2236, %v2324
      %2326 = vmatmul.bf16.gmra.mxu0 %v949
      %v2327 = vpop.f32.mrf.mxu0
      %v2328 = vadd.f32 %v2239, %v2327
      %v2329 = vpop.f32.mrf.mxu0
      %v2330 = vadd.f32 %v2241, %v2329
      %2331 = vmatmul.bf16.gmra.mxu0 %v952
      %v2332 = vpop.f32.mrf.mxu0
      %v2333 = vadd.f32 %v2244, %v2332
      %v2334 = vpop.f32.mrf.mxu0
      %v2335 = vadd.f32 %v2246, %v2334
      %2336 = vmatmul.bf16.gmra.mxu0 %v955
      %v2337 = vpop.f32.mrf.mxu0
      %v2338 = vadd.f32 %v2249, %v2337
      %v2339 = vpop.f32.mrf.mxu0
      %v2340 = vadd.f32 %v2251, %v2339
      %2341 = vmatmul.bf16.gmra.mxu0 %v958
      %v2342 = vpop.f32.mrf.mxu0
      %v2343 = vadd.f32 %v2254, %v2342
      %v2344 = vpop.f32.mrf.mxu0
      %v2345 = vadd.f32 %v2256, %v2344
      %2346 = vmatmul.bf16.gmra.mxu0 %v961
      %v2347 = vpop.f32.mrf.mxu0
      %v2348 = vadd.f32 %v2259, %v2347
      %v2349 = vpop.f32.mrf.mxu0
      %v2350 = vadd.f32 %v2261, %v2349
      %2351 = vmatmul.bf16.gmra.mxu0 %v964
      %v2352 = vpop.f32.mrf.mxu0
      %v2353 = vadd.f32 %v2264, %v2352
      %v2354 = vpop.f32.mrf.mxu0
      %v2355 = vadd.f32 %v2266, %v2354
      %2356 = vmatmul.bf16.gmra.mxu0 %v967
      %v2357 = vpop.f32.mrf.mxu0
      %v2358 = vadd.f32 %v2269, %v2357
      %v2359 = vpop.f32.mrf.mxu0
      %v2360 = vadd.f32 %v2271, %v2359
      %2361 = vmatmul.bf16.gmra.mxu0 %v970
      %v2362 = vpop.f32.mrf.mxu0
      %v2363 = vadd.f32 %v2274, %v2362
      %v2364 = vpop.f32.mrf.mxu0
      %v2365 = vadd.f32 %v2276, %v2364
      %2366 = vmatmul.bf16.gmra.mxu0 %v973
      %v2367 = vpop.f32.mrf.mxu0
      %v2368 = vadd.f32 %v2279, %v2367
      %v2369 = vpop.f32.mrf.mxu0
      %v2370 = vadd.f32 %v2281, %v2369
      %2371 = vmatmul.bf16.gmra.mxu0 %v976
      %v2372 = vpop.f32.mrf.mxu0
      %v2373 = vadd.f32 %v2284, %v2372
      %v2374 = vpop.f32.mrf.mxu0
      %v2375 = vadd.f32 %v2286, %v2374
      %2376 = vmatmul.bf16.gmra.mxu0 %v979
      %v2377 = vpop.f32.mrf.mxu0
      %v2378 = vadd.f32 %v2289, %v2377
      %v2379 = vpop.f32.mrf.mxu0
      %v2380 = vadd.f32 %v2291, %v2379
      %2381 = vmatmul.bf16.gmra.mxu0 %v1013
      %v2382 = vpop.f32.mrf.mxu0
      %v2383 = vadd.f32 %v2294, %v2382
      %v2384 = vpop.f32.mrf.mxu0
      %v2385 = vadd.f32 %v2296, %v2384
      %2386 = vmatmul.bf16.gmra.mxu0 %v934
      %v2387 = vpop.f32.mrf.mxu0
      %v2388 = vadd.f32 %v2299, %v2387
      %v2389 = vpop.f32.mrf.mxu0
      %v2390 = vadd.f32 %v2301, %v2389
      %2391 = vdwg.mxu0
      %2392 = vst [vmem:[%s231] sm:$0xff] %v2313
      %2393 = vst [vmem:[%s231 + $0x8] sm:$0xff] %v2315
      %2394 = vst [vmem:[%s231 + $0x10] sm:$0xff] %v2318
      %2395 = vst [vmem:[%s231 + $0x18] sm:$0xff] %v2320
      %2396 = vst [vmem:[%s231 + $0x20] sm:$0xff] %v2323
      %2397 = vst [vmem:[%s231 + $0x28] sm:$0xff] %v2325
      %2398 = vst [vmem:[%s231 + $0x30] sm:$0xff] %v2328
      %2399 = vst [vmem:[%s231 + $0x38] sm:$0xff] %v2330
      %2400 = vst [vmem:[%s231 + $0x40] sm:$0xff] %v2333
      %2401 = vst [vmem:[%s231 + $0x48] sm:$0xff] %v2335
      %2402 = vst [vmem:[%s231 + $0x50] sm:$0xff] %v2338
      %2403 = vst [vmem:[%s231 + $0x58] sm:$0xff] %v2340
      %2404 = vst [vmem:[%s231 + $0x60] sm:$0xff] %v2343
      %2405 = vst [vmem:[%s231 + $0x68] sm:$0xff] %v2345
      %2406 = vst [vmem:[%s231 + $0x70] sm:$0xff] %v2348
      %2407 = vst [vmem:[%s231 + $0x78] sm:$0xff] %v2350
      %2408 = vst [vmem:[%s231 + $0x80] sm:$0xff] %v2353
      %2409 = vst [vmem:[%s231 + $0x88] sm:$0xff] %v2355
      %2410 = vst [vmem:[%s231 + $0x90] sm:$0xff] %v2358
      %2411 = vst [vmem:[%s231 + $0x98] sm:$0xff] %v2360
      %2412 = vst [vmem:[%s231 + $0xa0] sm:$0xff] %v2363
      %2413 = vst [vmem:[%s231 + $0xa8] sm:$0xff] %v2365
      %2414 = vst [vmem:[%s231 + $0xb0] sm:$0xff] %v2368
      %2415 = vst [vmem:[%s231 + $0xb8] sm:$0xff] %v2370
      %2416 = vst [vmem:[%s231 + $0xc0] sm:$0xff] %v2373
      %2417 = vst [vmem:[%s231 + $0xc8] sm:$0xff] %v2375
      %2418 = vst [vmem:[%s231 + $0xd0] sm:$0xff] %v2378
      %2419 = vst [vmem:[%s231 + $0xd8] sm:$0xff] %v2380
      %2420 = vst [vmem:[%s231 + $0xe0] sm:$0xff] %v2383
      %2421 = vst [vmem:[%s231 + $0xe8] sm:$0xff] %v2385
      %2422 = vst [vmem:[%s231 + $0xf0] sm:$0xff] %v2388
      %2423 = vst [vmem:[%s231 + $0xf8] sm:$0xff] %v2390
      %v2424 = vadd.f32 %v2313, %v2315
      %v2425 = vadd.f32 %v2424, %v2318
      %v2426 = vadd.f32 %v2425, %v2320
      %v2427 = vadd.f32 %v2426, %v2323
      %v2428 = vadd.f32 %v2427, %v2325
      %v2429 = vadd.f32 %v2428, %v2328
      %v2430 = vadd.f32 %v2429, %v2330
      %v2431 = vadd.f32 %v2430, %v2333
      %v2432 = vadd.f32 %v2431, %v2335
      %v2433 = vadd.f32 %v2432, %v2338
      %v2434 = vadd.f32 %v2433, %v2340
      %v2435 = vadd.f32 %v2434, %v2343
      %v2436 = vadd.f32 %v2435, %v2345
      %v2437 = vadd.f32 %v2436, %v2348
      %v2438 = vadd.f32 %v2437, %v2350
      %v2439 = vadd.f32 %v2438, %v2353
      %v2440 = vadd.f32 %v2439, %v2355
      %v2441 = vadd.f32 %v2440, %v2358
      %v2442 = vadd.f32 %v2441, %v2360
      %v2443 = vadd.f32 %v2442, %v2363
      %v2444 = vadd.f32 %v2443, %v2365
      %v2445 = vadd.f32 %v2444, %v2368
      %v2446 = vadd.f32 %v2445, %v2370
      %v2447 = vadd.f32 %v2446, %v2373
      %v2448 = vadd.f32 %v2447, %v2375
      %v2449 = vadd.f32 %v2448, %v2378
      %v2450 = vadd.f32 %v2449, %v2380
      %v2451 = vadd.f32 %v2450, %v2383
      %v2452 = vadd.f32 %v2451, %v2385
      %v2453 = vadd.f32 %v2452, %v2388
      %v2454 = vadd.f32 %v2453, %v2390
      %v2455 = vrot.slane %v2454, 4
      %v2456 = vadd.f32 %v2454, %v2455
      %v2457 = vrot.slane %v2456, 2
      %v2458 = vadd.f32 %v2456, %v2457
      %v2459 = vrot.slane %v2458, 1
      %v2460 = vadd.f32 %v2458, %v2459
      %v2461 = vmul.f32 %v2313, %v2313
      %v2462 = vmul.f32 %v2315, %v2315
      %v2463 = vmul.f32 %v2318, %v2318
      %v2464 = vmul.f32 %v2320, %v2320
      %v2465 = vmul.f32 %v2323, %v2323
      %v2466 = vmul.f32 %v2325, %v2325
      %v2467 = vmul.f32 %v2328, %v2328
      %v2468 = vmul.f32 %v2330, %v2330
      %v2469 = vmul.f32 %v2333, %v2333
      %v2470 = vmul.f32 %v2335, %v2335
      %v2471 = vmul.f32 %v2338, %v2338
      %v2472 = vmul.f32 %v2340, %v2340
      %v2473 = vmul.f32 %v2343, %v2343
      %v2474 = vmul.f32 %v2345, %v2345
      %v2475 = vmul.f32 %v2348, %v2348
      %v2476 = vmul.f32 %v2350, %v2350
      %v2477 = vmul.f32 %v2353, %v2353
      %v2478 = vmul.f32 %v2355, %v2355
      %v2479 = vmul.f32 %v2358, %v2358
      %v2480 = vmul.f32 %v2360, %v2360
      %v2481 = vmul.f32 %v2363, %v2363
      %v2482 = vmul.f32 %v2365, %v2365
      %v2483 = vmul.f32 %v2368, %v2368
      %v2484 = vmul.f32 %v2370, %v2370
      %v2485 = vmul.f32 %v2373, %v2373
      %v2486 = vmul.f32 %v2375, %v2375
      %v2487 = vmul.f32 %v2378, %v2378
      %v2488 = vmul.f32 %v2380, %v2380
      %v2489 = vmul.f32 %v2383, %v2383
      %v2490 = vmul.f32 %v2385, %v2385
      %v2491 = vmul.f32 %v2388, %v2388
      %v2492 = vmul.f32 %v2390, %v2390
      %v2493 = vadd.f32 %v2461, %v2462
      %v2494 = vadd.f32 %v2493, %v2463
      %v2495 = vadd.f32 %v2494, %v2464
      %v2496 = vadd.f32 %v2495, %v2465
      %v2497 = vadd.f32 %v2496, %v2466
      %v2498 = vadd.f32 %v2497, %v2467
      %v2499 = vadd.f32 %v2498, %v2468
      %v2500 = vadd.f32 %v2499, %v2469
      %v2501 = vadd.f32 %v2500, %v2470
      %v2502 = vadd.f32 %v2501, %v2471
      %v2503 = vadd.f32 %v2502, %v2472
      %v2504 = vadd.f32 %v2503, %v2473
      %v2505 = vadd.f32 %v2504, %v2474
      %v2506 = vadd.f32 %v2505, %v2475
      %v2507 = vadd.f32 %v2506, %v2476
      %v2508 = vadd.f32 %v2507, %v2477
      %v2509 = vadd.f32 %v2508, %v2478
      %v2510 = vadd.f32 %v2509, %v2479
      %v2511 = vadd.f32 %v2510, %v2480
      %v2512 = vadd.f32 %v2511, %v2481
      %v2513 = vadd.f32 %v2512, %v2482
      %v2514 = vadd.f32 %v2513, %v2483
      %v2515 = vadd.f32 %v2514, %v2484
      %v2516 = vadd.f32 %v2515, %v2485
      %v2517 = vadd.f32 %v2516, %v2486
      %v2518 = vadd.f32 %v2517, %v2487
      %v2519 = vadd.f32 %v2518, %v2488
      %v2520 = vadd.f32 %v2519, %v2489
      %v2521 = vadd.f32 %v2520, %v2490
      %v2522 = vadd.f32 %v2521, %v2491
      %v2523 = vadd.f32 %v2522, %v2492
      %v2524 = vrot.slane %v2523, 4
      %v2525 = vadd.f32 %v2523, %v2524
      %v2526 = vrot.slane %v2525, 2
      %v2527 = vadd.f32 %v2525, %v2526
      %v2528 = vrot.slane %v2527, 1
      %v2529 = vadd.f32 %v2527, %v2528
      %vm2530 = vcmask 1040384
      %v2531 = vsel %vm2530, %v2460, %v2529
      %2532 = vst [vmem:[%s235] sm:$0x3] %v2531
      %p2533 = scmp.lt.s32.totalorder %s17, 1
      %s2534 = scalar_select %p2533, %s17, 1
      %s2535 = smul.addr %s2534, 32
      %s2536 = smul.addr %s2535, 8
      %s2537 = scalar_lea.vmem %s4, %s2536
      %p2538 = scmp.lt.s32.totalorder %s17, 1
      %s2539 = scalar_select %p2538, %s17, 1
      %s2540 = smul.addr %s2539, 2
      %s2541 = scalar_lea.vmem %s5, %s2540
      // Predicated region
      $region37: #{basic_block_forward.4} parent=35 // pred_check
        %p2542 = pneg %p124
      $region38: #{basic_block_forward.4} parent=35 // pred_check_branch
        %2544 = sbr.rel (%p2542) target = $region40
      $region39: #{basic_block_forward.4} parent=35 // pred_region
        _
      $region40: #{basic_block_forward.4} parent=35 // pred_fallthru
        _
      // Predicated region
      $region41: #{basic_block_forward.4} parent=35 // pred_check
        %p2545 = pneg %p150
      $region42: #{basic_block_forward.4} parent=35 // pred_check_branch
        %2547 = sbr.rel (%p2545) target = $region44
      $region43: #{basic_block_forward.4} parent=35 // pred_region
        _
      $region44: #{basic_block_forward.4} parent=35 // pred_fallthru
        _
    $region36: #{basic_block_forward.4} parent=5 // pred_fallthru
      _
    %p2548 = scmp.le.s32.totalorder 2, %s12
    // Predicated region
    $region45: #{basic_block_forward.4} parent=5 // pred_check
      %p2549 = pneg %p2548
    $region46: #{basic_block_forward.4} parent=5 // pred_check_branch
      %2551 = sbr.rel (%p2549) target = $region48
    $region47: #{basic_block_forward.4} parent=5 // pred_region
      %s2552 = ssub.s32 %s12, 2
      // Predicated region
      $region49: #{basic_block_forward.4} parent=47 // pred_check
        %p2553 = pneg %p130
      $region50: #{basic_block_forward.4} parent=47 // pred_check_branch
        %2555 = sbr.rel (%p2553) target = $region52
      $region51: #{basic_block_forward.4} parent=47 // pred_region
        %p2556 = scmp.lt.s32.totalorder %s18, 1
        %s2557 = scalar_select %p2556, %s18, 1
        %s2558 = smul.addr %s2557, 32
        %s2559 = smul.addr %s2558, 8
        %s2560 = scalar_lea.vmem %s4, %s2559
      $region52: #{basic_block_forward.4} parent=47 // pred_fallthru
        _
      // Predicated region
      $region53: #{basic_block_forward.4} parent=47 // pred_check
        %p2561 = pneg %p156
      $region54: #{basic_block_forward.4} parent=47 // pred_check_branch
        %2563 = sbr.rel (%p2561) target = $region56
      $region55: #{basic_block_forward.4} parent=47 // pred_region
        %p2564 = scmp.lt.s32.totalorder %s18, 1
        %s2565 = scalar_select %p2564, %s18, 1
        %s2566 = smul.addr %s2565, 2
        %s2567 = scalar_lea.vmem %s5, %s2566
      $region56: #{basic_block_forward.4} parent=47 // pred_fallthru
        _
    $region48: #{basic_block_forward.4} parent=5 // pred_fallthru
      _
  $region6: #{basic_block_forward.4} parent=0 // loop_footer
    %s16 = sadd.s32 1, %s12
  $region7: #{basic_block_forward.4} parent=0 // loop_footer_branch
    %11 = sbr.rel target = $region3
  $region8: #{basic_block_forward.4} parent=0 // loop_exit
    _

// kernel: basic_block_forward.3
$region0: #{basic_block_forward.3}
  #allocation0 [shape = 'u32[]', space=smem, size = 0x4, offset = 0x4, fixed_abs, tag = 'smem constant byte address 0x4 - core index']
  #allocation1 [shape = 'u32[72,128]{1,0:T(1,128)}', space=vmem, size = 0x9000, scoped, tag = 'internal scratch']
  %s0 = inlined_call_operand.vmem [shape: bf16[2,18,18,128], index: 0, kind: input, shape index: {}]
  %s1 = inlined_call_operand.vmem [shape: bf16[1152,128], index: 1, kind: input, shape index: {}]
  %s2 = inlined_call_operand.vmem [shape: bf16[2,256,128], index: 2, kind: output, shape index: {0}]
  %s3 = inlined_call_operand.vmem [shape: f32[2,2,128], index: 3, kind: output, shape index: {1}]
  %4 = xla_tuple %s2, %s3
  %s5 = sld [smem:[#allocation0]]
  $region49: #{basic_block_forward.3} parent=0
    _
  %s7 = ssub.s32 1, %s5
  %s8 = scalar_select 0, %s7, %s5
  loop: start=0, step=1, limit=4
  $region2: #{basic_block_forward.3} parent=0 // loop_pre_header
    _
  $region3: #{basic_block_forward.3} parent=0 // loop_header
    %s10 = sphi 0, %s14
    %p11 = scmp.ge.s32.totalorder %s10, 4
    %s20 = sphi 0, %s22
    %s23 = sphi 0, %s20
    %s24 = sphi 0, %s23
    %s40 = sphi 0, %s24
    %s44 = sphi 0, %s44
    %s46 = sphi 0, %s44
    %s47 = sphi 0, %s46
    %s61 = sphi 0, %s47
    %s67 = sphi 0, %s69
    %s70 = sphi 0, %s67
    %s71 = sphi 0, %s70
    %s87 = sphi 0, %s71
    %s93 = sphi 0, %s95
    %s96 = sphi 0, %s93
    %s97 = sphi 0, %s96
    %s113 = sphi 0, %s97
  $region4: #{basic_block_forward.3} parent=0 // loop_header_branch
    %13 = sbr.rel (%p11) target = $region8
  $region5: #{basic_block_forward.3} parent=0 // loop_body
    %s15 = ssub.s32 %s10, 1
    %s16 = ssub.s32 %s10, 2
    %s17 = sadd.s32 %s10, 1
    %s18 = ssub.s32 %s10, %s17
    %p19 = scmp.eq.s32.totalorder %s18, 0
    %s21 = sadd.s32 %s20, 1
    %s22 = scalar_select %p19, %s20, %s21
    %p25 = pneg %p19
    %p26 = scmp.eq.s32.totalorder %s10, 1
    %p27 = por %p25, %p26
    %p28 = scmp.ne.s32.totalorder %s20, %s23
    %p29 = scmp.eq.s32.totalorder %s10, 0
    %p30 = por %p28, %p29
    %p31 = scmp.ne.s32.totalorder %s20, %s23
    %p32 = scmp.eq.s32.totalorder %s15, 1
    %p33 = por %p31, %p32
    %p34 = scmp.ne.s32.totalorder %s23, %s24
    %p35 = scmp.eq.s32.totalorder %s15, 0
    %p36 = por %p34, %p35
    %p37 = scmp.ne.s32.totalorder %s23, %s24
    %p38 = scmp.eq.s32.totalorder %s16, 1
    %p39 = por %p37, %p38
    %p41 = scmp.ne.s32.totalorder %s24, %s40
    %p42 = scmp.eq.s32.totalorder %s16, 0
    %p43 = por %p41, %p42
    %s45 = sadd.s32 %s44, 1
    %p48 = scmp.eq.s32.totalorder %s10, 1
    %p49 = scmp.ne.s32.totalorder %s44, %s46
    %p50 = scmp.eq.s32.totalorder %s10, 0
    %p51 = por %p49, %p50
    %p52 = scmp.ne.s32.totalorder %s44, %s46
    %p53 = scmp.eq.s32.totalorder %s15, 1
    %p54 = por %p52, %p53
    %p55 = scmp.ne.s32.totalorder %s46, %s47
    %p56 = scmp.eq.s32.totalorder %s15, 0
    %p57 = por %p55, %p56
    %p58 = scmp.ne.s32.totalorder %s46, %s47
    %p59 = scmp.eq.s32.totalorder %s16, 1
    %p60 = por %p58, %p59
    %p62 = scmp.ne.s32.totalorder %s47, %s61
    %p63 = scmp.eq.s32.totalorder %s16, 0
    %p64 = por %p62, %p63
    %s65 = ssub.s32 %s10, %s17
    %p66 = scmp.eq.s32.totalorder %s65, 0
    %s68 = sadd.s32 %s67, 1
    %s69 = scalar_select %p66, %s67, %s68
    %p72 = pneg %p66
    %p73 = scmp.eq.s32.totalorder %s10, 1
    %p74 = por %p72, %p73
    %p75 = scmp.ne.s32.totalorder %s67, %s70
    %p76 = scmp.eq.s32.totalorder %s10, 0
    %p77 = por %p75, %p76
    %p78 = scmp.ne.s32.totalorder %s67, %s70
    %p79 = scmp.eq.s32.totalorder %s15, 1
    %p80 = por %p78, %p79
    %p81 = scmp.ne.s32.totalorder %s70, %s71
    %p82 = scmp.eq.s32.totalorder %s15, 0
    %p83 = por %p81, %p82
    %p84 = scmp.ne.s32.totalorder %s70, %s71
    %p85 = scmp.eq.s32.totalorder %s16, 1
    %p86 = por %p84, %p85
    %p88 = scmp.ne.s32.totalorder %s71, %s87
    %p89 = scmp.eq.s32.totalorder %s16, 0
    %p90 = por %p88, %p89
    %s91 = ssub.s32 %s10, %s17
    %p92 = scmp.eq.s32.totalorder %s91, 0
    %s94 = sadd.s32 %s93, 1
    %s95 = scalar_select %p92, %s93, %s94
    %p98 = pneg %p92
    %p99 = scmp.eq.s32.totalorder %s10, 1
    %p100 = por %p98, %p99
    %p101 = scmp.ne.s32.totalorder %s93, %s96
    %p102 = scmp.eq.s32.totalorder %s10, 0
    %p103 = por %p101, %p102
    %p104 = scmp.ne.s32.totalorder %s93, %s96
    %p105 = scmp.eq.s32.totalorder %s15, 1
    %p106 = por %p104, %p105
    %p107 = scmp.ne.s32.totalorder %s96, %s97
    %p108 = scmp.eq.s32.totalorder %s15, 0
    %p109 = por %p107, %p108
    %p110 = scmp.ne.s32.totalorder %s96, %s97
    %p111 = scmp.eq.s32.totalorder %s16, 1
    %p112 = por %p110, %p111
    %p114 = scmp.ne.s32.totalorder %s97, %s113
    %p115 = scmp.eq.s32.totalorder %s16, 0
    %p116 = por %p114, %p115
    %p117 = scmp.le.s32.totalorder 1, %s10
    %p118 = scmp.lt.s32.totalorder %s10, 3
    %p119 = pnand %p117, %p118
    %p120 = pneg %p119
    // Predicated region
    $region9: #{basic_block_forward.3} parent=5 // pred_check
      _
    $region10: #{basic_block_forward.3} parent=5 // pred_check_branch
      %122 = sbr.rel (%p119) target = $region12
    $region11: #{basic_block_forward.3} parent=5 // pred_region
      %s123 = ssub.s32 %s10, 1
      // Predicated region
      $region13: #{basic_block_forward.3} parent=11 // pred_check
        %p124 = pneg %p57
      $region14: #{basic_block_forward.3} parent=11 // pred_check_branch
        %126 = sbr.rel (%p124) target = $region16
      $region15: #{basic_block_forward.3} parent=11 // pred_region
        _
      $region16: #{basic_block_forward.3} parent=11 // pred_fallthru
        _
    $region12: #{basic_block_forward.3} parent=5 // pred_fallthru
      _
    %p127 = scmp.lt.s32.totalorder %s10, 2
    // Predicated region
    $region17: #{basic_block_forward.3} parent=5 // pred_check
      %p128 = pneg %p127
    $region18: #{basic_block_forward.3} parent=5 // pred_check_branch
      %130 = sbr.rel (%p128) target = $region20
    $region19: #{basic_block_forward.3} parent=5 // pred_region
      // Predicated region
      $region21: #{basic_block_forward.3} parent=19 // pred_check
        %p131 = pneg %p30
      $region22: #{basic_block_forward.3} parent=19 // pred_check_branch
        %133 = sbr.rel (%p131) target = $region24
      $region23: #{basic_block_forward.3} parent=19 // pred_region
        %p134 = scmp.lt.s32.totalorder %s10, 1
        %s135 = scalar_select %p134, %s10, 1
        %s136 = smul.addr %s135, 54
        %s137 = smul.addr %s136, 4
        %s138 = scalar_lea.vmem %s0, %s137
      $region24: #{basic_block_forward.3} parent=19 // pred_fallthru
        _
    $region20: #{basic_block_forward.3} parent=5 // pred_fallthru
      _
    %p139 = scmp.le.s32.totalorder 1, %s10
    %p140 = scmp.lt.s32.totalorder %s10, 3
    %p141 = pnand %p139, %p140
    %p142 = pneg %p141
    // Predicated region
    $region25: #{basic_block_forward.3} parent=5 // pred_check
      _
    $region26: #{basic_block_forward.3} parent=5 // pred_check_branch
      %144 = sbr.rel (%p141) target = $region28
    $region27: #{basic_block_forward.3} parent=5 // pred_region
      %s145 = ssub.s32 %s10, 1
      %p146 = scmp.lt.s32.totalorder %s15, 1
      %s147 = scalar_select %p146, %s15, 1
      %s148 = smul.addr %s147, 54
      %s149 = smul.addr %s148, 4
      %s150 = scalar_lea.vmem %s0, %s149
      %p151 = pneg %p36
      %p152 = pneg %p33
      %p153 = pneg %p57
      %p154 = pneg %p54
      %p155 = pneg %p83
      %p156 = pneg %p80
      %p157 = scmp.lt.s32.totalorder %s15, 1
      %s158 = scalar_select %p157, %s15, 1
      %s159 = smul.addr %s158, 32
      %s160 = smul.addr %s159, 4
      %s161 = scalar_lea.vmem %s2, %s160
      %p162 = pneg %p109
      %p163 = pneg %p106
      %p164 = scmp.lt.s32.totalorder %s15, 1
      %s165 = scalar_select %p164, %s15, 1
      %s166 = smul.addr %s165, 2
      %s167 = scalar_lea.vmem %s3, %s166
      %p168 = scmp.lt.s32.totalorder %s15, 1
      %s169 = scalar_select %p168, %s15, 1
      %s170 = smul.addr %s169, 54
      %s171 = smul.addr %s170, 4
      %s172 = scalar_lea.vmem %s0, %s171
      %p173 = scmp.lt.s32.totalorder %s15, 1
      %s174 = scalar_select %p173, %s15, 1
      %s175 = smul.addr %s174, 32
      %s176 = smul.addr %s175, 4
      %s177 = scalar_lea.vmem %s2, %s176
      %p178 = scmp.lt.s32.totalorder %s15, 1
      %s179 = scalar_select %p178, %s15, 1
      %s180 = smul.addr %s179, 2
      %s181 = scalar_lea.vmem %s3, %s180
      %v182 = vld [vmem:[%s172] sm:$0xf]
      %v183 = vld [vmem:[%s172 + $0x4] sm:$0xf]
      %v184 = vld [vmem:[%s172 + $0x8] sm:$0x1]
      %v185 = vld [vmem:[%s172 + $0xc] sm:$0xf]
      %v186 = vld [vmem:[%s172 + $0x10] sm:$0xf]
      %v187 = vld [vmem:[%s172 + $0x14] sm:$0x1]
      %v188 = vld [vmem:[%s172 + $0x18] sm:$0xf]
      %v189 = vld [vmem:[%s172 + $0x1c] sm:$0xf]
      %v190 = vld [vmem:[%s172 + $0x20] sm:$0x1]
      %v191 = vld [vmem:[%s172 + $0x24] sm:$0xf]
      %v192 = vld [vmem:[%s172 + $0x28] sm:$0xf]
      %v193 = vld [vmem:[%s172 + $0x2c] sm:$0x1]
      %v194 = vld [vmem:[%s172 + $0x30] sm:$0xf]
      %v195 = vld [vmem:[%s172 + $0x34] sm:$0xf]
      %v196 = vld [vmem:[%s172 + $0x38] sm:$0x1]
      %v197 = vld [vmem:[%s172 + $0x3c] sm:$0xf]
      %v198 = vld [vmem:[%s172 + $0x40] sm:$0xf]
      %v199 = vld [vmem:[%s172 + $0x44] sm:$0x1]
      %v200 = vld [vmem:[%s172 + $0x48] sm:$0xf]
      %v201 = vld [vmem:[%s172 + $0x4c] sm:$0xf]
      %v202 = vld [vmem:[%s172 + $0x50] sm:$0x1]
      %v203 = vld [vmem:[%s172 + $0x54] sm:$0xf]
      %v204 = vld [vmem:[%s172 + $0x58] sm:$0xf]
      %v205 = vld [vmem:[%s172 + $0x5c] sm:$0x1]
      %v206 = vld [vmem:[%s172 + $0x60] sm:$0xf]
      %v207 = vld [vmem:[%s172 + $0x64] sm:$0xf]
      %v208 = vld [vmem:[%s172 + $0x68] sm:$0x1]
      %v209 = vld [vmem:[%s172 + $0x6c] sm:$0xf]
      %v210 = vld [vmem:[%s172 + $0x70] sm:$0xf]
      %v211 = vld [vmem:[%s172 + $0x74] sm:$0x1]
      %v212 = vld [vmem:[%s172 + $0x78] sm:$0xf]
      %v213 = vld [vmem:[%s172 + $0x7c] sm:$0xf]
      %v214 = vld [vmem:[%s172 + $0x80] sm:$0x1]
      %v215 = vld [vmem:[%s172 + $0x84] sm:$0xf]
      %v216 = vld [vmem:[%s172 + $0x88] sm:$0xf]
      %v217 = vld [vmem:[%s172 + $0x8c] sm:$0x1]
      %v218 = vld [vmem:[%s172 + $0x90] sm:$0xf]
      %v219 = vld [vmem:[%s172 + $0x94] sm:$0xf]
      %v220 = vld [vmem:[%s172 + $0x98] sm:$0x1]
      %v221 = vld [vmem:[%s172 + $0x9c] sm:$0xf]
      %v222 = vld [vmem:[%s172 + $0xa0] sm:$0xf]
      %v223 = vld [vmem:[%s172 + $0xa4] sm:$0x1]
      %v224 = vld [vmem:[%s172 + $0xa8] sm:$0xf]
      %v225 = vld [vmem:[%s172 + $0xac] sm:$0xf]
      %v226 = vld [vmem:[%s172 + $0xb0] sm:$0x1]
      %v227 = vld [vmem:[%s172 + $0xb4] sm:$0xf]
      %v228 = vld [vmem:[%s172 + $0xb8] sm:$0xf]
      %v229 = vld [vmem:[%s172 + $0xbc] sm:$0x1]
      %v230 = vld [vmem:[%s172 + $0xc0] sm:$0xf]
      %v231 = vld [vmem:[%s172 + $0xc4] sm:$0xf]
      %v232 = vld [vmem:[%s172 + $0xc8] sm:$0x1]
      %v233 = vld [vmem:[%s172 + $0xcc] sm:$0xf]
      %v234 = vld [vmem:[%s172 + $0xd0] sm:$0xf]
      %v235 = vld [vmem:[%s172 + $0xd4] sm:$0x1]
      %vm236 = vsmask.f32 3328
      %vm237 = vsmask.f32 7440
      %vm238 = vmor %vm236, %vm237
      %v240 = vshrl.u32 %v182, 16
      %v242 = vrot.slane %v240, 4
      %v243 = vshll.u32 %v182, 16
      %v245 = vrot.slane %v243, 5
      %v246 = vor.u32 %v242, %v245
      %v247 = vrot.slane %v246, 4
      %v249 = vshll.u32 %v183, 16
      %v251 = vrot.slane %v249, 5
      %v252 = vsel %vm238, %v247, %v251
      %v253 = vshrl.u32 %v183, 16
      %v255 = vrot.slane %v253, 4
      %v256 = vor.u32 %v255, %v251
      %v257 = vrot.slane %v256, 4
      %v259 = vshll.u32 %v184, 16
      %v261 = vrot.slane %v259, 5
      %v262 = vsel %vm238, %v257, %v261
      %v264 = vshrl.u32 %v185, 16
      %v266 = vrot.slane %v264, 4
      %v267 = vshll.u32 %v185, 16
      %v269 = vrot.slane %v267, 5
      %v270 = vor.u32 %v266, %v269
      %v271 = vrot.slane %v270, 4
      %v273 = vshll.u32 %v186, 16
      %v275 = vrot.slane %v273, 5
      %v276 = vsel %vm238, %v271, %v275
      %v277 = vshrl.u32 %v186, 16
      %v279 = vrot.slane %v277, 4
      %v280 = vor.u32 %v279, %v275
      %v281 = vrot.slane %v280, 4
      %v283 = vshll.u32 %v187, 16
      %v285 = vrot.slane %v283, 5
      %v286 = vsel %vm238, %v281, %v285
      %v288 = vshrl.u32 %v188, 16
      %v290 = vrot.slane %v288, 4
      %v291 = vshll.u32 %v188, 16
      %v293 = vrot.slane %v291, 5
      %v294 = vor.u32 %v290, %v293
      %v295 = vrot.slane %v294, 4
      %v297 = vshll.u32 %v189, 16
      %v299 = vrot.slane %v297, 5
      %v300 = vsel %vm238, %v295, %v299
      %v301 = vshrl.u32 %v189, 16
      %v303 = vrot.slane %v301, 4
      %v304 = vor.u32 %v303, %v299
      %v305 = vrot.slane %v304, 4
      %v307 = vshll.u32 %v190, 16
      %v309 = vrot.slane %v307, 5
      %v310 = vsel %vm238, %v305, %v309
      %v312 = vshrl.u32 %v191, 16
      %v314 = vrot.slane %v312, 4
      %v315 = vshll.u32 %v191, 16
      %v317 = vrot.slane %v315, 5
      %v318 = vor.u32 %v314, %v317
      %v319 = vrot.slane %v318, 4
      %v321 = vshll.u32 %v192, 16
      %v323 = vrot.slane %v321, 5
      %v324 = vsel %vm238, %v319, %v323
      %v325 = vshrl.u32 %v192, 16
      %v327 = vrot.slane %v325, 4
      %v328 = vor.u32 %v327, %v323
      %v329 = vrot.slane %v328, 4
      %v331 = vshll.u32 %v193, 16
      %v333 = vrot.slane %v331, 5
      %v334 = vsel %vm238, %v329, %v333
      %v336 = vshrl.u32 %v194, 16
      %v338 = vrot.slane %v336, 4
      %v339 = vshll.u32 %v194, 16
      %v341 = vrot.slane %v339, 5
      %v342 = vor.u32 %v338, %v341
      %v343 = vrot.slane %v342, 4
      %v345 = vshll.u32 %v195, 16
      %v347 = vrot.slane %v345, 5
      %v348 = vsel %vm238, %v343, %v347
      %v349 = vshrl.u32 %v195, 16
      %v351 = vrot.slane %v349, 4
      %v352 = vor.u32 %v351, %v347
      %v353 = vrot.slane %v352, 4
      %v355 = vshll.u32 %v196, 16
      %v357 = vrot.slane %v355, 5
      %v358 = vsel %vm238, %v353, %v357
      %v360 = vshrl.u32 %v197, 16
      %v362 = vrot.slane %v360, 4
      %v363 = vshll.u32 %v197, 16
      %v365 = vrot.slane %v363, 5
      %v366 = vor.u32 %v362, %v365
      %v367 = vrot.slane %v366, 4
      %v369 = vshll.u32 %v198, 16
      %v371 = vrot.slane %v369, 5
      %v372 = vsel %vm238, %v367, %v371
      %v373 = vshrl.u32 %v198, 16
      %v375 = vrot.slane %v373, 4
      %v376 = vor.u32 %v375, %v371
      %v377 = vrot.slane %v376, 4
      %v379 = vshll.u32 %v199, 16
      %v381 = vrot.slane %v379, 5
      %v382 = vsel %vm238, %v377, %v381
      %v384 = vshrl.u32 %v200, 16
      %v386 = vrot.slane %v384, 4
      %v387 = vshll.u32 %v200, 16
      %v389 = vrot.slane %v387, 5
      %v390 = vor.u32 %v386, %v389
      %v391 = vrot.slane %v390, 4
      %v393 = vshll.u32 %v201, 16
      %v395 = vrot.slane %v393, 5
      %v396 = vsel %vm238, %v391, %v395
      %v397 = vshrl.u32 %v201, 16
      %v399 = vrot.slane %v397, 4
      %v400 = vor.u32 %v399, %v395
      %v401 = vrot.slane %v400, 4
      %v403 = vshll.u32 %v202, 16
      %v405 = vrot.slane %v403, 5
      %v406 = vsel %vm238, %v401, %v405
      %v408 = vshrl.u32 %v203, 16
      %v410 = vrot.slane %v408, 4
      %v411 = vshll.u32 %v203, 16
      %v413 = vrot.slane %v411, 5
      %v414 = vor.u32 %v410, %v413
      %v415 = vrot.slane %v414, 4
      %v417 = vshll.u32 %v204, 16
      %v419 = vrot.slane %v417, 5
      %v420 = vsel %vm238, %v415, %v419
      %v421 = vshrl.u32 %v204, 16
      %v423 = vrot.slane %v421, 4
      %v424 = vor.u32 %v423, %v419
      %v425 = vrot.slane %v424, 4
      %v427 = vshll.u32 %v205, 16
      %v429 = vrot.slane %v427, 5
      %v430 = vsel %vm238, %v425, %v429
      %v432 = vshrl.u32 %v206, 16
      %v434 = vrot.slane %v432, 4
      %v435 = vshll.u32 %v206, 16
      %v437 = vrot.slane %v435, 5
      %v438 = vor.u32 %v434, %v437
      %v439 = vrot.slane %v438, 4
      %v441 = vshll.u32 %v207, 16
      %v443 = vrot.slane %v441, 5
      %v444 = vsel %vm238, %v439, %v443
      %v445 = vshrl.u32 %v207, 16
      %v447 = vrot.slane %v445, 4
      %v448 = vor.u32 %v447, %v443
      %v449 = vrot.slane %v448, 4
      %v451 = vshll.u32 %v208, 16
      %v453 = vrot.slane %v451, 5
      %v454 = vsel %vm238, %v449, %v453
      %v456 = vshrl.u32 %v209, 16
      %v458 = vrot.slane %v456, 4
      %v459 = vshll.u32 %v209, 16
      %v461 = vrot.slane %v459, 5
      %v462 = vor.u32 %v458, %v461
      %v463 = vrot.slane %v462, 4
      %v465 = vshll.u32 %v210, 16
      %v467 = vrot.slane %v465, 5
      %v468 = vsel %vm238, %v463, %v467
      %v469 = vshrl.u32 %v210, 16
      %v471 = vrot.slane %v469, 4
      %v472 = vor.u32 %v471, %v467
      %v473 = vrot.slane %v472, 4
      %v475 = vshll.u32 %v211, 16
      %v477 = vrot.slane %v475, 5
      %v478 = vsel %vm238, %v473, %v477
      %v480 = vshrl.u32 %v212, 16
      %v482 = vrot.slane %v480, 4
      %v483 = vshll.u32 %v212, 16
      %v485 = vrot.slane %v483, 5
      %v486 = vor.u32 %v482, %v485
      %v487 = vrot.slane %v486, 4
      %v489 = vshll.u32 %v213, 16
      %v491 = vrot.slane %v489, 5
      %v492 = vsel %vm238, %v487, %v491
      %v493 = vshrl.u32 %v213, 16
      %v495 = vrot.slane %v493, 4
      %v496 = vor.u32 %v495, %v491
      %v497 = vrot.slane %v496, 4
      %v499 = vshll.u32 %v214, 16
      %v501 = vrot.slane %v499, 5
      %v502 = vsel %vm238, %v497, %v501
      %v504 = vshrl.u32 %v215, 16
      %v506 = vrot.slane %v504, 4
      %v507 = vshll.u32 %v215, 16
      %v509 = vrot.slane %v507, 5
      %v510 = vor.u32 %v506, %v509
      %v511 = vrot.slane %v510, 4
      %v513 = vshll.u32 %v216, 16
      %v515 = vrot.slane %v513, 5
      %v516 = vsel %vm238, %v511, %v515
      %v517 = vshrl.u32 %v216, 16
      %v519 = vrot.slane %v517, 4
      %v520 = vor.u32 %v519, %v515
      %v521 = vrot.slane %v520, 4
      %v523 = vshll.u32 %v217, 16
      %v525 = vrot.slane %v523, 5
      %v526 = vsel %vm238, %v521, %v525
      %v528 = vshrl.u32 %v218, 16
      %v530 = vrot.slane %v528, 4
      %v531 = vshll.u32 %v218, 16
      %v533 = vrot.slane %v531, 5
      %v534 = vor.u32 %v530, %v533
      %v535 = vrot.slane %v534, 4
      %v537 = vshll.u32 %v219, 16
      %v539 = vrot.slane %v537, 5
      %v540 = vsel %vm238, %v535, %v539
      %v541 = vshrl.u32 %v219, 16
      %v543 = vrot.slane %v541, 4
      %v544 = vor.u32 %v543, %v539
      %v545 = vrot.slane %v544, 4
      %v547 = vshll.u32 %v220, 16
      %v549 = vrot.slane %v547, 5
      %v550 = vsel %vm238, %v545, %v549
      %v552 = vshrl.u32 %v221, 16
      %v554 = vrot.slane %v552, 4
      %v555 = vshll.u32 %v221, 16
      %v557 = vrot.slane %v555, 5
      %v558 = vor.u32 %v554, %v557
      %v559 = vrot.slane %v558, 4
      %v561 = vshll.u32 %v222, 16
      %v563 = vrot.slane %v561, 5
      %v564 = vsel %vm238, %v559, %v563
      %v565 = vshrl.u32 %v222, 16
      %v567 = vrot.slane %v565, 4
      %v568 = vor.u32 %v567, %v563
      %v569 = vrot.slane %v568, 4
      %v571 = vshll.u32 %v223, 16
      %v573 = vrot.slane %v571, 5
      %v574 = vsel %vm238, %v569, %v573
      %v576 = vshrl.u32 %v224, 16
      %v578 = vrot.slane %v576, 4
      %v579 = vshll.u32 %v224, 16
      %v581 = vrot.slane %v579, 5
      %v582 = vor.u32 %v578, %v581
      %v583 = vrot.slane %v582, 4
      %v585 = vshll.u32 %v225, 16
      %v587 = vrot.slane %v585, 5
      %v588 = vsel %vm238, %v583, %v587
      %v589 = vshrl.u32 %v225, 16
      %v591 = vrot.slane %v589, 4
      %v592 = vor.u32 %v591, %v587
      %v593 = vrot.slane %v592, 4
      %v595 = vshll.u32 %v226, 16
      %v597 = vrot.slane %v595, 5
      %v598 = vsel %vm238, %v593, %v597
      %v600 = vshrl.u32 %v227, 16
      %v602 = vrot.slane %v600, 4
      %v603 = vshll.u32 %v227, 16
      %v605 = vrot.slane %v603, 5
      %v606 = vor.u32 %v602, %v605
      %v607 = vrot.slane %v606, 4
      %v609 = vshll.u32 %v228, 16
      %v611 = vrot.slane %v609, 5
      %v612 = vsel %vm238, %v607, %v611
      %v613 = vshrl.u32 %v228, 16
      %v615 = vrot.slane %v613, 4
      %v616 = vor.u32 %v615, %v611
      %v617 = vrot.slane %v616, 4
      %v619 = vshll.u32 %v229, 16
      %v621 = vrot.slane %v619, 5
      %v622 = vsel %vm238, %v617, %v621
      %vm671 = vcmask 1042432
      %vm672 = vcmask 1046532
      %vm673 = vmor %vm671, %vm672
      %v674 = vrot.slane %v182, 5
      %v675 = vrot.slane %v674, 4
      %v676 = vrot.slane %v183, 5
      %v677 = vsel %vm673, %v675, %v676
      %v678 = vrot.slane %v676, 4
      %v679 = vrot.slane %v184, 5
      %v680 = vsel %vm673, %v678, %v679
      %v681 = vrot.slane %v185, 5
      %v682 = vrot.slane %v681, 4
      %v683 = vrot.slane %v186, 5
      %v684 = vsel %vm673, %v682, %v683
      %v685 = vrot.slane %v683, 4
      %v686 = vrot.slane %v187, 5
      %v687 = vsel %vm673, %v685, %v686
      %v688 = vrot.slane %v188, 5
      %v689 = vrot.slane %v688, 4
      %v690 = vrot.slane %v189, 5
      %v691 = vsel %vm673, %v689, %v690
      %v692 = vrot.slane %v690, 4
      %v693 = vrot.slane %v190, 5
      %v694 = vsel %vm673, %v692, %v693
      %v695 = vrot.slane %v191, 5
      %v696 = vrot.slane %v695, 4
      %v697 = vrot.slane %v192, 5
      %v698 = vsel %vm673, %v696, %v697
      %v699 = vrot.slane %v697, 4
      %v700 = vrot.slane %v193, 5
      %v701 = vsel %vm673, %v699, %v700
      %v702 = vrot.slane %v194, 5
      %v703 = vrot.slane %v702, 4
      %v704 = vrot.slane %v195, 5
      %v705 = vsel %vm673, %v703, %v704
      %v706 = vrot.slane %v704, 4
      %v707 = vrot.slane %v196, 5
      %v708 = vsel %vm673, %v706, %v707
      %v709 = vrot.slane %v197, 5
      %v710 = vrot.slane %v709, 4
      %v711 = vrot.slane %v198, 5
      %v712 = vsel %vm673, %v710, %v711
      %v713 = vrot.slane %v711, 4
      %v714 = vrot.slane %v199, 5
      %v715 = vsel %vm673, %v713, %v714
      %v716 = vrot.slane %v200, 5
      %v717 = vrot.slane %v716, 4
      %v718 = vrot.slane %v201, 5
      %v719 = vsel %vm673, %v717, %v718
      %v720 = vrot.slane %v718, 4
      %v721 = vrot.slane %v202, 5
      %v722 = vsel %vm673, %v720, %v721
      %v723 = vrot.slane %v203, 5
      %v724 = vrot.slane %v723, 4
      %v725 = vrot.slane %v204, 5
      %v726 = vsel %vm673, %v724, %v725
      %v727 = vrot.slane %v725, 4
      %v728 = vrot.slane %v205, 5
      %v729 = vsel %vm673, %v727, %v728
      %v730 = vrot.slane %v206, 5
      %v731 = vrot.slane %v730, 4
      %v732 = vrot.slane %v207, 5
      %v733 = vsel %vm673, %v731, %v732
      %v734 = vrot.slane %v732, 4
      %v735 = vrot.slane %v208, 5
      %v736 = vsel %vm673, %v734, %v735
      %v737 = vrot.slane %v209, 5
      %v738 = vrot.slane %v737, 4
      %v739 = vrot.slane %v210, 5
      %v740 = vsel %vm673, %v738, %v739
      %v741 = vrot.slane %v739, 4
      %v742 = vrot.slane %v211, 5
      %v743 = vsel %vm673, %v741, %v742
      %v744 = vrot.slane %v212, 5
      %v745 = vrot.slane %v744, 4
      %v746 = vrot.slane %v213, 5
      %v747 = vsel %vm673, %v745, %v746
      %v748 = vrot.slane %v746, 4
      %v749 = vrot.slane %v214, 5
      %v750 = vsel %vm673, %v748, %v749
      %v751 = vrot.slane %v215, 5
      %v752 = vrot.slane %v751, 4
      %v753 = vrot.slane %v216, 5
      %v754 = vsel %vm673, %v752, %v753
      %v755 = vrot.slane %v753, 4
      %v756 = vrot.slane %v217, 5
      %v757 = vsel %vm673, %v755, %v756
      %v758 = vrot.slane %v218, 5
      %v759 = vrot.slane %v758, 4
      %v760 = vrot.slane %v219, 5
      %v761 = vsel %vm673, %v759, %v760
      %v762 = vrot.slane %v760, 4
      %v763 = vrot.slane %v220, 5
      %v764 = vsel %vm673, %v762, %v763
      %v765 = vrot.slane %v221, 5
      %v766 = vrot.slane %v765, 4
      %v767 = vrot.slane %v222, 5
      %v768 = vsel %vm673, %v766, %v767
      %v769 = vrot.slane %v767, 4
      %v770 = vrot.slane %v223, 5
      %v771 = vsel %vm673, %v769, %v770
      %v772 = vrot.slane %v224, 5
      %v773 = vrot.slane %v772, 4
      %v774 = vrot.slane %v225, 5
      %v775 = vsel %vm673, %v773, %v774
      %v776 = vrot.slane %v774, 4
      %v777 = vrot.slane %v226, 5
      %v778 = vsel %vm673, %v776, %v777
      %v779 = vrot.slane %v227, 5
      %v780 = vrot.slane %v779, 4
      %v781 = vrot.slane %v228, 5
      %v782 = vsel %vm673, %v780, %v781
      %v783 = vrot.slane %v781, 4
      %v784 = vrot.slane %v229, 5
      %v785 = vsel %vm673, %v783, %v784
      %v787 = vshrl.u32 %v230, 16
      %v789 = vrot.slane %v787, 4
      %v790 = vshll.u32 %v230, 16
      %v792 = vrot.slane %v790, 5
      %v793 = vor.u32 %v789, %v792
      %v794 = vrot.slane %v793, 4
      %v796 = vshll.u32 %v231, 16
      %v798 = vrot.slane %v796, 5
      %v799 = vsel %vm238, %v794, %v798
      %v800 = vshrl.u32 %v231, 16
      %v802 = vrot.slane %v800, 4
      %v803 = vor.u32 %v802, %v798
      %v804 = vrot.slane %v803, 4
      %v806 = vshll.u32 %v232, 16
      %v808 = vrot.slane %v806, 5
      %v809 = vsel %vm238, %v804, %v808
      %v813 = vrot.slane %v230, 5
      %v814 = vrot.slane %v813, 4
      %v815 = vrot.slane %v231, 5
      %v816 = vsel %vm673, %v814, %v815
      %v817 = vrot.slane %v815, 4
      %v818 = vrot.slane %v232, 5
      %v819 = vsel %vm673, %v817, %v818
      %v821 = vshrl.u32 %v233, 16
      %v823 = vrot.slane %v821, 4
      %v824 = vshll.u32 %v233, 16
      %v826 = vrot.slane %v824, 5
      %v827 = vor.u32 %v823, %v826
      %v828 = vrot.slane %v827, 4
      %v830 = vshll.u32 %v234, 16
      %v832 = vrot.slane %v830, 5
      %v833 = vsel %vm238, %v828, %v832
      %v834 = vshrl.u32 %v234, 16
      %v836 = vrot.slane %v834, 4
      %v837 = vor.u32 %v836, %v832
      %v838 = vrot.slane %v837, 4
      %v840 = vshll.u32 %v235, 16
      %v842 = vrot.slane %v840, 5
      %v843 = vsel %vm238, %v838, %v842
      %v847 = vrot.slane %v233, 5
      %v848 = vrot.slane %v847, 4
      %v849 = vrot.slane %v234, 5
      %v850 = vsel %vm673, %v848, %v849
      %v851 = vrot.slane %v849, 4
      %v852 = vrot.slane %v235, 5
      %v853 = vsel %vm673, %v851, %v852
      %v854 = vunpack.c.l.b16 %v182
      %v855 = vunpack.c.l.b16 %v183
      %v856 = vunpack.c.l.b16 %v185
      %v857 = vunpack.c.l.b16 %v186
      %v858 = vunpack.c.l.b16 %v188
      %v859 = vunpack.c.l.b16 %v189
      %v860 = vunpack.c.l.b16 %v191
      %v861 = vunpack.c.l.b16 %v192
      %v862 = vunpack.c.l.b16 %v194
      %v863 = vunpack.c.l.b16 %v195
      %v864 = vunpack.c.l.b16 %v197
      %v865 = vunpack.c.l.b16 %v198
      %v866 = vunpack.c.l.b16 %v200
      %v867 = vunpack.c.l.b16 %v201
      %v868 = vunpack.c.l.b16 %v203
      %v869 = vunpack.c.l.b16 %v204
      %v870 = vunpack.c.l.b16 %v206
      %v871 = vunpack.c.l.b16 %v207
      %v872 = vunpack.c.l.b16 %v209
      %v873 = vunpack.c.l.b16 %v210
      %v874 = vunpack.c.l.b16 %v212
      %v875 = vunpack.c.l.b16 %v213
      %v876 = vunpack.c.l.b16 %v215
      %v877 = vunpack.c.l.b16 %v216
      %v878 = vunpack.c.l.b16 %v218
      %v879 = vunpack.c.l.b16 %v219
      %v880 = vunpack.c.l.b16 %v221
      %v881 = vunpack.c.l.b16 %v222
      %v882 = vunpack.c.l.b16 %v224
      %v883 = vunpack.c.l.b16 %v225
      %v884 = vunpack.c.l.b16 %v227
      %v885 = vunpack.c.l.b16 %v228
      %v886 = vpack.c.b16 %v855, %v854
      %v887 = vpack.c.b16 %v857, %v856
      %v888 = vpack.c.b16 %v859, %v858
      %v889 = vpack.c.b16 %v861, %v860
      %v890 = vpack.c.b16 %v863, %v862
      %v891 = vpack.c.b16 %v865, %v864
      %v892 = vpack.c.b16 %v867, %v866
      %v893 = vpack.c.b16 %v869, %v868
      %v894 = vpack.c.b16 %v871, %v870
      %v895 = vpack.c.b16 %v873, %v872
      %v896 = vpack.c.b16 %v875, %v874
      %v897 = vpack.c.b16 %v877, %v876
      %v898 = vpack.c.b16 %v879, %v878
      %v899 = vpack.c.b16 %v881, %v880
      %v900 = vpack.c.b16 %v883, %v882
      %v901 = vpack.c.b16 %v885, %v884
      %v918 = vunpack.c.l.b16 %v252
      %v919 = vunpack.c.l.b16 %v262
      %v920 = vunpack.c.l.b16 %v276
      %v921 = vunpack.c.l.b16 %v286
      %v922 = vunpack.c.l.b16 %v300
      %v923 = vunpack.c.l.b16 %v310
      %v924 = vunpack.c.l.b16 %v324
      %v925 = vunpack.c.l.b16 %v334
      %v926 = vunpack.c.l.b16 %v348
      %v927 = vunpack.c.l.b16 %v358
      %v928 = vunpack.c.l.b16 %v372
      %v929 = vunpack.c.l.b16 %v382
      %v930 = vunpack.c.l.b16 %v396
      %v931 = vunpack.c.l.b16 %v406
      %v932 = vunpack.c.l.b16 %v420
      %v933 = vunpack.c.l.b16 %v430
      %v934 = vunpack.c.l.b16 %v444
      %v935 = vunpack.c.l.b16 %v454
      %v936 = vunpack.c.l.b16 %v468
      %v937 = vunpack.c.l.b16 %v478
      %v938 = vunpack.c.l.b16 %v492
      %v939 = vunpack.c.l.b16 %v502
      %v940 = vunpack.c.l.b16 %v516
      %v941 = vunpack.c.l.b16 %v526
      %v942 = vunpack.c.l.b16 %v540
      %v943 = vunpack.c.l.b16 %v550
      %v944 = vunpack.c.l.b16 %v564
      %v945 = vunpack.c.l.b16 %v574
      %v946 = vunpack.c.l.b16 %v588
      %v947 = vunpack.c.l.b16 %v598
      %v948 = vunpack.c.l.b16 %v612
      %v949 = vunpack.c.l.b16 %v622
      %v950 = vpack.c.b16 %v919, %v918
      %v951 = vpack.c.b16 %v921, %v920
      %v952 = vpack.c.b16 %v923, %v922
      %v953 = vpack.c.b16 %v925, %v924
      %v954 = vpack.c.b16 %v927, %v926
      %v955 = vpack.c.b16 %v929, %v928
      %v956 = vpack.c.b16 %v931, %v930
      %v957 = vpack.c.b16 %v933, %v932
      %v958 = vpack.c.b16 %v935, %v934
      %v959 = vpack.c.b16 %v937, %v936
      %v960 = vpack.c.b16 %v939, %v938
      %v961 = vpack.c.b16 %v941, %v940
      %v962 = vpack.c.b16 %v943, %v942
      %v963 = vpack.c.b16 %v945, %v944
      %v964 = vpack.c.b16 %v947, %v946
      %v965 = vpack.c.b16 %v949, %v948
      %v982 = vunpack.c.l.b16 %v677
      %v983 = vunpack.c.l.b16 %v680
      %v984 = vunpack.c.l.b16 %v684
      %v985 = vunpack.c.l.b16 %v687
      %v986 = vunpack.c.l.b16 %v691
      %v987 = vunpack.c.l.b16 %v694
      %v988 = vunpack.c.l.b16 %v698
      %v989 = vunpack.c.l.b16 %v701
      %v990 = vunpack.c.l.b16 %v705
      %v991 = vunpack.c.l.b16 %v708
      %v992 = vunpack.c.l.b16 %v712
      %v993 = vunpack.c.l.b16 %v715
      %v994 = vunpack.c.l.b16 %v719
      %v995 = vunpack.c.l.b16 %v722
      %v996 = vunpack.c.l.b16 %v726
      %v997 = vunpack.c.l.b16 %v729
      %v998 = vunpack.c.l.b16 %v733
      %v999 = vunpack.c.l.b16 %v736
      %v1000 = vunpack.c.l.b16 %v740
      %v1001 = vunpack.c.l.b16 %v743
      %v1002 = vunpack.c.l.b16 %v747
      %v1003 = vunpack.c.l.b16 %v750
      %v1004 = vunpack.c.l.b16 %v754
      %v1005 = vunpack.c.l.b16 %v757
      %v1006 = vunpack.c.l.b16 %v761
      %v1007 = vunpack.c.l.b16 %v764
      %v1008 = vunpack.c.l.b16 %v768
      %v1009 = vunpack.c.l.b16 %v771
      %v1010 = vunpack.c.l.b16 %v775
      %v1011 = vunpack.c.l.b16 %v778
      %v1012 = vunpack.c.l.b16 %v782
      %v1013 = vunpack.c.l.b16 %v785
      %v1014 = vpack.c.b16 %v983, %v982
      %v1015 = vpack.c.b16 %v985, %v984
      %v1016 = vpack.c.b16 %v987, %v986
      %v1017 = vpack.c.b16 %v989, %v988
      %v1018 = vpack.c.b16 %v991, %v990
      %v1019 = vpack.c.b16 %v993, %v992
      %v1020 = vpack.c.b16 %v995, %v994
      %v1021 = vpack.c.b16 %v997, %v996
      %v1022 = vpack.c.b16 %v999, %v998
      %v1023 = vpack.c.b16 %v1001, %v1000
      %v1024 = vpack.c.b16 %v1003, %v1002
      %v1025 = vpack.c.b16 %v1005, %v1004
      %v1026 = vpack.c.b16 %v1007, %v1006
      %v1027 = vpack.c.b16 %v1009, %v1008
      %v1028 = vpack.c.b16 %v1011, %v1010
      %v1029 = vpack.c.b16 %v1013, %v1012
      %v1046 = vunpack.c.l.b16 %v230
      %v1047 = vunpack.c.l.b16 %v231
      %v1048 = vpack.c.b16 %v1047, %v1046
      %v1050 = vunpack.c.l.b16 %v799
      %v1051 = vunpack.c.l.b16 %v809
      %v1052 = vpack.c.b16 %v1051, %v1050
      %v1054 = vunpack.c.l.b16 %v816
      %v1055 = vunpack.c.l.b16 %v819
      %v1056 = vpack.c.b16 %v1055, %v1054
      %v1058 = vunpack.c.l.b16 %v233
      %v1059 = vunpack.c.l.b16 %v234
      %v1060 = vpack.c.b16 %v1059, %v1058
      %v1062 = vunpack.c.l.b16 %v833
      %v1063 = vunpack.c.l.b16 %v843
      %v1064 = vpack.c.b16 %v1063, %v1062
      %v1066 = vunpack.c.l.b16 %v850
      %v1067 = vunpack.c.l.b16 %v853
      %v1068 = vpack.c.b16 %v1067, %v1066
      %v1070 = vld [vmem:[%s1] sm:$0xf]
      %v1071 = vld [vmem:[%s1 + $0x4] sm:$0xf]
      %v1072 = vld [vmem:[%s1 + $0x8] sm:$0xf]
      %v1073 = vld [vmem:[%s1 + $0xc] sm:$0xf]
      %v1074 = vld [vmem:[%s1 + $0x10] sm:$0xf]
      %v1075 = vld [vmem:[%s1 + $0x14] sm:$0xf]
      %v1076 = vld [vmem:[%s1 + $0x18] sm:$0xf]
      %v1077 = vld [vmem:[%s1 + $0x1c] sm:$0xf]
      %v1078 = vld [vmem:[%s1 + $0x20] sm:$0xf]
      %v1079 = vld [vmem:[%s1 + $0x24] sm:$0xf]
      %v1080 = vld [vmem:[%s1 + $0x28] sm:$0xf]
      %v1081 = vld [vmem:[%s1 + $0x2c] sm:$0xf]
      %v1082 = vld [vmem:[%s1 + $0x30] sm:$0xf]
      %v1083 = vld [vmem:[%s1 + $0x34] sm:$0xf]
      %v1084 = vld [vmem:[%s1 + $0x38] sm:$0xf]
      %v1085 = vld [vmem:[%s1 + $0x3c] sm:$0xf]
      %v1086 = vld [vmem:[%s1 + $0x40] sm:$0xf]
      %v1087 = vld [vmem:[%s1 + $0x44] sm:$0xf]
      %v1088 = vld [vmem:[%s1 + $0x48] sm:$0xf]
      %v1089 = vld [vmem:[%s1 + $0x4c] sm:$0xf]
      %v1090 = vld [vmem:[%s1 + $0x50] sm:$0xf]
      %v1091 = vld [vmem:[%s1 + $0x54] sm:$0xf]
      %v1092 = vld [vmem:[%s1 + $0x58] sm:$0xf]
      %v1093 = vld [vmem:[%s1 + $0x5c] sm:$0xf]
      %v1094 = vld [vmem:[%s1 + $0x60] sm:$0xf]
      %v1095 = vld [vmem:[%s1 + $0x64] sm:$0xf]
      %v1096 = vld [vmem:[%s1 + $0x68] sm:$0xf]
      %v1097 = vld [vmem:[%s1 + $0x6c] sm:$0xf]
      %v1098 = vld [vmem:[%s1 + $0x70] sm:$0xf]
      %v1099 = vld [vmem:[%s1 + $0x74] sm:$0xf]
      %v1100 = vld [vmem:[%s1 + $0x78] sm:$0xf]
      %v1101 = vld [vmem:[%s1 + $0x7c] sm:$0xf]
      %v1102 = vld [vmem:[%s1 + $0x80] sm:$0xf]
      %v1103 = vld [vmem:[%s1 + $0x84] sm:$0xf]
      %v1104 = vld [vmem:[%s1 + $0x88] sm:$0xf]
      %v1105 = vld [vmem:[%s1 + $0x8c] sm:$0xf]
      %v1106 = vld [vmem:[%s1 + $0x90] sm:$0xf]
      %v1107 = vld [vmem:[%s1 + $0x94] sm:$0xf]
      %v1108 = vld [vmem:[%s1 + $0x98] sm:$0xf]
      %v1109 = vld [vmem:[%s1 + $0x9c] sm:$0xf]
      %v1110 = vld [vmem:[%s1 + $0xa0] sm:$0xf]
      %v1111 = vld [vmem:[%s1 + $0xa4] sm:$0xf]
      %v1112 = vld [vmem:[%s1 + $0xa8] sm:$0xf]
      %v1113 = vld [vmem:[%s1 + $0xac] sm:$0xf]
      %v1114 = vld [vmem:[%s1 + $0xb0] sm:$0xf]
      %v1115 = vld [vmem:[%s1 + $0xb4] sm:$0xf]
      %v1116 = vld [vmem:[%s1 + $0xb8] sm:$0xf]
      %v1117 = vld [vmem:[%s1 + $0xbc] sm:$0xf]
      %v1118 = vld [vmem:[%s1 + $0xc0] sm:$0xf]
      %v1119 = vld [vmem:[%s1 + $0xc4] sm:$0xf]
      %v1120 = vld [vmem:[%s1 + $0xc8] sm:$0xf]
      %v1121 = vld [vmem:[%s1 + $0xcc] sm:$0xf]
      %v1122 = vld [vmem:[%s1 + $0xd0] sm:$0xf]
      %v1123 = vld [vmem:[%s1 + $0xd4] sm:$0xf]
      %v1124 = vld [vmem:[%s1 + $0xd8] sm:$0xf]
      %v1125 = vld [vmem:[%s1 + $0xdc] sm:$0xf]
      %v1126 = vld [vmem:[%s1 + $0xe0] sm:$0xf]
      %v1127 = vld [vmem:[%s1 + $0xe4] sm:$0xf]
      %v1128 = vld [vmem:[%s1 + $0xe8] sm:$0xf]
      %v1129 = vld [vmem:[%s1 + $0xec] sm:$0xf]
      %v1130 = vld [vmem:[%s1 + $0xf0] sm:$0xf]
      %v1131 = vld [vmem:[%s1 + $0xf4] sm:$0xf]
      %v1132 = vld [vmem:[%s1 + $0xf8] sm:$0xf]
      %v1133 = vld [vmem:[%s1 + $0xfc] sm:$0xf]
      %v1134 = vld [vmem:[%s1 + $0x100] sm:$0xf]
      %v1135 = vld [vmem:[%s1 + $0x104] sm:$0xf]
      %v1136 = vld [vmem:[%s1 + $0x108] sm:$0xf]
      %v1137 = vld [vmem:[%s1 + $0x10c] sm:$0xf]
      %v1138 = vld [vmem:[%s1 + $0x110] sm:$0xf]
      %v1139 = vld [vmem:[%s1 + $0x114] sm:$0xf]
      %v1140 = vld [vmem:[%s1 + $0x118] sm:$0xf]
      %v1141 = vld [vmem:[%s1 + $0x11c] sm:$0xf]
      %v1142 = vld [vmem:[%s1 + $0x120] sm:$0xf]
      %v1143 = vld [vmem:[%s1 + $0x124] sm:$0xf]
      %v1144 = vld [vmem:[%s1 + $0x128] sm:$0xf]
      %v1145 = vld [vmem:[%s1 + $0x12c] sm:$0xf]
      %v1146 = vld [vmem:[%s1 + $0x130] sm:$0xf]
      %v1147 = vld [vmem:[%s1 + $0x134] sm:$0xf]
      %v1148 = vld [vmem:[%s1 + $0x138] sm:$0xf]
      %v1149 = vld [vmem:[%s1 + $0x13c] sm:$0xf]
      %v1150 = vld [vmem:[%s1 + $0x140] sm:$0xf]
      %v1151 = vld [vmem:[%s1 + $0x144] sm:$0xf]
      %v1152 = vld [vmem:[%s1 + $0x148] sm:$0xf]
      %v1153 = vld [vmem:[%s1 + $0x14c] sm:$0xf]
      %v1154 = vld [vmem:[%s1 + $0x150] sm:$0xf]
      %v1155 = vld [vmem:[%s1 + $0x154] sm:$0xf]
      %v1156 = vld [vmem:[%s1 + $0x158] sm:$0xf]
      %v1157 = vld [vmem:[%s1 + $0x15c] sm:$0xf]
      %v1158 = vld [vmem:[%s1 + $0x160] sm:$0xf]
      %v1159 = vld [vmem:[%s1 + $0x164] sm:$0xf]
      %v1160 = vld [vmem:[%s1 + $0x168] sm:$0xf]
      %v1161 = vld [vmem:[%s1 + $0x16c] sm:$0xf]
      %v1162 = vld [vmem:[%s1 + $0x170] sm:$0xf]
      %v1163 = vld [vmem:[%s1 + $0x174] sm:$0xf]
      %v1164 = vld [vmem:[%s1 + $0x178] sm:$0xf]
      %v1165 = vld [vmem:[%s1 + $0x17c] sm:$0xf]
      %v1166 = vld [vmem:[%s1 + $0x180] sm:$0xf]
      %v1167 = vld [vmem:[%s1 + $0x184] sm:$0xf]
      %v1168 = vld [vmem:[%s1 + $0x188] sm:$0xf]
      %v1169 = vld [vmem:[%s1 + $0x18c] sm:$0xf]
      %v1170 = vld [vmem:[%s1 + $0x190] sm:$0xf]
      %v1171 = vld [vmem:[%s1 + $0x194] sm:$0xf]
      %v1172 = vld [vmem:[%s1 + $0x198] sm:$0xf]
      %v1173 = vld [vmem:[%s1 + $0x19c] sm:$0xf]
      %v1174 = vld [vmem:[%s1 + $0x1a0] sm:$0xf]
      %v1175 = vld [vmem:[%s1 + $0x1a4] sm:$0xf]
      %v1176 = vld [vmem:[%s1 + $0x1a8] sm:$0xf]
      %v1177 = vld [vmem:[%s1 + $0x1ac] sm:$0xf]
      %v1178 = vld [vmem:[%s1 + $0x1b0] sm:$0xf]
      %v1179 = vld [vmem:[%s1 + $0x1b4] sm:$0xf]
      %v1180 = vld [vmem:[%s1 + $0x1b8] sm:$0xf]
      %v1181 = vld [vmem:[%s1 + $0x1bc] sm:$0xf]
      %v1182 = vld [vmem:[%s1 + $0x1c0] sm:$0xf]
      %v1183 = vld [vmem:[%s1 + $0x1c4] sm:$0xf]
      %v1184 = vld [vmem:[%s1 + $0x1c8] sm:$0xf]
      %v1185 = vld [vmem:[%s1 + $0x1cc] sm:$0xf]
      %v1186 = vld [vmem:[%s1 + $0x1d0] sm:$0xf]
      %v1187 = vld [vmem:[%s1 + $0x1d4] sm:$0xf]
      %v1188 = vld [vmem:[%s1 + $0x1d8] sm:$0xf]
      %v1189 = vld [vmem:[%s1 + $0x1dc] sm:$0xf]
      %v1190 = vld [vmem:[%s1 + $0x1e0] sm:$0xf]
      %v1191 = vld [vmem:[%s1 + $0x1e4] sm:$0xf]
      %v1192 = vld [vmem:[%s1 + $0x1e8] sm:$0xf]
      %v1193 = vld [vmem:[%s1 + $0x1ec] sm:$0xf]
      %v1194 = vld [vmem:[%s1 + $0x1f0] sm:$0xf]
      %v1195 = vld [vmem:[%s1 + $0x1f4] sm:$0xf]
      %v1196 = vld [vmem:[%s1 + $0x1f8] sm:$0xf]
      %v1197 = vld [vmem:[%s1 + $0x1fc] sm:$0xf]
      %v1198 = vld [vmem:[%s1 + $0x200] sm:$0xf]
      %v1199 = vld [vmem:[%s1 + $0x204] sm:$0xf]
      %v1200 = vld [vmem:[%s1 + $0x208] sm:$0xf]
      %v1201 = vld [vmem:[%s1 + $0x20c] sm:$0xf]
      %v1202 = vld [vmem:[%s1 + $0x210] sm:$0xf]
      %v1203 = vld [vmem:[%s1 + $0x214] sm:$0xf]
      %v1204 = vld [vmem:[%s1 + $0x218] sm:$0xf]
      %v1205 = vld [vmem:[%s1 + $0x21c] sm:$0xf]
      %v1206 = vld [vmem:[%s1 + $0x220] sm:$0xf]
      %v1207 = vld [vmem:[%s1 + $0x224] sm:$0xf]
      %v1208 = vld [vmem:[%s1 + $0x228] sm:$0xf]
      %v1209 = vld [vmem:[%s1 + $0x22c] sm:$0xf]
      %v1210 = vld [vmem:[%s1 + $0x230] sm:$0xf]
      %v1211 = vld [vmem:[%s1 + $0x234] sm:$0xf]
      %v1212 = vld [vmem:[%s1 + $0x238] sm:$0xf]
      %v1213 = vld [vmem:[%s1 + $0x23c] sm:$0xf]
      %v1358 = vunpack.c.l.b16 %v1070
      %v1359 = vunpack.c.l.b16 %v1071
      %v1360 = vunpack.c.l.b16 %v1072
      %v1361 = vunpack.c.l.b16 %v1073
      %v1362 = vunpack.c.l.b16 %v1074
      %v1363 = vunpack.c.l.b16 %v1075
      %v1364 = vunpack.c.l.b16 %v1076
      %v1365 = vunpack.c.l.b16 %v1077
      %v1366 = vunpack.c.l.b16 %v1078
      %v1367 = vunpack.c.l.b16 %v1079
      %v1368 = vunpack.c.l.b16 %v1080
      %v1369 = vunpack.c.l.b16 %v1081
      %v1370 = vunpack.c.l.b16 %v1082
      %v1371 = vunpack.c.l.b16 %v1083
      %v1372 = vunpack.c.l.b16 %v1084
      %v1373 = vunpack.c.l.b16 %v1085
      %v1374 = vunpack.c.l.b16 %v1086
      %v1375 = vunpack.c.l.b16 %v1087
      %v1376 = vunpack.c.l.b16 %v1088
      %v1377 = vunpack.c.l.b16 %v1089
      %v1378 = vunpack.c.l.b16 %v1090
      %v1379 = vunpack.c.l.b16 %v1091
      %v1380 = vunpack.c.l.b16 %v1092
      %v1381 = vunpack.c.l.b16 %v1093
      %v1382 = vunpack.c.l.b16 %v1094
      %v1383 = vunpack.c.l.b16 %v1095
      %v1384 = vunpack.c.l.b16 %v1096
      %v1385 = vunpack.c.l.b16 %v1097
      %v1386 = vunpack.c.l.b16 %v1098
      %v1387 = vunpack.c.l.b16 %v1099
      %v1388 = vunpack.c.l.b16 %v1100
      %v1389 = vunpack.c.l.b16 %v1101
      %v1390 = vunpack.c.l.b16 %v1102
      %v1391 = vunpack.c.l.b16 %v1103
      %v1392 = vunpack.c.l.b16 %v1104
      %v1393 = vunpack.c.l.b16 %v1105
      %v1394 = vunpack.c.l.b16 %v1106
      %v1395 = vunpack.c.l.b16 %v1107
      %v1396 = vunpack.c.l.b16 %v1108
      %v1397 = vunpack.c.l.b16 %v1109
      %v1398 = vunpack.c.l.b16 %v1110
      %v1399 = vunpack.c.l.b16 %v1111
      %v1400 = vunpack.c.l.b16 %v1112
      %v1401 = vunpack.c.l.b16 %v1113
      %v1402 = vunpack.c.l.b16 %v1114
      %v1403 = vunpack.c.l.b16 %v1115
      %v1404 = vunpack.c.l.b16 %v1116
      %v1405 = vunpack.c.l.b16 %v1117
      %v1406 = vunpack.c.l.b16 %v1118
      %v1407 = vunpack.c.l.b16 %v1119
      %v1408 = vunpack.c.l.b16 %v1120
      %v1409 = vunpack.c.l.b16 %v1121
      %v1410 = vunpack.c.l.b16 %v1122
      %v1411 = vunpack.c.l.b16 %v1123
      %v1412 = vunpack.c.l.b16 %v1124
      %v1413 = vunpack.c.l.b16 %v1125
      %v1414 = vunpack.c.l.b16 %v1126
      %v1415 = vunpack.c.l.b16 %v1127
      %v1416 = vunpack.c.l.b16 %v1128
      %v1417 = vunpack.c.l.b16 %v1129
      %v1418 = vunpack.c.l.b16 %v1130
      %v1419 = vunpack.c.l.b16 %v1131
      %v1420 = vunpack.c.l.b16 %v1132
      %v1421 = vunpack.c.l.b16 %v1133
      %v1422 = vunpack.c.l.b16 %v1134
      %v1423 = vunpack.c.l.b16 %v1135
      %v1424 = vunpack.c.l.b16 %v1136
      %v1425 = vunpack.c.l.b16 %v1137
      %v1426 = vunpack.c.l.b16 %v1138
      %v1427 = vunpack.c.l.b16 %v1139
      %v1428 = vunpack.c.l.b16 %v1140
      %v1429 = vunpack.c.l.b16 %v1141
      %v1430 = vunpack.c.l.b16 %v1142
      %v1431 = vunpack.c.l.b16 %v1143
      %v1432 = vunpack.c.l.b16 %v1144
      %v1433 = vunpack.c.l.b16 %v1145
      %v1434 = vunpack.c.l.b16 %v1146
      %v1435 = vunpack.c.l.b16 %v1147
      %v1436 = vunpack.c.l.b16 %v1148
      %v1437 = vunpack.c.l.b16 %v1149
      %v1438 = vunpack.c.l.b16 %v1150
      %v1439 = vunpack.c.l.b16 %v1151
      %v1440 = vunpack.c.l.b16 %v1152
      %v1441 = vunpack.c.l.b16 %v1153
      %v1442 = vunpack.c.l.b16 %v1154
      %v1443 = vunpack.c.l.b16 %v1155
      %v1444 = vunpack.c.l.b16 %v1156
      %v1445 = vunpack.c.l.b16 %v1157
      %v1446 = vunpack.c.l.b16 %v1158
      %v1447 = vunpack.c.l.b16 %v1159
      %v1448 = vunpack.c.l.b16 %v1160
      %v1449 = vunpack.c.l.b16 %v1161
      %v1450 = vunpack.c.l.b16 %v1162
      %v1451 = vunpack.c.l.b16 %v1163
      %v1452 = vunpack.c.l.b16 %v1164
      %v1453 = vunpack.c.l.b16 %v1165
      %v1454 = vunpack.c.l.b16 %v1166
      %v1455 = vunpack.c.l.b16 %v1167
      %v1456 = vunpack.c.l.b16 %v1168
      %v1457 = vunpack.c.l.b16 %v1169
      %v1458 = vunpack.c.l.b16 %v1170
      %v1459 = vunpack.c.l.b16 %v1171
      %v1460 = vunpack.c.l.b16 %v1172
      %v1461 = vunpack.c.l.b16 %v1173
      %v1462 = vunpack.c.l.b16 %v1174
      %v1463 = vunpack.c.l.b16 %v1175
      %v1464 = vunpack.c.l.b16 %v1176
      %v1465 = vunpack.c.l.b16 %v1177
      %v1466 = vunpack.c.l.b16 %v1178
      %v1467 = vunpack.c.l.b16 %v1179
      %v1468 = vunpack.c.l.b16 %v1180
      %v1469 = vunpack.c.l.b16 %v1181
      %v1470 = vunpack.c.l.b16 %v1182
      %v1471 = vunpack.c.l.b16 %v1183
      %v1472 = vunpack.c.l.b16 %v1184
      %v1473 = vunpack.c.l.b16 %v1185
      %v1474 = vunpack.c.l.b16 %v1186
      %v1475 = vunpack.c.l.b16 %v1187
      %v1476 = vunpack.c.l.b16 %v1188
      %v1477 = vunpack.c.l.b16 %v1189
      %v1478 = vunpack.c.l.b16 %v1190
      %v1479 = vunpack.c.l.b16 %v1191
      %v1480 = vunpack.c.l.b16 %v1192
      %v1481 = vunpack.c.l.b16 %v1193
      %v1482 = vunpack.c.l.b16 %v1194
      %v1483 = vunpack.c.l.b16 %v1195
      %v1484 = vunpack.c.l.b16 %v1196
      %v1485 = vunpack.c.l.b16 %v1197
      %v1486 = vunpack.c.l.b16 %v1198
      %v1487 = vunpack.c.l.b16 %v1199
      %v1488 = vunpack.c.l.b16 %v1200
      %v1489 = vunpack.c.l.b16 %v1201
      %v1490 = vunpack.c.l.b16 %v1202
      %v1491 = vunpack.c.l.b16 %v1203
      %v1492 = vunpack.c.l.b16 %v1204
      %v1493 = vunpack.c.l.b16 %v1205
      %v1494 = vunpack.c.l.b16 %v1206
      %v1495 = vunpack.c.l.b16 %v1207
      %v1496 = vunpack.c.l.b16 %v1208
      %v1497 = vunpack.c.l.b16 %v1209
      %v1498 = vunpack.c.l.b16 %v1210
      %v1499 = vunpack.c.l.b16 %v1211
      %v1500 = vunpack.c.l.b16 %v1212
      %v1501 = vunpack.c.l.b16 %v1213
      %v1502 = vpack.c.b16 %v1359, %v1358
      %v1503 = vpack.c.b16 %v1361, %v1360
      %v1504 = vpack.c.b16 %v1363, %v1362
      %v1505 = vpack.c.b16 %v1365, %v1364
      %v1506 = vpack.c.b16 %v1367, %v1366
      %v1507 = vpack.c.b16 %v1369, %v1368
      %v1508 = vpack.c.b16 %v1371, %v1370
      %v1509 = vpack.c.b16 %v1373, %v1372
      %v1510 = vpack.c.b16 %v1375, %v1374
      %v1511 = vpack.c.b16 %v1377, %v1376
      %v1512 = vpack.c.b16 %v1379, %v1378
      %v1513 = vpack.c.b16 %v1381, %v1380
      %v1514 = vpack.c.b16 %v1383, %v1382
      %v1515 = vpack.c.b16 %v1385, %v1384
      %v1516 = vpack.c.b16 %v1387, %v1386
      %v1517 = vpack.c.b16 %v1389, %v1388
      %v1518 = vpack.c.b16 %v1391, %v1390
      %v1519 = vpack.c.b16 %v1393, %v1392
      %v1520 = vpack.c.b16 %v1395, %v1394
      %v1521 = vpack.c.b16 %v1397, %v1396
      %v1522 = vpack.c.b16 %v1399, %v1398
      %v1523 = vpack.c.b16 %v1401, %v1400
      %v1524 = vpack.c.b16 %v1403, %v1402
      %v1525 = vpack.c.b16 %v1405, %v1404
      %v1526 = vpack.c.b16 %v1407, %v1406
      %v1527 = vpack.c.b16 %v1409, %v1408
      %v1528 = vpack.c.b16 %v1411, %v1410
      %v1529 = vpack.c.b16 %v1413, %v1412
      %v1530 = vpack.c.b16 %v1415, %v1414
      %v1531 = vpack.c.b16 %v1417, %v1416
      %v1532 = vpack.c.b16 %v1419, %v1418
      %v1533 = vpack.c.b16 %v1421, %v1420
      %v1534 = vpack.c.b16 %v1423, %v1422
      %v1535 = vpack.c.b16 %v1425, %v1424
      %v1536 = vpack.c.b16 %v1427, %v1426
      %v1537 = vpack.c.b16 %v1429, %v1428
      %v1538 = vpack.c.b16 %v1431, %v1430
      %v1539 = vpack.c.b16 %v1433, %v1432
      %v1540 = vpack.c.b16 %v1435, %v1434
      %v1541 = vpack.c.b16 %v1437, %v1436
      %v1542 = vpack.c.b16 %v1439, %v1438
      %v1543 = vpack.c.b16 %v1441, %v1440
      %v1544 = vpack.c.b16 %v1443, %v1442
      %v1545 = vpack.c.b16 %v1445, %v1444
      %v1546 = vpack.c.b16 %v1447, %v1446
      %v1547 = vpack.c.b16 %v1449, %v1448
      %v1548 = vpack.c.b16 %v1451, %v1450
      %v1549 = vpack.c.b16 %v1453, %v1452
      %v1550 = vpack.c.b16 %v1455, %v1454
      %v1551 = vpack.c.b16 %v1457, %v1456
      %v1552 = vpack.c.b16 %v1459, %v1458
      %v1553 = vpack.c.b16 %v1461, %v1460
      %v1554 = vpack.c.b16 %v1463, %v1462
      %v1555 = vpack.c.b16 %v1465, %v1464
      %v1556 = vpack.c.b16 %v1467, %v1466
      %v1557 = vpack.c.b16 %v1469, %v1468
      %v1558 = vpack.c.b16 %v1471, %v1470
      %v1559 = vpack.c.b16 %v1473, %v1472
      %v1560 = vpack.c.b16 %v1475, %v1474
      %v1561 = vpack.c.b16 %v1477, %v1476
      %v1562 = vpack.c.b16 %v1479, %v1478
      %v1563 = vpack.c.b16 %v1481, %v1480
      %v1564 = vpack.c.b16 %v1483, %v1482
      %v1565 = vpack.c.b16 %v1485, %v1484
      %v1566 = vpack.c.b16 %v1487, %v1486
      %v1567 = vpack.c.b16 %v1489, %v1488
      %v1568 = vpack.c.b16 %v1491, %v1490
      %v1569 = vpack.c.b16 %v1493, %v1492
      %v1570 = vpack.c.b16 %v1495, %v1494
      %v1571 = vpack.c.b16 %v1497, %v1496
      %v1572 = vpack.c.b16 %v1499, %v1498
      %v1573 = vpack.c.b16 %v1501, %v1500
      %1646 = vmatpush.bf16.msra.mxu0 %v1509
      %1647 = vmatpush.bf16.msra.mxu0 %v1508
      %1648 = vmatpush.bf16.msra.mxu0 %v1507
      %1649 = vmatpush.bf16.msra.mxu0 %v1506
      %1650 = vmatpush.bf16.msra.mxu0 %v1505
      %1651 = vmatpush.bf16.msra.mxu0 %v1504
      %1652 = vmatpush.bf16.msra.mxu0 %v1503
      %1653 = vmatpush.bf16.msra.mxu0 %v1502
      %1654 = vmatmul.bf16.gmra.mxu0 %v886
      %v1655 = vpop.f32.mrf.mxu0
      %v1656 = vadd.f32 0.0, %v1655
      %v1657 = vpop.f32.mrf.mxu0
      %v1658 = vadd.f32 0.0, %v1657
      %1659 = vmatmul.bf16.gmra.mxu0 %v887
      %v1660 = vpop.f32.mrf.mxu0
      %v1661 = vadd.f32 0.0, %v1660
      %v1662 = vpop.f32.mrf.mxu0
      %v1663 = vadd.f32 0.0, %v1662
      %1664 = vmatmul.bf16.gmra.mxu0 %v888
      %v1665 = vpop.f32.mrf.mxu0
      %v1666 = vadd.f32 0.0, %v1665
      %v1667 = vpop.f32.mrf.mxu0
      %v1668 = vadd.f32 0.0, %v1667
      %1669 = vmatmul.bf16.gmra.mxu0 %v889
      %v1670 = vpop.f32.mrf.mxu0
      %v1671 = vadd.f32 0.0, %v1670
      %v1672 = vpop.f32.mrf.mxu0
      %v1673 = vadd.f32 0.0, %v1672
      %1674 = vmatmul.bf16.gmra.mxu0 %v890
      %v1675 = vpop.f32.mrf.mxu0
      %v1676 = vadd.f32 0.0, %v1675
      %v1677 = vpop.f32.mrf.mxu0
      %v1678 = vadd.f32 0.0, %v1677
      %1679 = vmatmul.bf16.gmra.mxu0 %v891
      %v1680 = vpop.f32.mrf.mxu0
      %v1681 = vadd.f32 0.0, %v1680
      %v1682 = vpop.f32.mrf.mxu0
      %v1683 = vadd.f32 0.0, %v1682
      %1684 = vmatmul.bf16.gmra.mxu0 %v892
      %v1685 = vpop.f32.mrf.mxu0
      %v1686 = vadd.f32 0.0, %v1685
      %v1687 = vpop.f32.mrf.mxu0
      %v1688 = vadd.f32 0.0, %v1687
      %1689 = vmatmul.bf16.gmra.mxu0 %v893
      %v1690 = vpop.f32.mrf.mxu0
      %v1691 = vadd.f32 0.0, %v1690
      %v1692 = vpop.f32.mrf.mxu0
      %v1693 = vadd.f32 0.0, %v1692
      %1694 = vmatmul.bf16.gmra.mxu0 %v894
      %v1695 = vpop.f32.mrf.mxu0
      %v1696 = vadd.f32 0.0, %v1695
      %v1697 = vpop.f32.mrf.mxu0
      %v1698 = vadd.f32 0.0, %v1697
      %1699 = vmatmul.bf16.gmra.mxu0 %v895
      %v1700 = vpop.f32.mrf.mxu0
      %v1701 = vadd.f32 0.0, %v1700
      %v1702 = vpop.f32.mrf.mxu0
      %v1703 = vadd.f32 0.0, %v1702
      %1704 = vmatmul.bf16.gmra.mxu0 %v896
      %v1705 = vpop.f32.mrf.mxu0
      %v1706 = vadd.f32 0.0, %v1705
      %v1707 = vpop.f32.mrf.mxu0
      %v1708 = vadd.f32 0.0, %v1707
      %1709 = vmatmul.bf16.gmra.mxu0 %v897
      %v1710 = vpop.f32.mrf.mxu0
      %v1711 = vadd.f32 0.0, %v1710
      %v1712 = vpop.f32.mrf.mxu0
      %v1713 = vadd.f32 0.0, %v1712
      %1714 = vmatmul.bf16.gmra.mxu0 %v898
      %v1715 = vpop.f32.mrf.mxu0
      %v1716 = vadd.f32 0.0, %v1715
      %v1717 = vpop.f32.mrf.mxu0
      %v1718 = vadd.f32 0.0, %v1717
      %1719 = vmatmul.bf16.gmra.mxu0 %v899
      %v1720 = vpop.f32.mrf.mxu0
      %v1721 = vadd.f32 0.0, %v1720
      %v1722 = vpop.f32.mrf.mxu0
      %v1723 = vadd.f32 0.0, %v1722
      %1724 = vmatmul.bf16.gmra.mxu0 %v900
      %v1725 = vpop.f32.mrf.mxu0
      %v1726 = vadd.f32 0.0, %v1725
      %v1727 = vpop.f32.mrf.mxu0
      %v1728 = vadd.f32 0.0, %v1727
      %1729 = vmatmul.bf16.gmra.mxu0 %v901
      %v1730 = vpop.f32.mrf.mxu0
      %v1731 = vadd.f32 0.0, %v1730
      %v1732 = vpop.f32.mrf.mxu0
      %v1733 = vadd.f32 0.0, %v1732
      %1734 = vdwg.mxu0
      %1735 = vmatpush.bf16.msra.mxu0 %v1517
      %1736 = vmatpush.bf16.msra.mxu0 %v1516
      %1737 = vmatpush.bf16.msra.mxu0 %v1515
      %1738 = vmatpush.bf16.msra.mxu0 %v1514
      %1739 = vmatpush.bf16.msra.mxu0 %v1513
      %1740 = vmatpush.bf16.msra.mxu0 %v1512
      %1741 = vmatpush.bf16.msra.mxu0 %v1511
      %1742 = vmatpush.bf16.msra.mxu0 %v1510
      %1743 = vmatmul.bf16.gmra.mxu0 %v950
      %v1744 = vpop.f32.mrf.mxu0
      %v1745 = vadd.f32 %v1656, %v1744
      %v1746 = vpop.f32.mrf.mxu0
      %v1747 = vadd.f32 %v1658, %v1746
      %1748 = vmatmul.bf16.gmra.mxu0 %v951
      %v1749 = vpop.f32.mrf.mxu0
      %v1750 = vadd.f32 %v1661, %v1749
      %v1751 = vpop.f32.mrf.mxu0
      %v1752 = vadd.f32 %v1663, %v1751
      %1753 = vmatmul.bf16.gmra.mxu0 %v952
      %v1754 = vpop.f32.mrf.mxu0
      %v1755 = vadd.f32 %v1666, %v1754
      %v1756 = vpop.f32.mrf.mxu0
      %v1757 = vadd.f32 %v1668, %v1756
      %1758 = vmatmul.bf16.gmra.mxu0 %v953
      %v1759 = vpop.f32.mrf.mxu0
      %v1760 = vadd.f32 %v1671, %v1759
      %v1761 = vpop.f32.mrf.mxu0
      %v1762 = vadd.f32 %v1673, %v1761
      %1763 = vmatmul.bf16.gmra.mxu0 %v954
      %v1764 = vpop.f32.mrf.mxu0
      %v1765 = vadd.f32 %v1676, %v1764
      %v1766 = vpop.f32.mrf.mxu0
      %v1767 = vadd.f32 %v1678, %v1766
      %1768 = vmatmul.bf16.gmra.mxu0 %v955
      %v1769 = vpop.f32.mrf.mxu0
      %v1770 = vadd.f32 %v1681, %v1769
      %v1771 = vpop.f32.mrf.mxu0
      %v1772 = vadd.f32 %v1683, %v1771
      %1773 = vmatmul.bf16.gmra.mxu0 %v956
      %v1774 = vpop.f32.mrf.mxu0
      %v1775 = vadd.f32 %v1686, %v1774
      %v1776 = vpop.f32.mrf.mxu0
      %v1777 = vadd.f32 %v1688, %v1776
      %1778 = vmatmul.bf16.gmra.mxu0 %v957
      %v1779 = vpop.f32.mrf.mxu0
      %v1780 = vadd.f32 %v1691, %v1779
      %v1781 = vpop.f32.mrf.mxu0
      %v1782 = vadd.f32 %v1693, %v1781
      %1783 = vmatmul.bf16.gmra.mxu0 %v958
      %v1784 = vpop.f32.mrf.mxu0
      %v1785 = vadd.f32 %v1696, %v1784
      %v1786 = vpop.f32.mrf.mxu0
      %v1787 = vadd.f32 %v1698, %v1786
      %1788 = vmatmul.bf16.gmra.mxu0 %v959
      %v1789 = vpop.f32.mrf.mxu0
      %v1790 = vadd.f32 %v1701, %v1789
      %v1791 = vpop.f32.mrf.mxu0
      %v1792 = vadd.f32 %v1703, %v1791
      %1793 = vmatmul.bf16.gmra.mxu0 %v960
      %v1794 = vpop.f32.mrf.mxu0
      %v1795 = vadd.f32 %v1706, %v1794
      %v1796 = vpop.f32.mrf.mxu0
      %v1797 = vadd.f32 %v1708, %v1796
      %1798 = vmatmul.bf16.gmra.mxu0 %v961
      %v1799 = vpop.f32.mrf.mxu0
      %v1800 = vadd.f32 %v1711, %v1799
      %v1801 = vpop.f32.mrf.mxu0
      %v1802 = vadd.f32 %v1713, %v1801
      %1803 = vmatmul.bf16.gmra.mxu0 %v962
      %v1804 = vpop.f32.mrf.mxu0
      %v1805 = vadd.f32 %v1716, %v1804
      %v1806 = vpop.f32.mrf.mxu0
      %v1807 = vadd.f32 %v1718, %v1806
      %1808 = vmatmul.bf16.gmra.mxu0 %v963
      %v1809 = vpop.f32.mrf.mxu0
      %v1810 = vadd.f32 %v1721, %v1809
      %v1811 = vpop.f32.mrf.mxu0
      %v1812 = vadd.f32 %v1723, %v1811
      %1813 = vmatmul.bf16.gmra.mxu0 %v964
      %v1814 = vpop.f32.mrf.mxu0
      %v1815 = vadd.f32 %v1726, %v1814
      %v1816 = vpop.f32.mrf.mxu0
      %v1817 = vadd.f32 %v1728, %v1816
      %1818 = vmatmul.bf16.gmra.mxu0 %v965
      %v1819 = vpop.f32.mrf.mxu0
      %v1820 = vadd.f32 %v1731, %v1819
      %v1821 = vpop.f32.mrf.mxu0
      %v1822 = vadd.f32 %v1733, %v1821
      %1823 = vdwg.mxu0
      %1824 = vmatpush.bf16.msra.mxu0 %v1525
      %1825 = vmatpush.bf16.msra.mxu0 %v1524
      %1826 = vmatpush.bf16.msra.mxu0 %v1523
      %1827 = vmatpush.bf16.msra.mxu0 %v1522
      %1828 = vmatpush.bf16.msra.mxu0 %v1521
      %1829 = vmatpush.bf16.msra.mxu0 %v1520
      %1830 = vmatpush.bf16.msra.mxu0 %v1519
      %1831 = vmatpush.bf16.msra.mxu0 %v1518
      %1832 = vmatmul.bf16.gmra.mxu0 %v1014
      %v1833 = vpop.f32.mrf.mxu0
      %v1834 = vadd.f32 %v1745, %v1833
      %v1835 = vpop.f32.mrf.mxu0
      %v1836 = vadd.f32 %v1747, %v1835
      %1837 = vmatmul.bf16.gmra.mxu0 %v1015
      %v1838 = vpop.f32.mrf.mxu0
      %v1839 = vadd.f32 %v1750, %v1838
      %v1840 = vpop.f32.mrf.mxu0
      %v1841 = vadd.f32 %v1752, %v1840
      %1842 = vmatmul.bf16.gmra.mxu0 %v1016
      %v1843 = vpop.f32.mrf.mxu0
      %v1844 = vadd.f32 %v1755, %v1843
      %v1845 = vpop.f32.mrf.mxu0
      %v1846 = vadd.f32 %v1757, %v1845
      %1847 = vmatmul.bf16.gmra.mxu0 %v1017
      %v1848 = vpop.f32.mrf.mxu0
      %v1849 = vadd.f32 %v1760, %v1848
      %v1850 = vpop.f32.mrf.mxu0
      %v1851 = vadd.f32 %v1762, %v1850
      %1852 = vmatmul.bf16.gmra.mxu0 %v1018
      %v1853 = vpop.f32.mrf.mxu0
      %v1854 = vadd.f32 %v1765, %v1853
      %v1855 = vpop.f32.mrf.mxu0
      %v1856 = vadd.f32 %v1767, %v1855
      %1857 = vmatmul.bf16.gmra.mxu0 %v1019
      %v1858 = vpop.f32.mrf.mxu0
      %v1859 = vadd.f32 %v1770, %v1858
      %v1860 = vpop.f32.mrf.mxu0
      %v1861 = vadd.f32 %v1772, %v1860
      %1862 = vmatmul.bf16.gmra.mxu0 %v1020
      %v1863 = vpop.f32.mrf.mxu0
      %v1864 = vadd.f32 %v1775, %v1863
      %v1865 = vpop.f32.mrf.mxu0
      %v1866 = vadd.f32 %v1777, %v1865
      %1867 = vmatmul.bf16.gmra.mxu0 %v1021
      %v1868 = vpop.f32.mrf.mxu0
      %v1869 = vadd.f32 %v1780, %v1868
      %v1870 = vpop.f32.mrf.mxu0
      %v1871 = vadd.f32 %v1782, %v1870
      %1872 = vmatmul.bf16.gmra.mxu0 %v1022
      %v1873 = vpop.f32.mrf.mxu0
      %v1874 = vadd.f32 %v1785, %v1873
      %v1875 = vpop.f32.mrf.mxu0
      %v1876 = vadd.f32 %v1787, %v1875
      %1877 = vmatmul.bf16.gmra.mxu0 %v1023
      %v1878 = vpop.f32.mrf.mxu0
      %v1879 = vadd.f32 %v1790, %v1878
      %v1880 = vpop.f32.mrf.mxu0
      %v1881 = vadd.f32 %v1792, %v1880
      %1882 = vmatmul.bf16.gmra.mxu0 %v1024
      %v1883 = vpop.f32.mrf.mxu0
      %v1884 = vadd.f32 %v1795, %v1883
      %v1885 = vpop.f32.mrf.mxu0
      %v1886 = vadd.f32 %v1797, %v1885
      %1887 = vmatmul.bf16.gmra.mxu0 %v1025
      %v1888 = vpop.f32.mrf.mxu0
      %v1889 = vadd.f32 %v1800, %v1888
      %v1890 = vpop.f32.mrf.mxu0
      %v1891 = vadd.f32 %v1802, %v1890
      %1892 = vmatmul.bf16.gmra.mxu0 %v1026
      %v1893 = vpop.f32.mrf.mxu0
      %v1894 = vadd.f32 %v1805, %v1893
      %v1895 = vpop.f32.mrf.mxu0
      %v1896 = vadd.f32 %v1807, %v1895
      %1897 = vmatmul.bf16.gmra.mxu0 %v1027
      %v1898 = vpop.f32.mrf.mxu0
      %v1899 = vadd.f32 %v1810, %v1898
      %v1900 = vpop.f32.mrf.mxu0
      %v1901 = vadd.f32 %v1812, %v1900
      %1902 = vmatmul.bf16.gmra.mxu0 %v1028
      %v1903 = vpop.f32.mrf.mxu0
      %v1904 = vadd.f32 %v1815, %v1903
      %v1905 = vpop.f32.mrf.mxu0
      %v1906 = vadd.f32 %v1817, %v1905
      %1907 = vmatmul.bf16.gmra.mxu0 %v1029
      %v1908 = vpop.f32.mrf.mxu0
      %v1909 = vadd.f32 %v1820, %v1908
      %v1910 = vpop.f32.mrf.mxu0
      %v1911 = vadd.f32 %v1822, %v1910
      %1912 = vdwg.mxu0
      %1913 = vmatpush.bf16.msra.mxu0 %v1533
      %1914 = vmatpush.bf16.msra.mxu0 %v1532
      %1915 = vmatpush.bf16.msra.mxu0 %v1531
      %1916 = vmatpush.bf16.msra.mxu0 %v1530
      %1917 = vmatpush.bf16.msra.mxu0 %v1529
      %1918 = vmatpush.bf16.msra.mxu0 %v1528
      %1919 = vmatpush.bf16.msra.mxu0 %v1527
      %1920 = vmatpush.bf16.msra.mxu0 %v1526
      %1921 = vmatmul.bf16.gmra.mxu0 %v887
      %v1922 = vpop.f32.mrf.mxu0
      %v1923 = vadd.f32 %v1834, %v1922
      %v1924 = vpop.f32.mrf.mxu0
      %v1925 = vadd.f32 %v1836, %v1924
      %1926 = vmatmul.bf16.gmra.mxu0 %v888
      %v1927 = vpop.f32.mrf.mxu0
      %v1928 = vadd.f32 %v1839, %v1927
      %v1929 = vpop.f32.mrf.mxu0
      %v1930 = vadd.f32 %v1841, %v1929
      %1931 = vmatmul.bf16.gmra.mxu0 %v889
      %v1932 = vpop.f32.mrf.mxu0
      %v1933 = vadd.f32 %v1844, %v1932
      %v1934 = vpop.f32.mrf.mxu0
      %v1935 = vadd.f32 %v1846, %v1934
      %1936 = vmatmul.bf16.gmra.mxu0 %v890
      %v1937 = vpop.f32.mrf.mxu0
      %v1938 = vadd.f32 %v1849, %v1937
      %v1939 = vpop.f32.mrf.mxu0
      %v1940 = vadd.f32 %v1851, %v1939
      %1941 = vmatmul.bf16.gmra.mxu0 %v891
      %v1942 = vpop.f32.mrf.mxu0
      %v1943 = vadd.f32 %v1854, %v1942
      %v1944 = vpop.f32.mrf.mxu0
      %v1945 = vadd.f32 %v1856, %v1944
      %1946 = vmatmul.bf16.gmra.mxu0 %v892
      %v1947 = vpop.f32.mrf.mxu0
      %v1948 = vadd.f32 %v1859, %v1947
      %v1949 = vpop.f32.mrf.mxu0
      %v1950 = vadd.f32 %v1861, %v1949
      %1951 = vmatmul.bf16.gmra.mxu0 %v893
      %v1952 = vpop.f32.mrf.mxu0
      %v1953 = vadd.f32 %v1864, %v1952
      %v1954 = vpop.f32.mrf.mxu0
      %v1955 = vadd.f32 %v1866, %v1954
      %1956 = vmatmul.bf16.gmra.mxu0 %v894
      %v1957 = vpop.f32.mrf.mxu0
      %v1958 = vadd.f32 %v1869, %v1957
      %v1959 = vpop.f32.mrf.mxu0
      %v1960 = vadd.f32 %v1871, %v1959
      %1961 = vmatmul.bf16.gmra.mxu0 %v895
      %v1962 = vpop.f32.mrf.mxu0
      %v1963 = vadd.f32 %v1874, %v1962
      %v1964 = vpop.f32.mrf.mxu0
      %v1965 = vadd.f32 %v1876, %v1964
      %1966 = vmatmul.bf16.gmra.mxu0 %v896
      %v1967 = vpop.f32.mrf.mxu0
      %v1968 = vadd.f32 %v1879, %v1967
      %v1969 = vpop.f32.mrf.mxu0
      %v1970 = vadd.f32 %v1881, %v1969
      %1971 = vmatmul.bf16.gmra.mxu0 %v897
      %v1972 = vpop.f32.mrf.mxu0
      %v1973 = vadd.f32 %v1884, %v1972
      %v1974 = vpop.f32.mrf.mxu0
      %v1975 = vadd.f32 %v1886, %v1974
      %1976 = vmatmul.bf16.gmra.mxu0 %v898
      %v1977 = vpop.f32.mrf.mxu0
      %v1978 = vadd.f32 %v1889, %v1977
      %v1979 = vpop.f32.mrf.mxu0
      %v1980 = vadd.f32 %v1891, %v1979
      %1981 = vmatmul.bf16.gmra.mxu0 %v899
      %v1982 = vpop.f32.mrf.mxu0
      %v1983 = vadd.f32 %v1894, %v1982
      %v1984 = vpop.f32.mrf.mxu0
      %v1985 = vadd.f32 %v1896, %v1984
      %1986 = vmatmul.bf16.gmra.mxu0 %v900
      %v1987 = vpop.f32.mrf.mxu0
      %v1988 = vadd.f32 %v1899, %v1987
      %v1989 = vpop.f32.mrf.mxu0
      %v1990 = vadd.f32 %v1901, %v1989
      %1991 = vmatmul.bf16.gmra.mxu0 %v901
      %v1992 = vpop.f32.mrf.mxu0
      %v1993 = vadd.f32 %v1904, %v1992
      %v1994 = vpop.f32.mrf.mxu0
      %v1995 = vadd.f32 %v1906, %v1994
      %1996 = vmatmul.bf16.gmra.mxu0 %v1048
      %v1997 = vpop.f32.mrf.mxu0
      %v1998 = vadd.f32 %v1909, %v1997
      %v1999 = vpop.f32.mrf.mxu0
      %v2000 = vadd.f32 %v1911, %v1999
      %2001 = vdwg.mxu0
      %2002 = vmatpush.bf16.msra.mxu0 %v1541
      %2003 = vmatpush.bf16.msra.mxu0 %v1540
      %2004 = vmatpush.bf16.msra.mxu0 %v1539
      %2005 = vmatpush.bf16.msra.mxu0 %v1538
      %2006 = vmatpush.bf16.msra.mxu0 %v1537
      %2007 = vmatpush.bf16.msra.mxu0 %v1536
      %2008 = vmatpush.bf16.msra.mxu0 %v1535
      %2009 = vmatpush.bf16.msra.mxu0 %v1534
      %2010 = vmatmul.bf16.gmra.mxu0 %v951
      %v2011 = vpop.f32.mrf.mxu0
      %v2012 = vadd.f32 %v1923, %v2011
      %v2013 = vpop.f32.mrf.mxu0
      %v2014 = vadd.f32 %v1925, %v2013
      %2015 = vmatmul.bf16.gmra.mxu0 %v952
      %v2016 = vpop.f32.mrf.mxu0
      %v2017 = vadd.f32 %v1928, %v2016
      %v2018 = vpop.f32.mrf.mxu0
      %v2019 = vadd.f32 %v1930, %v2018
      %2020 = vmatmul.bf16.gmra.mxu0 %v953
      %v2021 = vpop.f32.mrf.mxu0
      %v2022 = vadd.f32 %v1933, %v2021
      %v2023 = vpop.f32.mrf.mxu0
      %v2024 = vadd.f32 %v1935, %v2023
      %2025 = vmatmul.bf16.gmra.mxu0 %v954
      %v2026 = vpop.f32.mrf.mxu0
      %v2027 = vadd.f32 %v1938, %v2026
      %v2028 = vpop.f32.mrf.mxu0
      %v2029 = vadd.f32 %v1940, %v2028
      %2030 = vmatmul.bf16.gmra.mxu0 %v955
      %v2031 = vpop.f32.mrf.mxu0
      %v2032 = vadd.f32 %v1943, %v2031
      %v2033 = vpop.f32.mrf.mxu0
      %v2034 = vadd.f32 %v1945, %v2033
      %2035 = vmatmul.bf16.gmra.mxu0 %v956
      %v2036 = vpop.f32.mrf.mxu0
      %v2037 = vadd.f32 %v1948, %v2036
      %v2038 = vpop.f32.mrf.mxu0
      %v2039 = vadd.f32 %v1950, %v2038
      %2040 = vmatmul.bf16.gmra.mxu0 %v957
      %v2041 = vpop.f32.mrf.mxu0
      %v2042 = vadd.f32 %v1953, %v2041
      %v2043 = vpop.f32.mrf.mxu0
      %v2044 = vadd.f32 %v1955, %v2043
      %2045 = vmatmul.bf16.gmra.mxu0 %v958
      %v2046 = vpop.f32.mrf.mxu0
      %v2047 = vadd.f32 %v1958, %v2046
      %v2048 = vpop.f32.mrf.mxu0
      %v2049 = vadd.f32 %v1960, %v2048
      %2050 = vmatmul.bf16.gmra.mxu0 %v959
      %v2051 = vpop.f32.mrf.mxu0
      %v2052 = vadd.f32 %v1963, %v2051
      %v2053 = vpop.f32.mrf.mxu0
      %v2054 = vadd.f32 %v1965, %v2053
      %2055 = vmatmul.bf16.gmra.mxu0 %v960
      %v2056 = vpop.f32.mrf.mxu0
      %v2057 = vadd.f32 %v1968, %v2056
      %v2058 = vpop.f32.mrf.mxu0
      %v2059 = vadd.f32 %v1970, %v2058
      %2060 = vmatmul.bf16.gmra.mxu0 %v961
      %v2061 = vpop.f32.mrf.mxu0
      %v2062 = vadd.f32 %v1973, %v2061
      %v2063 = vpop.f32.mrf.mxu0
      %v2064 = vadd.f32 %v1975, %v2063
      %2065 = vmatmul.bf16.gmra.mxu0 %v962
      %v2066 = vpop.f32.mrf.mxu0
      %v2067 = vadd.f32 %v1978, %v2066
      %v2068 = vpop.f32.mrf.mxu0
      %v2069 = vadd.f32 %v1980, %v2068
      %2070 = vmatmul.bf16.gmra.mxu0 %v963
      %v2071 = vpop.f32.mrf.mxu0
      %v2072 = vadd.f32 %v1983, %v2071
      %v2073 = vpop.f32.mrf.mxu0
      %v2074 = vadd.f32 %v1985, %v2073
      %2075 = vmatmul.bf16.gmra.mxu0 %v964
      %v2076 = vpop.f32.mrf.mxu0
      %v2077 = vadd.f32 %v1988, %v2076
      %v2078 = vpop.f32.mrf.mxu0
      %v2079 = vadd.f32 %v1990, %v2078
      %2080 = vmatmul.bf16.gmra.mxu0 %v965
      %v2081 = vpop.f32.mrf.mxu0
      %v2082 = vadd.f32 %v1993, %v2081
      %v2083 = vpop.f32.mrf.mxu0
      %v2084 = vadd.f32 %v1995, %v2083
      %2085 = vmatmul.bf16.gmra.mxu0 %v1052
      %v2086 = vpop.f32.mrf.mxu0
      %v2087 = vadd.f32 %v1998, %v2086
      %v2088 = vpop.f32.mrf.mxu0
      %v2089 = vadd.f32 %v2000, %v2088
      %2090 = vdwg.mxu0
      %2091 = vmatpush.bf16.msra.mxu0 %v1549
      %2092 = vmatpush.bf16.msra.mxu0 %v1548
      %2093 = vmatpush.bf16.msra.mxu0 %v1547
      %2094 = vmatpush.bf16.msra.mxu0 %v1546
      %2095 = vmatpush.bf16.msra.mxu0 %v1545
      %2096 = vmatpush.bf16.msra.mxu0 %v1544
      %2097 = vmatpush.bf16.msra.mxu0 %v1543
      %2098 = vmatpush.bf16.msra.mxu0 %v1542
      %2099 = vmatmul.bf16.gmra.mxu0 %v1015
      %v2100 = vpop.f32.mrf.mxu0
      %v2101 = vadd.f32 %v2012, %v2100
      %v2102 = vpop.f32.mrf.mxu0
      %v2103 = vadd.f32 %v2014, %v2102
      %2104 = vmatmul.bf16.gmra.mxu0 %v1016
      %v2105 = vpop.f32.mrf.mxu0
      %v2106 = vadd.f32 %v2017, %v2105
      %v2107 = vpop.f32.mrf.mxu0
      %v2108 = vadd.f32 %v2019, %v2107
      %2109 = vmatmul.bf16.gmra.mxu0 %v1017
      %v2110 = vpop.f32.mrf.mxu0
      %v2111 = vadd.f32 %v2022, %v2110
      %v2112 = vpop.f32.mrf.mxu0
      %v2113 = vadd.f32 %v2024, %v2112
      %2114 = vmatmul.bf16.gmra.mxu0 %v1018
      %v2115 = vpop.f32.mrf.mxu0
      %v2116 = vadd.f32 %v2027, %v2115
      %v2117 = vpop.f32.mrf.mxu0
      %v2118 = vadd.f32 %v2029, %v2117
      %2119 = vmatmul.bf16.gmra.mxu0 %v1019
      %v2120 = vpop.f32.mrf.mxu0
      %v2121 = vadd.f32 %v2032, %v2120
      %v2122 = vpop.f32.mrf.mxu0
      %v2123 = vadd.f32 %v2034, %v2122
      %2124 = vmatmul.bf16.gmra.mxu0 %v1020
      %v2125 = vpop.f32.mrf.mxu0
      %v2126 = vadd.f32 %v2037, %v2125
      %v2127 = vpop.f32.mrf.mxu0
      %v2128 = vadd.f32 %v2039, %v2127
      %2129 = vmatmul.bf16.gmra.mxu0 %v1021
      %v2130 = vpop.f32.mrf.mxu0
      %v2131 = vadd.f32 %v2042, %v2130
      %v2132 = vpop.f32.mrf.mxu0
      %v2133 = vadd.f32 %v2044, %v2132
      %2134 = vmatmul.bf16.gmra.mxu0 %v1022
      %v2135 = vpop.f32.mrf.mxu0
      %v2136 = vadd.f32 %v2047, %v2135
      %v2137 = vpop.f32.mrf.mxu0
      %v2138 = vadd.f32 %v2049, %v2137
      %2139 = vmatmul.bf16.gmra.mxu0 %v1023
      %v2140 = vpop.f32.mrf.mxu0
      %v2141 = vadd.f32 %v2052, %v2140
      %v2142 = vpop.f32.mrf.mxu0
      %v2143 = vadd.f32 %v2054, %v2142
      %2144 = vmatmul.bf16.gmra.mxu0 %v1024
      %v2145 = vpop.f32.mrf.mxu0
      %v2146 = vadd.f32 %v2057, %v2145
      %v2147 = vpop.f32.mrf.mxu0
      %v2148 = vadd.f32 %v2059, %v2147
      %2149 = vmatmul.bf16.gmra.mxu0 %v1025
      %v2150 = vpop.f32.mrf.mxu0
      %v2151 = vadd.f32 %v2062, %v2150
      %v2152 = vpop.f32.mrf.mxu0
      %v2153 = vadd.f32 %v2064, %v2152
      %2154 = vmatmul.bf16.gmra.mxu0 %v1026
      %v2155 = vpop.f32.mrf.mxu0
      %v2156 = vadd.f32 %v2067, %v2155
      %v2157 = vpop.f32.mrf.mxu0
      %v2158 = vadd.f32 %v2069, %v2157
      %2159 = vmatmul.bf16.gmra.mxu0 %v1027
      %v2160 = vpop.f32.mrf.mxu0
      %v2161 = vadd.f32 %v2072, %v2160
      %v2162 = vpop.f32.mrf.mxu0
      %v2163 = vadd.f32 %v2074, %v2162
      %2164 = vmatmul.bf16.gmra.mxu0 %v1028
      %v2165 = vpop.f32.mrf.mxu0
      %v2166 = vadd.f32 %v2077, %v2165
      %v2167 = vpop.f32.mrf.mxu0
      %v2168 = vadd.f32 %v2079, %v2167
      %2169 = vmatmul.bf16.gmra.mxu0 %v1029
      %v2170 = vpop.f32.mrf.mxu0
      %v2171 = vadd.f32 %v2082, %v2170
      %v2172 = vpop.f32.mrf.mxu0
      %v2173 = vadd.f32 %v2084, %v2172
      %2174 = vmatmul.bf16.gmra.mxu0 %v1056
      %v2175 = vpop.f32.mrf.mxu0
      %v2176 = vadd.f32 %v2087, %v2175
      %v2177 = vpop.f32.mrf.mxu0
      %v2178 = vadd.f32 %v2089, %v2177
      %2179 = vdwg.mxu0
      %2180 = vmatpush.bf16.msra.mxu0 %v1557
      %2181 = vmatpush.bf16.msra.mxu0 %v1556
      %2182 = vmatpush.bf16.msra.mxu0 %v1555
      %2183 = vmatpush.bf16.msra.mxu0 %v1554
      %2184 = vmatpush.bf16.msra.mxu0 %v1553
      %2185 = vmatpush.bf16.msra.mxu0 %v1552
      %2186 = vmatpush.bf16.msra.mxu0 %v1551
      %2187 = vmatpush.bf16.msra.mxu0 %v1550
      %2188 = vmatmul.bf16.gmra.mxu0 %v888
      %v2189 = vpop.f32.mrf.mxu0
      %v2190 = vadd.f32 %v2101, %v2189
      %v2191 = vpop.f32.mrf.mxu0
      %v2192 = vadd.f32 %v2103, %v2191
      %2193 = vmatmul.bf16.gmra.mxu0 %v889
      %v2194 = vpop.f32.mrf.mxu0
      %v2195 = vadd.f32 %v2106, %v2194
      %v2196 = vpop.f32.mrf.mxu0
      %v2197 = vadd.f32 %v2108, %v2196
      %2198 = vmatmul.bf16.gmra.mxu0 %v890
      %v2199 = vpop.f32.mrf.mxu0
      %v2200 = vadd.f32 %v2111, %v2199
      %v2201 = vpop.f32.mrf.mxu0
      %v2202 = vadd.f32 %v2113, %v2201
      %2203 = vmatmul.bf16.gmra.mxu0 %v891
      %v2204 = vpop.f32.mrf.mxu0
      %v2205 = vadd.f32 %v2116, %v2204
      %v2206 = vpop.f32.mrf.mxu0
      %v2207 = vadd.f32 %v2118, %v2206
      %2208 = vmatmul.bf16.gmra.mxu0 %v892
      %v2209 = vpop.f32.mrf.mxu0
      %v2210 = vadd.f32 %v2121, %v2209
      %v2211 = vpop.f32.mrf.mxu0
      %v2212 = vadd.f32 %v2123, %v2211
      %2213 = vmatmul.bf16.gmra.mxu0 %v893
      %v2214 = vpop.f32.mrf.mxu0
      %v2215 = vadd.f32 %v2126, %v2214
      %v2216 = vpop.f32.mrf.mxu0
      %v2217 = vadd.f32 %v2128, %v2216
      %2218 = vmatmul.bf16.gmra.mxu0 %v894
      %v2219 = vpop.f32.mrf.mxu0
      %v2220 = vadd.f32 %v2131, %v2219
      %v2221 = vpop.f32.mrf.mxu0
      %v2222 = vadd.f32 %v2133, %v2221
      %2223 = vmatmul.bf16.gmra.mxu0 %v895
      %v2224 = vpop.f32.mrf.mxu0
      %v2225 = vadd.f32 %v2136, %v2224
      %v2226 = vpop.f32.mrf.mxu0
      %v2227 = vadd.f32 %v2138, %v2226
      %2228 = vmatmul.bf16.gmra.mxu0 %v896
      %v2229 = vpop.f32.mrf.mxu0
      %v2230 = vadd.f32 %v2141, %v2229
      %v2231 = vpop.f32.mrf.mxu0
      %v2232 = vadd.f32 %v2143, %v2231
      %2233 = vmatmul.bf16.gmra.mxu0 %v897
      %v2234 = vpop.f32.mrf.mxu0
      %v2235 = vadd.f32 %v2146, %v2234
      %v2236 = vpop.f32.mrf.mxu0
      %v2237 = vadd.f32 %v2148, %v2236
      %2238 = vmatmul.bf16.gmra.mxu0 %v898
      %v2239 = vpop.f32.mrf.mxu0
      %v2240 = vadd.f32 %v2151, %v2239
      %v2241 = vpop.f32.mrf.mxu0
      %v2242 = vadd.f32 %v2153, %v2241
      %2243 = vmatmul.bf16.gmra.mxu0 %v899
      %v2244 = vpop.f32.mrf.mxu0
      %v2245 = vadd.f32 %v2156, %v2244
      %v2246 = vpop.f32.mrf.mxu0
      %v2247 = vadd.f32 %v2158, %v2246
      %2248 = vmatmul.bf16.gmra.mxu0 %v900
      %v2249 = vpop.f32.mrf.mxu0
      %v2250 = vadd.f32 %v2161, %v2249
      %v2251 = vpop.f32.mrf.mxu0
      %v2252 = vadd.f32 %v2163, %v2251
      %2253 = vmatmul.bf16.gmra.mxu0 %v901
      %v2254 = vpop.f32.mrf.mxu0
      %v2255 = vadd.f32 %v2166, %v2254
      %v2256 = vpop.f32.mrf.mxu0
      %v2257 = vadd.f32 %v2168, %v2256
      %2258 = vmatmul.bf16.gmra.mxu0 %v1048
      %v2259 = vpop.f32.mrf.mxu0
      %v2260 = vadd.f32 %v2171, %v2259
      %v2261 = vpop.f32.mrf.mxu0
      %v2262 = vadd.f32 %v2173, %v2261
      %2263 = vmatmul.bf16.gmra.mxu0 %v1060
      %v2264 = vpop.f32.mrf.mxu0
      %v2265 = vadd.f32 %v2176, %v2264
      %v2266 = vpop.f32.mrf.mxu0
      %v2267 = vadd.f32 %v2178, %v2266
      %2268 = vdwg.mxu0
      %2269 = vmatpush.bf16.msra.mxu0 %v1565
      %2270 = vmatpush.bf16.msra.mxu0 %v1564
      %2271 = vmatpush.bf16.msra.mxu0 %v1563
      %2272 = vmatpush.bf16.msra.mxu0 %v1562
      %2273 = vmatpush.bf16.msra.mxu0 %v1561
      %2274 = vmatpush.bf16.msra.mxu0 %v1560
      %2275 = vmatpush.bf16.msra.mxu0 %v1559
      %2276 = vmatpush.bf16.msra.mxu0 %v1558
      %2277 = vmatmul.bf16.gmra.mxu0 %v952
      %v2278 = vpop.f32.mrf.mxu0
      %v2279 = vadd.f32 %v2190, %v2278
      %v2280 = vpop.f32.mrf.mxu0
      %v2281 = vadd.f32 %v2192, %v2280
      %2282 = vmatmul.bf16.gmra.mxu0 %v953
      %v2283 = vpop.f32.mrf.mxu0
      %v2284 = vadd.f32 %v2195, %v2283
      %v2285 = vpop.f32.mrf.mxu0
      %v2286 = vadd.f32 %v2197, %v2285
      %2287 = vmatmul.bf16.gmra.mxu0 %v954
      %v2288 = vpop.f32.mrf.mxu0
      %v2289 = vadd.f32 %v2200, %v2288
      %v2290 = vpop.f32.mrf.mxu0
      %v2291 = vadd.f32 %v2202, %v2290
      %2292 = vmatmul.bf16.gmra.mxu0 %v955
      %v2293 = vpop.f32.mrf.mxu0
      %v2294 = vadd.f32 %v2205, %v2293
      %v2295 = vpop.f32.mrf.mxu0
      %v2296 = vadd.f32 %v2207, %v2295
      %2297 = vmatmul.bf16.gmra.mxu0 %v956
      %v2298 = vpop.f32.mrf.mxu0
      %v2299 = vadd.f32 %v2210, %v2298
      %v2300 = vpop.f32.mrf.mxu0
      %v2301 = vadd.f32 %v2212, %v2300
      %2302 = vmatmul.bf16.gmra.mxu0 %v957
      %v2303 = vpop.f32.mrf.mxu0
      %v2304 = vadd.f32 %v2215, %v2303
      %v2305 = vpop.f32.mrf.mxu0
      %v2306 = vadd.f32 %v2217, %v2305
      %2307 = vmatmul.bf16.gmra.mxu0 %v958
      %v2308 = vpop.f32.mrf.mxu0
      %v2309 = vadd.f32 %v2220, %v2308
      %v2310 = vpop.f32.mrf.mxu0
      %v2311 = vadd.f32 %v2222, %v2310
      %2312 = vmatmul.bf16.gmra.mxu0 %v959
      %v2313 = vpop.f32.mrf.mxu0
      %v2314 = vadd.f32 %v2225, %v2313
      %v2315 = vpop.f32.mrf.mxu0
      %v2316 = vadd.f32 %v2227, %v2315
      %2317 = vmatmul.bf16.gmra.mxu0 %v960
      %v2318 = vpop.f32.mrf.mxu0
      %v2319 = vadd.f32 %v2230, %v2318
      %v2320 = vpop.f32.mrf.mxu0
      %v2321 = vadd.f32 %v2232, %v2320
      %2322 = vmatmul.bf16.gmra.mxu0 %v961
      %v2323 = vpop.f32.mrf.mxu0
      %v2324 = vadd.f32 %v2235, %v2323
      %v2325 = vpop.f32.mrf.mxu0
      %v2326 = vadd.f32 %v2237, %v2325
      %2327 = vmatmul.bf16.gmra.mxu0 %v962
      %v2328 = vpop.f32.mrf.mxu0
      %v2329 = vadd.f32 %v2240, %v2328
      %v2330 = vpop.f32.mrf.mxu0
      %v2331 = vadd.f32 %v2242, %v2330
      %2332 = vmatmul.bf16.gmra.mxu0 %v963
      %v2333 = vpop.f32.mrf.mxu0
      %v2334 = vadd.f32 %v2245, %v2333
      %v2335 = vpop.f32.mrf.mxu0
      %v2336 = vadd.f32 %v2247, %v2335
      %2337 = vmatmul.bf16.gmra.mxu0 %v964
      %v2338 = vpop.f32.mrf.mxu0
      %v2339 = vadd.f32 %v2250, %v2338
      %v2340 = vpop.f32.mrf.mxu0
      %v2341 = vadd.f32 %v2252, %v2340
      %2342 = vmatmul.bf16.gmra.mxu0 %v965
      %v2343 = vpop.f32.mrf.mxu0
      %v2344 = vadd.f32 %v2255, %v2343
      %v2345 = vpop.f32.mrf.mxu0
      %v2346 = vadd.f32 %v2257, %v2345
      %2347 = vmatmul.bf16.gmra.mxu0 %v1052
      %v2348 = vpop.f32.mrf.mxu0
      %v2349 = vadd.f32 %v2260, %v2348
      %v2350 = vpop.f32.mrf.mxu0
      %v2351 = vadd.f32 %v2262, %v2350
      %2352 = vmatmul.bf16.gmra.mxu0 %v1064
      %v2353 = vpop.f32.mrf.mxu0
      %v2354 = vadd.f32 %v2265, %v2353
      %v2355 = vpop.f32.mrf.mxu0
      %v2356 = vadd.f32 %v2267, %v2355
      %2357 = vdwg.mxu0
      %2358 = vmatpush.bf16.msra.mxu0 %v1573
      %2359 = vmatpush.bf16.msra.mxu0 %v1572
      %2360 = vmatpush.bf16.msra.mxu0 %v1571
      %2361 = vmatpush.bf16.msra.mxu0 %v1570
      %2362 = vmatpush.bf16.msra.mxu0 %v1569
      %2363 = vmatpush.bf16.msra.mxu0 %v1568
      %2364 = vmatpush.bf16.msra.mxu0 %v1567
      %2365 = vmatpush.bf16.msra.mxu0 %v1566
      %2366 = vmatmul.bf16.gmra.mxu0 %v1016
      %v2367 = vpop.f32.mrf.mxu0
      %v2368 = vadd.f32 %v2279, %v2367
      %v2369 = vpop.f32.mrf.mxu0
      %v2370 = vadd.f32 %v2281, %v2369
      %2371 = vmatmul.bf16.gmra.mxu0 %v1017
      %v2372 = vpop.f32.mrf.mxu0
      %v2373 = vadd.f32 %v2284, %v2372
      %v2374 = vpop.f32.mrf.mxu0
      %v2375 = vadd.f32 %v2286, %v2374
      %2376 = vmatmul.bf16.gmra.mxu0 %v1018
      %v2377 = vpop.f32.mrf.mxu0
      %v2378 = vadd.f32 %v2289, %v2377
      %v2379 = vpop.f32.mrf.mxu0
      %v2380 = vadd.f32 %v2291, %v2379
      %2381 = vmatmul.bf16.gmra.mxu0 %v1019
      %v2382 = vpop.f32.mrf.mxu0
      %v2383 = vadd.f32 %v2294, %v2382
      %v2384 = vpop.f32.mrf.mxu0
      %v2385 = vadd.f32 %v2296, %v2384
      %2386 = vmatmul.bf16.gmra.mxu0 %v1020
      %v2387 = vpop.f32.mrf.mxu0
      %v2388 = vadd.f32 %v2299, %v2387
      %v2389 = vpop.f32.mrf.mxu0
      %v2390 = vadd.f32 %v2301, %v2389
      %2391 = vmatmul.bf16.gmra.mxu0 %v1021
      %v2392 = vpop.f32.mrf.mxu0
      %v2393 = vadd.f32 %v2304, %v2392
      %v2394 = vpop.f32.mrf.mxu0
      %v2395 = vadd.f32 %v2306, %v2394
      %2396 = vmatmul.bf16.gmra.mxu0 %v1022
      %v2397 = vpop.f32.mrf.mxu0
      %v2398 = vadd.f32 %v2309, %v2397
      %v2399 = vpop.f32.mrf.mxu0
      %v2400 = vadd.f32 %v2311, %v2399
      %2401 = vmatmul.bf16.gmra.mxu0 %v1023
      %v2402 = vpop.f32.mrf.mxu0
      %v2403 = vadd.f32 %v2314, %v2402
      %v2404 = vpop.f32.mrf.mxu0
      %v2405 = vadd.f32 %v2316, %v2404
      %2406 = vmatmul.bf16.gmra.mxu0 %v1024
      %v2407 = vpop.f32.mrf.mxu0
      %v2408 = vadd.f32 %v2319, %v2407
      %v2409 = vpop.f32.mrf.mxu0
      %v2410 = vadd.f32 %v2321, %v2409
      %2411 = vmatmul.bf16.gmra.mxu0 %v1025
      %v2412 = vpop.f32.mrf.mxu0
      %v2413 = vadd.f32 %v2324, %v2412
      %v2414 = vpop.f32.mrf.mxu0
      %v2415 = vadd.f32 %v2326, %v2414
      %2416 = vmatmul.bf16.gmra.mxu0 %v1026
      %v2417 = vpop.f32.mrf.mxu0
      %v2418 = vadd.f32 %v2329, %v2417
      %v2419 = vpop.f32.mrf.mxu0
      %v2420 = vadd.f32 %v2331, %v2419
      %2421 = vmatmul.bf16.gmra.mxu0 %v1027
      %v2422 = vpop.f32.mrf.mxu0
      %v2423 = vadd.f32 %v2334, %v2422
      %v2424 = vpop.f32.mrf.mxu0
      %v2425 = vadd.f32 %v2336, %v2424
      %2426 = vmatmul.bf16.gmra.mxu0 %v1028
      %v2427 = vpop.f32.mrf.mxu0
      %v2428 = vadd.f32 %v2339, %v2427
      %v2429 = vpop.f32.mrf.mxu0
      %v2430 = vadd.f32 %v2341, %v2429
      %2431 = vmatmul.bf16.gmra.mxu0 %v1029
      %v2432 = vpop.f32.mrf.mxu0
      %v2433 = vadd.f32 %v2344, %v2432
      %v2434 = vpop.f32.mrf.mxu0
      %v2435 = vadd.f32 %v2346, %v2434
      %2436 = vmatmul.bf16.gmra.mxu0 %v1056
      %v2437 = vpop.f32.mrf.mxu0
      %v2438 = vadd.f32 %v2349, %v2437
      %v2439 = vpop.f32.mrf.mxu0
      %v2440 = vadd.f32 %v2351, %v2439
      %2441 = vmatmul.bf16.gmra.mxu0 %v1068
      %v2442 = vpop.f32.mrf.mxu0
      %v2443 = vadd.f32 %v2354, %v2442
      %v2444 = vpop.f32.mrf.mxu0
      %v2445 = vadd.f32 %v2356, %v2444
      %2446 = vdwg.mxu0
      %v2447 = vadd.f32 %v2368, %v2370
      %v2448 = vadd.f32 %v2447, %v2373
      %v2449 = vadd.f32 %v2448, %v2375
      %v2450 = vadd.f32 %v2449, %v2378
      %v2451 = vadd.f32 %v2450, %v2380
      %v2452 = vadd.f32 %v2451, %v2383
      %v2453 = vadd.f32 %v2452, %v2385
      %v2454 = vadd.f32 %v2453, %v2388
      %v2455 = vadd.f32 %v2454, %v2390
      %v2456 = vadd.f32 %v2455, %v2393
      %v2457 = vadd.f32 %v2456, %v2395
      %v2458 = vadd.f32 %v2457, %v2398
      %v2459 = vadd.f32 %v2458, %v2400
      %v2460 = vadd.f32 %v2459, %v2403
      %v2461 = vadd.f32 %v2460, %v2405
      %v2462 = vadd.f32 %v2461, %v2408
      %v2463 = vadd.f32 %v2462, %v2410
      %v2464 = vadd.f32 %v2463, %v2413
      %v2465 = vadd.f32 %v2464, %v2415
      %v2466 = vadd.f32 %v2465, %v2418
      %v2467 = vadd.f32 %v2466, %v2420
      %v2468 = vadd.f32 %v2467, %v2423
      %v2469 = vadd.f32 %v2468, %v2425
      %v2470 = vadd.f32 %v2469, %v2428
      %v2471 = vadd.f32 %v2470, %v2430
      %v2472 = vadd.f32 %v2471, %v2433
      %v2473 = vadd.f32 %v2472, %v2435
      %v2474 = vadd.f32 %v2473, %v2438
      %v2475 = vadd.f32 %v2474, %v2440
      %v2476 = vadd.f32 %v2475, %v2443
      %v2477 = vadd.f32 %v2476, %v2445
      %v2478 = vrot.slane %v2477, 4
      %v2479 = vadd.f32 %v2477, %v2478
      %v2480 = vrot.slane %v2479, 2
      %v2481 = vadd.f32 %v2479, %v2480
      %v2482 = vrot.slane %v2481, 1
      %v2483 = vadd.f32 %v2481, %v2482
      %v2484 = vmul.f32 %v2368, %v2368
      %v2485 = vmul.f32 %v2370, %v2370
      %v2486 = vmul.f32 %v2373, %v2373
      %v2487 = vmul.f32 %v2375, %v2375
      %v2488 = vmul.f32 %v2378, %v2378
      %v2489 = vmul.f32 %v2380, %v2380
      %v2490 = vmul.f32 %v2383, %v2383
      %v2491 = vmul.f32 %v2385, %v2385
      %v2492 = vmul.f32 %v2388, %v2388
      %v2493 = vmul.f32 %v2390, %v2390
      %v2494 = vmul.f32 %v2393, %v2393
      %v2495 = vmul.f32 %v2395, %v2395
      %v2496 = vmul.f32 %v2398, %v2398
      %v2497 = vmul.f32 %v2400, %v2400
      %v2498 = vmul.f32 %v2403, %v2403
      %v2499 = vmul.f32 %v2405, %v2405
      %v2500 = vmul.f32 %v2408, %v2408
      %v2501 = vmul.f32 %v2410, %v2410
      %v2502 = vmul.f32 %v2413, %v2413
      %v2503 = vmul.f32 %v2415, %v2415
      %v2504 = vmul.f32 %v2418, %v2418
      %v2505 = vmul.f32 %v2420, %v2420
      %v2506 = vmul.f32 %v2423, %v2423
      %v2507 = vmul.f32 %v2425, %v2425
      %v2508 = vmul.f32 %v2428, %v2428
      %v2509 = vmul.f32 %v2430, %v2430
      %v2510 = vmul.f32 %v2433, %v2433
      %v2511 = vmul.f32 %v2435, %v2435
      %v2512 = vmul.f32 %v2438, %v2438
      %v2513 = vmul.f32 %v2440, %v2440
      %v2514 = vmul.f32 %v2443, %v2443
      %v2515 = vmul.f32 %v2445, %v2445
      %v2516 = vadd.f32 %v2484, %v2485
      %v2517 = vadd.f32 %v2516, %v2486
      %v2518 = vadd.f32 %v2517, %v2487
      %v2519 = vadd.f32 %v2518, %v2488
      %v2520 = vadd.f32 %v2519, %v2489
      %v2521 = vadd.f32 %v2520, %v2490
      %v2522 = vadd.f32 %v2521, %v2491
      %v2523 = vadd.f32 %v2522, %v2492
      %v2524 = vadd.f32 %v2523, %v2493
      %v2525 = vadd.f32 %v2524, %v2494
      %v2526 = vadd.f32 %v2525, %v2495
      %v2527 = vadd.f32 %v2526, %v2496
      %v2528 = vadd.f32 %v2527, %v2497
      %v2529 = vadd.f32 %v2528, %v2498
      %v2530 = vadd.f32 %v2529, %v2499
      %v2531 = vadd.f32 %v2530, %v2500
      %v2532 = vadd.f32 %v2531, %v2501
      %v2533 = vadd.f32 %v2532, %v2502
      %v2534 = vadd.f32 %v2533, %v2503
      %v2535 = vadd.f32 %v2534, %v2504
      %v2536 = vadd.f32 %v2535, %v2505
      %v2537 = vadd.f32 %v2536, %v2506
      %v2538 = vadd.f32 %v2537, %v2507
      %v2539 = vadd.f32 %v2538, %v2508
      %v2540 = vadd.f32 %v2539, %v2509
      %v2541 = vadd.f32 %v2540, %v2510
      %v2542 = vadd.f32 %v2541, %v2511
      %v2543 = vadd.f32 %v2542, %v2512
      %v2544 = vadd.f32 %v2543, %v2513
      %v2545 = vadd.f32 %v2544, %v2514
      %v2546 = vadd.f32 %v2545, %v2515
      %v2547 = vrot.slane %v2546, 4
      %v2548 = vadd.f32 %v2546, %v2547
      %v2549 = vrot.slane %v2548, 2
      %v2550 = vadd.f32 %v2548, %v2549
      %v2551 = vrot.slane %v2550, 1
      %v2552 = vadd.f32 %v2550, %v2551
      %vm2553 = vcmask 1040384
      %v2554 = vsel %vm2553, %v2483, %v2552
      %2555 = vst [vmem:[%s181] sm:$0x3] %v2554
      %v2556 = vpack.c.bf16 %v2368, %v2368
      %v2557 = vpack.c.bf16 %v2370, %v2370
      %v2558 = vpack.c.bf16 %v2373, %v2373
      %v2559 = vpack.c.bf16 %v2375, %v2375
      %v2560 = vpack.c.bf16 %v2378, %v2378
      %v2561 = vpack.c.bf16 %v2380, %v2380
      %v2562 = vpack.c.bf16 %v2383, %v2383
      %v2563 = vpack.c.bf16 %v2385, %v2385
      %v2564 = vpack.c.bf16 %v2388, %v2388
      %v2565 = vpack.c.bf16 %v2390, %v2390
      %v2566 = vpack.c.bf16 %v2393, %v2393
      %v2567 = vpack.c.bf16 %v2395, %v2395
      %v2568 = vpack.c.bf16 %v2398, %v2398
      %v2569 = vpack.c.bf16 %v2400, %v2400
      %v2570 = vpack.c.bf16 %v2403, %v2403
      %v2571 = vpack.c.bf16 %v2405, %v2405
      %v2572 = vpack.c.bf16 %v2408, %v2408
      %v2573 = vpack.c.bf16 %v2410, %v2410
      %v2574 = vpack.c.bf16 %v2413, %v2413
      %v2575 = vpack.c.bf16 %v2415, %v2415
      %v2576 = vpack.c.bf16 %v2418, %v2418
      %v2577 = vpack.c.bf16 %v2420, %v2420
      %v2578 = vpack.c.bf16 %v2423, %v2423
      %v2579 = vpack.c.bf16 %v2425, %v2425
      %v2580 = vpack.c.bf16 %v2428, %v2428
      %v2581 = vpack.c.bf16 %v2430, %v2430
      %v2582 = vpack.c.bf16 %v2433, %v2433
      %v2583 = vpack.c.bf16 %v2435, %v2435
      %v2584 = vpack.c.bf16 %v2438, %v2438
      %v2585 = vpack.c.bf16 %v2440, %v2440
      %v2586 = vpack.c.bf16 %v2443, %v2443
      %v2587 = vpack.c.bf16 %v2445, %v2445
      %2588 = vst [vmem:[%s177] sm:$0xf] %v2556
      %2589 = vst [vmem:[%s177 + $0x4] sm:$0xf] %v2557
      %2590 = vst [vmem:[%s177 + $0x8] sm:$0xf] %v2558
      %2591 = vst [vmem:[%s177 + $0xc] sm:$0xf] %v2559
      %2592 = vst [vmem:[%s177 + $0x10] sm:$0xf] %v2560
      %2593 = vst [vmem:[%s177 + $0x14] sm:$0xf] %v2561
      %2594 = vst [vmem:[%s177 + $0x18] sm:$0xf] %v2562
      %2595 = vst [vmem:[%s177 + $0x1c] sm:$0xf] %v2563
      %2596 = vst [vmem:[%s177 + $0x20] sm:$0xf] %v2564
      %2597 = vst [vmem:[%s177 + $0x24] sm:$0xf] %v2565
      %2598 = vst [vmem:[%s177 + $0x28] sm:$0xf] %v2566
      %2599 = vst [vmem:[%s177 + $0x2c] sm:$0xf] %v2567
      %2600 = vst [vmem:[%s177 + $0x30] sm:$0xf] %v2568
      %2601 = vst [vmem:[%s177 + $0x34] sm:$0xf] %v2569
      %2602 = vst [vmem:[%s177 + $0x38] sm:$0xf] %v2570
      %2603 = vst [vmem:[%s177 + $0x3c] sm:$0xf] %v2571
      %2604 = vst [vmem:[%s177 + $0x40] sm:$0xf] %v2572
      %2605 = vst [vmem:[%s177 + $0x44] sm:$0xf] %v2573
      %2606 = vst [vmem:[%s177 + $0x48] sm:$0xf] %v2574
      %2607 = vst [vmem:[%s177 + $0x4c] sm:$0xf] %v2575
      %2608 = vst [vmem:[%s177 + $0x50] sm:$0xf] %v2576
      %2609 = vst [vmem:[%s177 + $0x54] sm:$0xf] %v2577
      %2610 = vst [vmem:[%s177 + $0x58] sm:$0xf] %v2578
      %2611 = vst [vmem:[%s177 + $0x5c] sm:$0xf] %v2579
      %2612 = vst [vmem:[%s177 + $0x60] sm:$0xf] %v2580
      %2613 = vst [vmem:[%s177 + $0x64] sm:$0xf] %v2581
      %2614 = vst [vmem:[%s177 + $0x68] sm:$0xf] %v2582
      %2615 = vst [vmem:[%s177 + $0x6c] sm:$0xf] %v2583
      %2616 = vst [vmem:[%s177 + $0x70] sm:$0xf] %v2584
      %2617 = vst [vmem:[%s177 + $0x74] sm:$0xf] %v2585
      %2618 = vst [vmem:[%s177 + $0x78] sm:$0xf] %v2586
      %2619 = vst [vmem:[%s177 + $0x7c] sm:$0xf] %v2587
      %p2620 = scmp.lt.s32.totalorder %s15, 1
      %s2621 = scalar_select %p2620, %s15, 1
      %s2622 = smul.addr %s2621, 32
      %s2623 = smul.addr %s2622, 4
      %s2624 = scalar_lea.vmem %s2, %s2623
      %p2625 = scmp.lt.s32.totalorder %s15, 1
      %s2626 = scalar_select %p2625, %s15, 1
      %s2627 = smul.addr %s2626, 2
      %s2628 = scalar_lea.vmem %s3, %s2627
      // Predicated region
      $region29: #{basic_block_forward.3} parent=27 // pred_check
        %p2629 = pneg %p80
      $region30: #{basic_block_forward.3} parent=27 // pred_check_branch
        %2631 = sbr.rel (%p2629) target = $region32
      $region31: #{basic_block_forward.3} parent=27 // pred_region
        _
      $region32: #{basic_block_forward.3} parent=27 // pred_fallthru
        _
      // Predicated region
      $region33: #{basic_block_forward.3} parent=27 // pred_check
        %p2632 = pneg %p106
      $region34: #{basic_block_forward.3} parent=27 // pred_check_branch
        %2634 = sbr.rel (%p2632) target = $region36
      $region35: #{basic_block_forward.3} parent=27 // pred_region
        _
      $region36: #{basic_block_forward.3} parent=27 // pred_fallthru
        _
    $region28: #{basic_block_forward.3} parent=5 // pred_fallthru
      _
    %p2635 = scmp.le.s32.totalorder 2, %s10
    // Predicated region
    $region37: #{basic_block_forward.3} parent=5 // pred_check
      %p2636 = pneg %p2635
    $region38: #{basic_block_forward.3} parent=5 // pred_check_branch
      %2638 = sbr.rel (%p2636) target = $region40
    $region39: #{basic_block_forward.3} parent=5 // pred_region
      %s2639 = ssub.s32 %s10, 2
      // Predicated region
      $region41: #{basic_block_forward.3} parent=39 // pred_check
        %p2640 = pneg %p86
      $region42: #{basic_block_forward.3} parent=39 // pred_check_branch
        %2642 = sbr.rel (%p2640) target = $region44
      $region43: #{basic_block_forward.3} parent=39 // pred_region
        %p2643 = scmp.lt.s32.totalorder %s16, 1
        %s2644 = scalar_select %p2643, %s16, 1
        %s2645 = smul.addr %s2644, 32
        %s2646 = smul.addr %s2645, 4
        %s2647 = scalar_lea.vmem %s2, %s2646
      $region44: #{basic_block_forward.3} parent=39 // pred_fallthru
        _
      // Predicated region
      $region45: #{basic_block_forward.3} parent=39 // pred_check
        %p2648 = pneg %p112
      $region46: #{basic_block_forward.3} parent=39 // pred_check_branch
        %2650 = sbr.rel (%p2648) target = $region48
      $region47: #{basic_block_forward.3} parent=39 // pred_region
        %p2651 = scmp.lt.s32.totalorder %s16, 1
        %s2652 = scalar_select %p2651, %s16, 1
        %s2653 = smul.addr %s2652, 2
        %s2654 = scalar_lea.vmem %s3, %s2653
      $region48: #{basic_block_forward.3} parent=39 // pred_fallthru
        _
    $region40: #{basic_block_forward.3} parent=5 // pred_fallthru
      _
  $region6: #{basic_block_forward.3} parent=0 // loop_footer
    %s14 = sadd.s32 1, %s10
  $region7: #{basic_block_forward.3} parent=0 // loop_footer_branch
    %9 = sbr.rel target = $region3
  $region8: #{basic_block_forward.3} parent=0 // loop_exit
    _

</llo_original>
